<compile_context>
chip_gen: v7x
topology: tpu7x:2x2x1
jax: 0.10.0
libtpu: 0.0.40
codegen_flags: <defaults>
</compile_context>

<pallas_src>
import jax
import jax.numpy as jnp
from jax import lax
from jax.experimental import pallas as pl
from jax.experimental.pallas import tpu as pltpu


# ------------------------------ Pallas kernel -------------------------------

def _conv_bn_relu_kernel(x0_ref, x1_ref, x2_ref, w_ref, scale_ref, bias_ref,
                         o_ref):
    """Conv3d(k=3, pad=1, no bias) + folded BN + ReLU for one (n, d) plane.

    x{0,1,2}_ref : (1, 1, H+2, W+2, Cin) bf16 -- padded input planes at padded
                   depths d, d+1, d+2 (i.e. unpadded depths d-1, d, d+1).
    w_ref        : (27*Cin, Cout) bf16 -- taps ordered (kd, kh, kw, cin).
    scale_ref    : (1, Cout) f32       -- gamma / sqrt(var + eps)
    bias_ref     : (1, Cout) f32       -- beta - mean * scale
    o_ref        : (1, 1, H, W, Cout)
    """
    _, _, Ho, Wo, Cout = o_ref.shape
    Cin = x0_ref.shape[-1]

    # Build the im2col patch entirely in VMEM: 27 statically shifted
    # (Ho, Wo, Cin) views concatenated along the lane axis.
    taps = []
    for x_ref in (x0_ref, x1_ref, x2_ref):            # kd = 0, 1, 2
        x = x_ref[0, 0]                                # (Ho+2, Wo+2, Cin)
        for kh in range(3):
            for kw in range(3):
                taps.append(x[kh:kh + Ho, kw:kw + Wo, :])
    patch = jnp.concatenate(taps, axis=-1)             # (Ho, Wo, 27*Cin)
    patch = patch.reshape(Ho * Wo, 27 * Cin)

    # Single MXU contraction with K = 27*Cin (bf16 inputs, f32 accumulate).
    acc = jnp.dot(patch, w_ref[...], preferred_element_type=jnp.float32)

    # Folded-BN scale/bias + ReLU epilogue in f32.
    y = jnp.maximum(acc * scale_ref[...] + bias_ref[...], 0.0)
    o_ref[...] = y.reshape(1, 1, Ho, Wo, Cout).astype(o_ref.dtype)


# ------------------------------ JAX wrappers ---------------------------------

def conv3d_bn_relu(x_ndhwc, w_oidhw, scale, bias, out_dtype=jnp.float32):
    """Conv3d(k=3, pad=1, no bias) + inference BN + ReLU on an NDHWC tensor."""
    N, D, H, W, Cin = x_ndhwc.shape
    Cout = w_oidhw.shape[0]
    Hp, Wp = H + 2, W + 2

    # Zero-pad all spatial dims by 1; bf16 halves DMA bytes into the kernel.
    xp = jnp.pad(x_ndhwc.astype(jnp.bfloat16),
                 ((0, 0), (1, 1), (1, 1), (1, 1), (0, 0)))
    # (Cout, Cin, kd, kh, kw) -> (kd, kh, kw, Cin, Cout) -> (27*Cin, Cout),
    # matching the in-kernel patch column order.
    wk = jnp.transpose(w_oidhw, (2, 3, 4, 1, 0)).reshape(27 * Cin, Cout)
    wk = wk.astype(jnp.bfloat16)
    scale2d = scale.reshape(1, Cout).astype(jnp.float32)
    bias2d = bias.reshape(1, Cout).astype(jnp.float32)

    # Same padded activation passed three times with depth-shifted index_maps
    # (block depth = 1): expresses the +/-1 depth halo with plain Blocked
    # BlockSpecs -- no HBM im2col materialization.
    x_specs = [
        pl.BlockSpec((1, 1, Hp, Wp, Cin),
                     lambda n, d, kd=kd: (n, d + kd, 0, 0, 0))
        for kd in range(3)
    ]
    # Constant index_maps -> weights / scale / bias stay VMEM-resident.
    const_specs = [
        pl.BlockSpec((27 * Cin, Cout), lambda n, d: (0, 0)),
        pl.BlockSpec((1, Cout), lambda n, d: (0, 0)),
        pl.BlockSpec((1, Cout), lambda n, d: (0, 0)),
    ]
    # TODO(synk): for very large H*W*Cin an additional H-tile (halo'd via
    # pl.Element blocks or manual DMA) would be needed to bound per-step VMEM;
    # for Down-block shapes one (n, d) plane is tiny.
    return pl.pallas_call(
        _conv_bn_relu_kernel,
        out_shape=jax.ShapeDtypeStruct((N, D, H, W, Cout), out_dtype),
        grid=(N, D),
        in_specs=x_specs + const_specs,
        out_specs=pl.BlockSpec((1, 1, H, W, Cout),
                               lambda n, d: (n, d, 0, 0, 0)),
        compiler_params=pltpu.CompilerParams(
            dimension_semantics=("parallel", "parallel"),
            vmem_limit_bytes=32 * 1024 * 1024),
    )(xp, xp, xp, wk, scale2d, bias2d)


def maxpool3d_2(x_ndhwc):
    """MaxPool3d(kernel=2, stride=2): single-pass pairwise max on strided
    views (no Pallas kernel, no 8x stacked HBM tensor -- per perf review)."""
    N, D, H, W, C = x_ndhwc.shape
    x = x_ndhwc[:, :(D // 2) * 2, :(H // 2) * 2, :(W // 2) * 2, :]  # floor, as in PyTorch
    x = jnp.maximum(x[:, 0::2], x[:, 1::2])
    x = jnp.maximum(x[:, :, 0::2], x[:, :, 1::2])
    x = jnp.maximum(x[:, :, :, 0::2], x[:, :, :, 1::2])
    return x


def down_forward(x_ncdhw, params):
    """Down.forward: MaxPool3d(2) -> (Conv3d+BN+ReLU) x 2.  NCDHW in/out."""
    x = jnp.transpose(x_ncdhw, (0, 2, 3, 4, 1))             # NCDHW -> NDHWC
    x = maxpool3d_2(x)
    # conv1 output stays bf16 NDHWC so conv2 consumes it directly
    # (no intermediate reshape/transpose, half the intermediate HBM bytes).
    x = conv3d_bn_relu(x, params["w1"], params["scale1"], params["bias1"],
                       out_dtype=jnp.bfloat16)
    x = conv3d_bn_relu(x, params["w2"], params["scale2"], params["bias2"],
                       out_dtype=jnp.float32)
    return jnp.transpose(x, (0, 4, 1, 2, 3))                 # NDHWC -> NCDHW


# -------------------------- deterministic params ----------------------------

def init_down_params(key, in_channels, out_channels):
    mid_channels = out_channels                     # DoubleConv default
    k1, k2 = jax.random.split(key)
    eps = 1e-5

    def bn_fold(c, off):
        # Deterministic, slightly non-trivial BN parameters (inference mode).
        gamma = jnp.linspace(0.8, 1.2, c, dtype=jnp.float32)
        beta = jnp.linspace(-0.05, 0.05, c, dtype=jnp.float32) + off
        running_mean = jnp.linspace(-0.02, 0.02, c, dtype=jnp.float32)
        running_var = jnp.ones((c,), jnp.float32)
        scale = gamma / jnp.sqrt(running_var + eps)
        bias = beta - running_mean * scale
        return scale, bias

    w1 = 0.1 * jax.random.normal(
        k1, (mid_channels, in_channels, 3, 3, 3), jnp.float32)
    w2 = 0.1 * jax.random.normal(
        k2, (out_channels, mid_channels, 3, 3, 3), jnp.float32)
    scale1, bias1 = bn_fold(mid_channels, 0.0)
    scale2, bias2 = bn_fold(out_channels, 0.01)
    # TODO(synk): PyTorch BatchNorm3d in train mode uses batch statistics;
    # here BN is reproduced in eval/inference mode (running stats folded in).
    return dict(w1=w1, scale1=scale1, bias1=bias1,
                w2=w2, scale2=scale2, bias2=bias2)


# ------------------------------ pure-JAX refs --------------------------------

def _reference_conv(x, w, scale, bias, precision=None):
    z = lax.conv_general_dilated(
        x, w, (1, 1, 1), [(1, 1)] * 3,
        dimension_numbers=("NCDHW", "OIDHW", "NCDHW"), precision=precision)
    z = z * scale.reshape(1, -1, 1, 1, 1) + bias.reshape(1, -1, 1, 1, 1)
    return jnp.maximum(z, 0.0)


def reference_down_f32(x_ncdhw, params):
    """Pure-f32 reference (module semantics)."""
    y = lax.reduce_window(x_ncdhw, -jnp.inf, lax.max,
                          (1, 1, 2, 2, 2), (1, 1, 2, 2, 2), "VALID")
    y = _reference_conv(y, params["w1"], params["scale1"], params["bias1"],
                        precision=lax.Precision.HIGHEST)
    y = _reference_conv(y, params["w2"], params["scale2"], params["bias2"],
                        precision=lax.Precision.HIGHEST)
    return y


def reference_down_bf16(x_ncdhw, params):
    """Reference with the same bf16 rounding of matmul operands and of the
    conv1->conv2 intermediate as the Pallas path (f32 accumulation)."""
    q = lambda a: a.astype(jnp.bfloat16).astype(jnp.float32)
    y = lax.reduce_window(x_ncdhw, -jnp.inf, lax.max,
                          (1, 1, 2, 2, 2), (1, 1, 2, 2, 2), "VALID")
    y = _reference_conv(q(y), q(params["w1"]), params["scale1"],
                        params["bias1"])
    y = q(y)  # kernel stores the intermediate activation in bf16
    y = _reference_conv(q(y), q(params["w2"]), params["scale2"],
                        params["bias2"])
    return y


# ---------------------------------- main -------------------------------------

if __name__ == "__main__":
    key = jax.random.PRNGKey(0)
    kx, kp = jax.random.split(key)

    N, C_in, D, H, W = 2, 4, 8, 16, 16
    C_out = 8
    x = jax.random.normal(kx, (N, C_in, D, H, W), jnp.float32)
    params = init_down_params(kp, C_in, C_out)

    out = jax.block_until_ready(jax.jit(down_forward)(x, params))
    assert out.shape == (N, C_out, D // 2, H // 2, W // 2), out.shape

    # Tight check vs a reference applying the same bf16 operand rounding
    # (kernel accumulates in f32 -> only summation-order noise remains).
    ref_q = jax.block_until_ready(reference_down_bf16(x, params))
    assert jnp.allclose(out, ref_q, rtol=5e-3, atol=5e-3), (
        float(jnp.max(jnp.abs(out - ref_q))))

    # Loose sanity check vs pure-f32 module semantics (drift is from the
    # intentional bf16 MXU inputs; accumulation & epilogue stay f32).
    ref = jax.block_until_ready(reference_down_f32(x, params))
    assert jnp.allclose(out, ref, rtol=1e-1, atol=1e-1), (
        float(jnp.max(jnp.abs(out - ref))))

    print("KERNEL_OK")
</pallas_src>

<mosaic_0001>
module attributes {stable_mosaic.version = 11 : i64} {
  func.func @_conv_bn_relu_kernel(%arg0: i32, %arg1: i32, %arg2: memref<1x1x10x10x4xbf16, #tpu.memory_space<vmem>>, %arg3: memref<1x1x10x10x4xbf16, #tpu.memory_space<vmem>>, %arg4: memref<1x1x10x10x4xbf16, #tpu.memory_space<vmem>>, %arg5: memref<108x8xbf16, #tpu.memory_space<vmem>>, %arg6: memref<1x8xf32, #tpu.memory_space<vmem>>, %arg7: memref<1x8xf32, #tpu.memory_space<vmem>>, %arg8: memref<1x1x8x8x8xbf16, #tpu.memory_space<vmem>>) attributes {dimension_semantics = [#tpu.dimension_semantics<parallel>, #tpu.dimension_semantics<parallel>], iteration_bounds = array<i64: 2, 4>, scalar_prefetch = 0 : i64, scratch_operands = 0 : i64, tpu.core_type = #tpu.core_type<tc>, window_params = [{transform_indices = @transform_0, window_bounds = array<i64: 1, 1, 10, 10, 4>}, {transform_indices = @transform_1, window_bounds = array<i64: 1, 1, 10, 10, 4>}, {transform_indices = @transform_2, window_bounds = array<i64: 1, 1, 10, 10, 4>}, {pipeline_mode = #tpu.pipeline_mode<synchronous>, transform_indices = @transform_3, window_bounds = array<i64: 108, 8>}, {pipeline_mode = #tpu.pipeline_mode<synchronous>, transform_indices = @transform_4, window_bounds = array<i64: 1, 8>}, {pipeline_mode = #tpu.pipeline_mode<synchronous>, transform_indices = @transform_5, window_bounds = array<i64: 1, 8>}, {transform_indices = @transform_6, window_bounds = array<i64: 1, 1, 8, 8, 8>}]} {
    %c0 = arith.constant 0 : index
    %c0_0 = arith.constant 0 : index
    %c0_1 = arith.constant 0 : index
    %c0_2 = arith.constant 0 : index
    %c0_3 = arith.constant 0 : index
    %0 = vector.load %arg2[%c0, %c0_0, %c0_1, %c0_2, %c0_3] : memref<1x1x10x10x4xbf16, #tpu.memory_space<vmem>>, vector<1x1x10x10x4xbf16>
    %1 = vector.shape_cast %0 : vector<1x1x10x10x4xbf16> to vector<10x10x4xbf16>
    %2 = vector.extract_strided_slice %1 {offsets = [0, 0, 0], sizes = [8, 8, 4], strides = [1, 1, 1]} : vector<10x10x4xbf16> to vector<8x8x4xbf16>
    %3 = vector.extract_strided_slice %1 {offsets = [0, 1, 0], sizes = [8, 8, 4], strides = [1, 1, 1]} : vector<10x10x4xbf16> to vector<8x8x4xbf16>
    %4 = vector.extract_strided_slice %1 {offsets = [0, 2, 0], sizes = [8, 8, 4], strides = [1, 1, 1]} : vector<10x10x4xbf16> to vector<8x8x4xbf16>
    %5 = vector.extract_strided_slice %1 {offsets = [1, 0, 0], sizes = [8, 8, 4], strides = [1, 1, 1]} : vector<10x10x4xbf16> to vector<8x8x4xbf16>
    %6 = vector.extract_strided_slice %1 {offsets = [1, 1, 0], sizes = [8, 8, 4], strides = [1, 1, 1]} : vector<10x10x4xbf16> to vector<8x8x4xbf16>
    %7 = vector.extract_strided_slice %1 {offsets = [1, 2, 0], sizes = [8, 8, 4], strides = [1, 1, 1]} : vector<10x10x4xbf16> to vector<8x8x4xbf16>
    %8 = vector.extract_strided_slice %1 {offsets = [2, 0, 0], sizes = [8, 8, 4], strides = [1, 1, 1]} : vector<10x10x4xbf16> to vector<8x8x4xbf16>
    %9 = vector.extract_strided_slice %1 {offsets = [2, 1, 0], sizes = [8, 8, 4], strides = [1, 1, 1]} : vector<10x10x4xbf16> to vector<8x8x4xbf16>
    %10 = vector.extract_strided_slice %1 {offsets = [2, 2, 0], sizes = [8, 8, 4], strides = [1, 1, 1]} : vector<10x10x4xbf16> to vector<8x8x4xbf16>
    %c0_4 = arith.constant 0 : index
    %c0_5 = arith.constant 0 : index
    %c0_6 = arith.constant 0 : index
    %c0_7 = arith.constant 0 : index
    %c0_8 = arith.constant 0 : index
    %11 = vector.load %arg3[%c0_4, %c0_5, %c0_6, %c0_7, %c0_8] : memref<1x1x10x10x4xbf16, #tpu.memory_space<vmem>>, vector<1x1x10x10x4xbf16>
    %12 = vector.shape_cast %11 : vector<1x1x10x10x4xbf16> to vector<10x10x4xbf16>
    %13 = vector.extract_strided_slice %12 {offsets = [0, 0, 0], sizes = [8, 8, 4], strides = [1, 1, 1]} : vector<10x10x4xbf16> to vector<8x8x4xbf16>
    %14 = vector.extract_strided_slice %12 {offsets = [0, 1, 0], sizes = [8, 8, 4], strides = [1, 1, 1]} : vector<10x10x4xbf16> to vector<8x8x4xbf16>
    %15 = vector.extract_strided_slice %12 {offsets = [0, 2, 0], sizes = [8, 8, 4], strides = [1, 1, 1]} : vector<10x10x4xbf16> to vector<8x8x4xbf16>
    %16 = vector.extract_strided_slice %12 {offsets = [1, 0, 0], sizes = [8, 8, 4], strides = [1, 1, 1]} : vector<10x10x4xbf16> to vector<8x8x4xbf16>
    %17 = vector.extract_strided_slice %12 {offsets = [1, 1, 0], sizes = [8, 8, 4], strides = [1, 1, 1]} : vector<10x10x4xbf16> to vector<8x8x4xbf16>
    %18 = vector.extract_strided_slice %12 {offsets = [1, 2, 0], sizes = [8, 8, 4], strides = [1, 1, 1]} : vector<10x10x4xbf16> to vector<8x8x4xbf16>
    %19 = vector.extract_strided_slice %12 {offsets = [2, 0, 0], sizes = [8, 8, 4], strides = [1, 1, 1]} : vector<10x10x4xbf16> to vector<8x8x4xbf16>
    %20 = vector.extract_strided_slice %12 {offsets = [2, 1, 0], sizes = [8, 8, 4], strides = [1, 1, 1]} : vector<10x10x4xbf16> to vector<8x8x4xbf16>
    %21 = vector.extract_strided_slice %12 {offsets = [2, 2, 0], sizes = [8, 8, 4], strides = [1, 1, 1]} : vector<10x10x4xbf16> to vector<8x8x4xbf16>
    %c0_9 = arith.constant 0 : index
    %c0_10 = arith.constant 0 : index
    %c0_11 = arith.constant 0 : index
    %c0_12 = arith.constant 0 : index
    %c0_13 = arith.constant 0 : index
    %22 = vector.load %arg4[%c0_9, %c0_10, %c0_11, %c0_12, %c0_13] : memref<1x1x10x10x4xbf16, #tpu.memory_space<vmem>>, vector<1x1x10x10x4xbf16>
    %23 = vector.shape_cast %22 : vector<1x1x10x10x4xbf16> to vector<10x10x4xbf16>
    %24 = vector.extract_strided_slice %23 {offsets = [0, 0, 0], sizes = [8, 8, 4], strides = [1, 1, 1]} : vector<10x10x4xbf16> to vector<8x8x4xbf16>
    %25 = vector.extract_strided_slice %23 {offsets = [0, 1, 0], sizes = [8, 8, 4], strides = [1, 1, 1]} : vector<10x10x4xbf16> to vector<8x8x4xbf16>
    %26 = vector.extract_strided_slice %23 {offsets = [0, 2, 0], sizes = [8, 8, 4], strides = [1, 1, 1]} : vector<10x10x4xbf16> to vector<8x8x4xbf16>
    %27 = vector.extract_strided_slice %23 {offsets = [1, 0, 0], sizes = [8, 8, 4], strides = [1, 1, 1]} : vector<10x10x4xbf16> to vector<8x8x4xbf16>
    %28 = vector.extract_strided_slice %23 {offsets = [1, 1, 0], sizes = [8, 8, 4], strides = [1, 1, 1]} : vector<10x10x4xbf16> to vector<8x8x4xbf16>
    %29 = vector.extract_strided_slice %23 {offsets = [1, 2, 0], sizes = [8, 8, 4], strides = [1, 1, 1]} : vector<10x10x4xbf16> to vector<8x8x4xbf16>
    %30 = vector.extract_strided_slice %23 {offsets = [2, 0, 0], sizes = [8, 8, 4], strides = [1, 1, 1]} : vector<10x10x4xbf16> to vector<8x8x4xbf16>
    %31 = vector.extract_strided_slice %23 {offsets = [2, 1, 0], sizes = [8, 8, 4], strides = [1, 1, 1]} : vector<10x10x4xbf16> to vector<8x8x4xbf16>
    %32 = vector.extract_strided_slice %23 {offsets = [2, 2, 0], sizes = [8, 8, 4], strides = [1, 1, 1]} : vector<10x10x4xbf16> to vector<8x8x4xbf16>
    %33 = tpu.concatenate %2, %3, %4, %5, %6, %7, %8, %9, %10, %13, %14, %15, %16, %17, %18, %19 in 2 : vector<8x8x4xbf16>, vector<8x8x4xbf16>, vector<8x8x4xbf16>, vector<8x8x4xbf16>, vector<8x8x4xbf16>, vector<8x8x4xbf16>, vector<8x8x4xbf16>, vector<8x8x4xbf16>, vector<8x8x4xbf16>, vector<8x8x4xbf16>, vector<8x8x4xbf16>, vector<8x8x4xbf16>, vector<8x8x4xbf16>, vector<8x8x4xbf16>, vector<8x8x4xbf16>, vector<8x8x4xbf16> -> vector<8x8x64xbf16>
    %34 = tpu.concatenate %20, %21, %24, %25, %26, %27, %28, %29, %30, %31, %32 in 2 : vector<8x8x4xbf16>, vector<8x8x4xbf16>, vector<8x8x4xbf16>, vector<8x8x4xbf16>, vector<8x8x4xbf16>, vector<8x8x4xbf16>, vector<8x8x4xbf16>, vector<8x8x4xbf16>, vector<8x8x4xbf16>, vector<8x8x4xbf16>, vector<8x8x4xbf16> -> vector<8x8x44xbf16>
    %35 = tpu.concatenate %33, %34 in 2 : vector<8x8x64xbf16>, vector<8x8x44xbf16> -> vector<8x8x108xbf16>
    %36 = vector.shape_cast %35 : vector<8x8x108xbf16> to vector<64x108xbf16>
    %c0_14 = arith.constant 0 : index
    %c0_15 = arith.constant 0 : index
    %37 = vector.load %arg5[%c0_14, %c0_15] : memref<108x8xbf16, #tpu.memory_space<vmem>>, vector<108x8xbf16>
    %cst = arith.constant dense<0.000000e+00> : vector<64x8xf32>
    %38 = tpu.matmul %36, %37, %cst {dimension_numbers = #tpu.dot_dimension_numbers<[1], [0], [0], [1], [0, 0, 1, 1], [], []>} : vector<64x108xbf16>, vector<108x8xbf16>, vector<64x8xf32> -> vector<64x8xf32>
    %c0_16 = arith.constant 0 : index
    %c0_17 = arith.constant 0 : index
    %39 = vector.load %arg6[%c0_16, %c0_17] : memref<1x8xf32, #tpu.memory_space<vmem>>, vector<1x8xf32>
    %40 = vector.broadcast %39 : vector<1x8xf32> to vector<64x8xf32>
    %41 = arith.mulf %38, %40 : vector<64x8xf32>
    %c0_18 = arith.constant 0 : index
    %c0_19 = arith.constant 0 : index
    %42 = vector.load %arg7[%c0_18, %c0_19] : memref<1x8xf32, #tpu.memory_space<vmem>>, vector<1x8xf32>
    %43 = vector.broadcast %42 : vector<1x8xf32> to vector<64x8xf32>
    %44 = arith.addf %41, %43 : vector<64x8xf32>
    %cst_20 = arith.constant 0.000000e+00 : f32
    %45 = vector.broadcast %cst_20 : f32 to vector<64x8xf32>
    %46 = arith.maximumf %44, %45 : vector<64x8xf32>
    %47 = vector.shape_cast %46 : vector<64x8xf32> to vector<1x1x8x8x8xf32>
    %48 = arith.truncf %47 : vector<1x1x8x8x8xf32> to vector<1x1x8x8x8xbf16>
    %c0_21 = arith.constant 0 : index
    %c0_22 = arith.constant 0 : index
    %c0_23 = arith.constant 0 : index
    %c0_24 = arith.constant 0 : index
    %c0_25 = arith.constant 0 : index
    %49 = vector.load %arg8[%c0_21, %c0_22, %c0_23, %c0_24, %c0_25] : memref<1x1x8x8x8xbf16, #tpu.memory_space<vmem>>, vector<1x1x8x8x8xbf16>
    tpu.vector_store %arg8[%c0_21, %c0_22, %c0_23, %c0_24, %c0_25], %48 {strides = array<i32>} : memref<1x1x8x8x8xbf16, #tpu.memory_space<vmem>>, vector<1x1x8x8x8xbf16>,
    return
  }
  func.func @transform_0(%arg0: i32, %arg1: i32) -> (i32, i32, i32, i32, i32) {
    %c0_i32 = arith.constant 0 : i32
    %0 = arith.addi %arg1, %c0_i32 : i32
    %c0_i32_0 = arith.constant 0 : i32
    %c0_i32_1 = arith.constant 0 : i32
    %c0_i32_2 = arith.constant 0 : i32
    %c0_i32_3 = arith.constant 0 : i32
    return %arg0, %0, %c0_i32_0, %c0_i32_1, %c0_i32_2 : i32, i32, i32, i32, i32
  }
  func.func @transform_1(%arg0: i32, %arg1: i32) -> (i32, i32, i32, i32, i32) {
    %c1_i32 = arith.constant 1 : i32
    %0 = arith.addi %arg1, %c1_i32 : i32
    %c0_i32 = arith.constant 0 : i32
    %c0_i32_0 = arith.constant 0 : i32
    %c0_i32_1 = arith.constant 0 : i32
    %c0_i32_2 = arith.constant 0 : i32
    return %arg0, %0, %c0_i32, %c0_i32_0, %c0_i32_1 : i32, i32, i32, i32, i32
  }
  func.func @transform_2(%arg0: i32, %arg1: i32) -> (i32, i32, i32, i32, i32) {
    %c2_i32 = arith.constant 2 : i32
    %0 = arith.addi %arg1, %c2_i32 : i32
    %c0_i32 = arith.constant 0 : i32
    %c0_i32_0 = arith.constant 0 : i32
    %c0_i32_1 = arith.constant 0 : i32
    %c0_i32_2 = arith.constant 0 : i32
    return %arg0, %0, %c0_i32, %c0_i32_0, %c0_i32_1 : i32, i32, i32, i32, i32
  }
  func.func @transform_3(%arg0: i32, %arg1: i32) -> (i32, i32) {
    %c0_i32 = arith.constant 0 : i32
    %c0_i32_0 = arith.constant 0 : i32
    %c0_i32_1 = arith.constant 0 : i32
    return %c0_i32, %c0_i32_0 : i32, i32
  }
  func.func @transform_4(%arg0: i32, %arg1: i32) -> (i32, i32) {
    %c0_i32 = arith.constant 0 : i32
    %c0_i32_0 = arith.constant 0 : i32
    %c0_i32_1 = arith.constant 0 : i32
    return %c0_i32, %c0_i32_0 : i32, i32
  }
  func.func @transform_5(%arg0: i32, %arg1: i32) -> (i32, i32) {
    %c0_i32 = arith.constant 0 : i32
    %c0_i32_0 = arith.constant 0 : i32
    %c0_i32_1 = arith.constant 0 : i32
    return %c0_i32, %c0_i32_0 : i32, i32
  }
  func.func @transform_6(%arg0: i32, %arg1: i32) -> (i32, i32, i32, i32, i32) {
    %c0_i32 = arith.constant 0 : i32
    %c0_i32_0 = arith.constant 0 : i32
    %c0_i32_1 = arith.constant 0 : i32
    %c0_i32_2 = arith.constant 0 : i32
    return %arg0, %arg1, %c0_i32, %c0_i32_0, %c0_i32_1 : i32, i32, i32, i32, i32
  }
}

module attributes {stable_mosaic.version = 11 : i64} {
  func.func @_conv_bn_relu_kernel(%arg0: i32, %arg1: i32, %arg2: memref<1x1x10x10x8xbf16, #tpu.memory_space<vmem>>, %arg3: memref<1x1x10x10x8xbf16, #tpu.memory_space<vmem>>, %arg4: memref<1x1x10x10x8xbf16, #tpu.memory_space<vmem>>, %arg5: memref<216x8xbf16, #tpu.memory_space<vmem>>, %arg6: memref<1x8xf32, #tpu.memory_space<vmem>>, %arg7: memref<1x8xf32, #tpu.memory_space<vmem>>, %arg8: memref<1x1x8x8x8xf32, #tpu.memory_space<vmem>>) attributes {dimension_semantics = [#tpu.dimension_semantics<parallel>, #tpu.dimension_semantics<parallel>], iteration_bounds = array<i64: 2, 4>, scalar_prefetch = 0 : i64, scratch_operands = 0 : i64, tpu.core_type = #tpu.core_type<tc>, window_params = [{transform_indices = @transform_0, window_bounds = array<i64: 1, 1, 10, 10, 8>}, {transform_indices = @transform_1, window_bounds = array<i64: 1, 1, 10, 10, 8>}, {transform_indices = @transform_2, window_bounds = array<i64: 1, 1, 10, 10, 8>}, {pipeline_mode = #tpu.pipeline_mode<synchronous>, transform_indices = @transform_3, window_bounds = array<i64: 216, 8>}, {pipeline_mode = #tpu.pipeline_mode<synchronous>, transform_indices = @transform_4, window_bounds = array<i64: 1, 8>}, {pipeline_mode = #tpu.pipeline_mode<synchronous>, transform_indices = @transform_5, window_bounds = array<i64: 1, 8>}, {transform_indices = @transform_6, window_bounds = array<i64: 1, 1, 8, 8, 8>}]} {
    %c0 = arith.constant 0 : index
    %c0_0 = arith.constant 0 : index
    %c0_1 = arith.constant 0 : index
    %c0_2 = arith.constant 0 : index
    %c0_3 = arith.constant 0 : index
    %0 = vector.load %arg2[%c0, %c0_0, %c0_1, %c0_2, %c0_3] : memref<1x1x10x10x8xbf16, #tpu.memory_space<vmem>>, vector<1x1x10x10x8xbf16>
    %1 = vector.shape_cast %0 : vector<1x1x10x10x8xbf16> to vector<10x10x8xbf16>
    %2 = vector.extract_strided_slice %1 {offsets = [0, 0, 0], sizes = [8, 8, 8], strides = [1, 1, 1]} : vector<10x10x8xbf16> to vector<8x8x8xbf16>
    %3 = vector.extract_strided_slice %1 {offsets = [0, 1, 0], sizes = [8, 8, 8], strides = [1, 1, 1]} : vector<10x10x8xbf16> to vector<8x8x8xbf16>
    %4 = vector.extract_strided_slice %1 {offsets = [0, 2, 0], sizes = [8, 8, 8], strides = [1, 1, 1]} : vector<10x10x8xbf16> to vector<8x8x8xbf16>
    %5 = vector.extract_strided_slice %1 {offsets = [1, 0, 0], sizes = [8, 8, 8], strides = [1, 1, 1]} : vector<10x10x8xbf16> to vector<8x8x8xbf16>
    %6 = vector.extract_strided_slice %1 {offsets = [1, 1, 0], sizes = [8, 8, 8], strides = [1, 1, 1]} : vector<10x10x8xbf16> to vector<8x8x8xbf16>
    %7 = vector.extract_strided_slice %1 {offsets = [1, 2, 0], sizes = [8, 8, 8], strides = [1, 1, 1]} : vector<10x10x8xbf16> to vector<8x8x8xbf16>
    %8 = vector.extract_strided_slice %1 {offsets = [2, 0, 0], sizes = [8, 8, 8], strides = [1, 1, 1]} : vector<10x10x8xbf16> to vector<8x8x8xbf16>
    %9 = vector.extract_strided_slice %1 {offsets = [2, 1, 0], sizes = [8, 8, 8], strides = [1, 1, 1]} : vector<10x10x8xbf16> to vector<8x8x8xbf16>
    %10 = vector.extract_strided_slice %1 {offsets = [2, 2, 0], sizes = [8, 8, 8], strides = [1, 1, 1]} : vector<10x10x8xbf16> to vector<8x8x8xbf16>
    %c0_4 = arith.constant 0 : index
    %c0_5 = arith.constant 0 : index
    %c0_6 = arith.constant 0 : index
    %c0_7 = arith.constant 0 : index
    %c0_8 = arith.constant 0 : index
    %11 = vector.load %arg3[%c0_4, %c0_5, %c0_6, %c0_7, %c0_8] : memref<1x1x10x10x8xbf16, #tpu.memory_space<vmem>>, vector<1x1x10x10x8xbf16>
    %12 = vector.shape_cast %11 : vector<1x1x10x10x8xbf16> to vector<10x10x8xbf16>
    %13 = vector.extract_strided_slice %12 {offsets = [0, 0, 0], sizes = [8, 8, 8], strides = [1, 1, 1]} : vector<10x10x8xbf16> to vector<8x8x8xbf16>
    %14 = vector.extract_strided_slice %12 {offsets = [0, 1, 0], sizes = [8, 8, 8], strides = [1, 1, 1]} : vector<10x10x8xbf16> to vector<8x8x8xbf16>
    %15 = vector.extract_strided_slice %12 {offsets = [0, 2, 0], sizes = [8, 8, 8], strides = [1, 1, 1]} : vector<10x10x8xbf16> to vector<8x8x8xbf16>
    %16 = vector.extract_strided_slice %12 {offsets = [1, 0, 0], sizes = [8, 8, 8], strides = [1, 1, 1]} : vector<10x10x8xbf16> to vector<8x8x8xbf16>
    %17 = vector.extract_strided_slice %12 {offsets = [1, 1, 0], sizes = [8, 8, 8], strides = [1, 1, 1]} : vector<10x10x8xbf16> to vector<8x8x8xbf16>
    %18 = vector.extract_strided_slice %12 {offsets = [1, 2, 0], sizes = [8, 8, 8], strides = [1, 1, 1]} : vector<10x10x8xbf16> to vector<8x8x8xbf16>
    %19 = vector.extract_strided_slice %12 {offsets = [2, 0, 0], sizes = [8, 8, 8], strides = [1, 1, 1]} : vector<10x10x8xbf16> to vector<8x8x8xbf16>
    %20 = vector.extract_strided_slice %12 {offsets = [2, 1, 0], sizes = [8, 8, 8], strides = [1, 1, 1]} : vector<10x10x8xbf16> to vector<8x8x8xbf16>
    %21 = vector.extract_strided_slice %12 {offsets = [2, 2, 0], sizes = [8, 8, 8], strides = [1, 1, 1]} : vector<10x10x8xbf16> to vector<8x8x8xbf16>
    %c0_9 = arith.constant 0 : index
    %c0_10 = arith.constant 0 : index
    %c0_11 = arith.constant 0 : index
    %c0_12 = arith.constant 0 : index
    %c0_13 = arith.constant 0 : index
    %22 = vector.load %arg4[%c0_9, %c0_10, %c0_11, %c0_12, %c0_13] : memref<1x1x10x10x8xbf16, #tpu.memory_space<vmem>>, vector<1x1x10x10x8xbf16>
    %23 = vector.shape_cast %22 : vector<1x1x10x10x8xbf16> to vector<10x10x8xbf16>
    %24 = vector.extract_strided_slice %23 {offsets = [0, 0, 0], sizes = [8, 8, 8], strides = [1, 1, 1]} : vector<10x10x8xbf16> to vector<8x8x8xbf16>
    %25 = vector.extract_strided_slice %23 {offsets = [0, 1, 0], sizes = [8, 8, 8], strides = [1, 1, 1]} : vector<10x10x8xbf16> to vector<8x8x8xbf16>
    %26 = vector.extract_strided_slice %23 {offsets = [0, 2, 0], sizes = [8, 8, 8], strides = [1, 1, 1]} : vector<10x10x8xbf16> to vector<8x8x8xbf16>
    %27 = vector.extract_strided_slice %23 {offsets = [1, 0, 0], sizes = [8, 8, 8], strides = [1, 1, 1]} : vector<10x10x8xbf16> to vector<8x8x8xbf16>
    %28 = vector.extract_strided_slice %23 {offsets = [1, 1, 0], sizes = [8, 8, 8], strides = [1, 1, 1]} : vector<10x10x8xbf16> to vector<8x8x8xbf16>
    %29 = vector.extract_strided_slice %23 {offsets = [1, 2, 0], sizes = [8, 8, 8], strides = [1, 1, 1]} : vector<10x10x8xbf16> to vector<8x8x8xbf16>
    %30 = vector.extract_strided_slice %23 {offsets = [2, 0, 0], sizes = [8, 8, 8], strides = [1, 1, 1]} : vector<10x10x8xbf16> to vector<8x8x8xbf16>
    %31 = vector.extract_strided_slice %23 {offsets = [2, 1, 0], sizes = [8, 8, 8], strides = [1, 1, 1]} : vector<10x10x8xbf16> to vector<8x8x8xbf16>
    %32 = vector.extract_strided_slice %23 {offsets = [2, 2, 0], sizes = [8, 8, 8], strides = [1, 1, 1]} : vector<10x10x8xbf16> to vector<8x8x8xbf16>
    %33 = tpu.concatenate %2, %3, %4, %5, %6, %7, %8, %9, %10, %13, %14, %15, %16, %17, %18, %19 in 2 : vector<8x8x8xbf16>, vector<8x8x8xbf16>, vector<8x8x8xbf16>, vector<8x8x8xbf16>, vector<8x8x8xbf16>, vector<8x8x8xbf16>, vector<8x8x8xbf16>, vector<8x8x8xbf16>, vector<8x8x8xbf16>, vector<8x8x8xbf16>, vector<8x8x8xbf16>, vector<8x8x8xbf16>, vector<8x8x8xbf16>, vector<8x8x8xbf16>, vector<8x8x8xbf16>, vector<8x8x8xbf16> -> vector<8x8x128xbf16>
    %34 = tpu.concatenate %20, %21, %24, %25, %26, %27, %28, %29, %30, %31, %32 in 2 : vector<8x8x8xbf16>, vector<8x8x8xbf16>, vector<8x8x8xbf16>, vector<8x8x8xbf16>, vector<8x8x8xbf16>, vector<8x8x8xbf16>, vector<8x8x8xbf16>, vector<8x8x8xbf16>, vector<8x8x8xbf16>, vector<8x8x8xbf16>, vector<8x8x8xbf16> -> vector<8x8x88xbf16>
    %35 = tpu.concatenate %33, %34 in 2 : vector<8x8x128xbf16>, vector<8x8x88xbf16> -> vector<8x8x216xbf16>
    %36 = vector.shape_cast %35 : vector<8x8x216xbf16> to vector<64x216xbf16>
    %c0_14 = arith.constant 0 : index
    %c0_15 = arith.constant 0 : index
    %37 = vector.load %arg5[%c0_14, %c0_15] : memref<216x8xbf16, #tpu.memory_space<vmem>>, vector<216x8xbf16>
    %cst = arith.constant dense<0.000000e+00> : vector<64x8xf32>
    %38 = tpu.matmul %36, %37, %cst {dimension_numbers = #tpu.dot_dimension_numbers<[1], [0], [0], [1], [0, 0, 1, 1], [], []>} : vector<64x216xbf16>, vector<216x8xbf16>, vector<64x8xf32> -> vector<64x8xf32>
    %c0_16 = arith.constant 0 : index
    %c0_17 = arith.constant 0 : index
    %39 = vector.load %arg6[%c0_16, %c0_17] : memref<1x8xf32, #tpu.memory_space<vmem>>, vector<1x8xf32>
    %40 = vector.broadcast %39 : vector<1x8xf32> to vector<64x8xf32>
    %41 = arith.mulf %38, %40 : vector<64x8xf32>
    %c0_18 = arith.constant 0 : index
    %c0_19 = arith.constant 0 : index
    %42 = vector.load %arg7[%c0_18, %c0_19] : memref<1x8xf32, #tpu.memory_space<vmem>>, vector<1x8xf32>
    %43 = vector.broadcast %42 : vector<1x8xf32> to vector<64x8xf32>
    %44 = arith.addf %41, %43 : vector<64x8xf32>
    %cst_20 = arith.constant 0.000000e+00 : f32
    %45 = vector.broadcast %cst_20 : f32 to vector<64x8xf32>
    %46 = arith.maximumf %44, %45 : vector<64x8xf32>
    %47 = vector.shape_cast %46 : vector<64x8xf32> to vector<1x1x8x8x8xf32>
    %c0_21 = arith.constant 0 : index
    %c0_22 = arith.constant 0 : index
    %c0_23 = arith.constant 0 : index
    %c0_24 = arith.constant 0 : index
    %c0_25 = arith.constant 0 : index
    %48 = vector.load %arg8[%c0_21, %c0_22, %c0_23, %c0_24, %c0_25] : memref<1x1x8x8x8xf32, #tpu.memory_space<vmem>>, vector<1x1x8x8x8xf32>
    tpu.vector_store %arg8[%c0_21, %c0_22, %c0_23, %c0_24, %c0_25], %47 {strides = array<i32>} : memref<1x1x8x8x8xf32, #tpu.memory_space<vmem>>, vector<1x1x8x8x8xf32>,
    return
  }
  func.func @transform_0(%arg0: i32, %arg1: i32) -> (i32, i32, i32, i32, i32) {
    %c0_i32 = arith.constant 0 : i32
    %0 = arith.addi %arg1, %c0_i32 : i32
    %c0_i32_0 = arith.constant 0 : i32
    %c0_i32_1 = arith.constant 0 : i32
    %c0_i32_2 = arith.constant 0 : i32
    %c0_i32_3 = arith.constant 0 : i32
    return %arg0, %0, %c0_i32_0, %c0_i32_1, %c0_i32_2 : i32, i32, i32, i32, i32
  }
  func.func @transform_1(%arg0: i32, %arg1: i32) -> (i32, i32, i32, i32, i32) {
    %c1_i32 = arith.constant 1 : i32
    %0 = arith.addi %arg1, %c1_i32 : i32
    %c0_i32 = arith.constant 0 : i32
    %c0_i32_0 = arith.constant 0 : i32
    %c0_i32_1 = arith.constant 0 : i32
    %c0_i32_2 = arith.constant 0 : i32
    return %arg0, %0, %c0_i32, %c0_i32_0, %c0_i32_1 : i32, i32, i32, i32, i32
  }
  func.func @transform_2(%arg0: i32, %arg1: i32) -> (i32, i32, i32, i32, i32) {
    %c2_i32 = arith.constant 2 : i32
    %0 = arith.addi %arg1, %c2_i32 : i32
    %c0_i32 = arith.constant 0 : i32
    %c0_i32_0 = arith.constant 0 : i32
    %c0_i32_1 = arith.constant 0 : i32
    %c0_i32_2 = arith.constant 0 : i32
    return %arg0, %0, %c0_i32, %c0_i32_0, %c0_i32_1 : i32, i32, i32, i32, i32
  }
  func.func @transform_3(%arg0: i32, %arg1: i32) -> (i32, i32) {
    %c0_i32 = arith.constant 0 : i32
    %c0_i32_0 = arith.constant 0 : i32
    %c0_i32_1 = arith.constant 0 : i32
    return %c0_i32, %c0_i32_0 : i32, i32
  }
  func.func @transform_4(%arg0: i32, %arg1: i32) -> (i32, i32) {
    %c0_i32 = arith.constant 0 : i32
    %c0_i32_0 = arith.constant 0 : i32
    %c0_i32_1 = arith.constant 0 : i32
    return %c0_i32, %c0_i32_0 : i32, i32
  }
  func.func @transform_5(%arg0: i32, %arg1: i32) -> (i32, i32) {
    %c0_i32 = arith.constant 0 : i32
    %c0_i32_0 = arith.constant 0 : i32
    %c0_i32_1 = arith.constant 0 : i32
    return %c0_i32, %c0_i32_0 : i32, i32
  }
  func.func @transform_6(%arg0: i32, %arg1: i32) -> (i32, i32, i32, i32, i32) {
    %c0_i32 = arith.constant 0 : i32
    %c0_i32_0 = arith.constant 0 : i32
    %c0_i32_1 = arith.constant 0 : i32
    %c0_i32_2 = arith.constant 0 : i32
    return %arg0, %arg1, %c0_i32, %c0_i32_0, %c0_i32_1 : i32, i32, i32, i32, i32
  }
}

</mosaic_0001>

<llo_original>
// kernel: down_forward.2
$region0: #{down_forward.2}
  #allocation0 [shape = 'u32[]', space=smem, size = 0x4, offset = 0x4, fixed_abs, tag = 'smem constant byte address 0x4 - core index']
  #allocation1 [shape = 'u32[144,128]{1,0:T(1,128)}', space=vmem, size = 0x12000, scoped, tag = 'internal scratch']
  %s0 = inlined_call_operand.vmem [shape: bf16[2,6,10,10,4], index: 0, kind: input, shape index: {}, may-alias: {0,1,2}]
  %s1 = inlined_call_operand.vmem [shape: bf16[2,6,10,10,4], index: 1, kind: input, shape index: {}, may-alias: {0,1,2}]
  %s2 = inlined_call_operand.vmem [shape: bf16[2,6,10,10,4], index: 2, kind: input, shape index: {}, may-alias: {0,1,2}]
  %s3 = inlined_call_operand.vmem [shape: bf16[108,8], index: 3, kind: input, shape index: {}]
  %s4 = inlined_call_operand.vmem [shape: f32[1,8], index: 4, kind: input, shape index: {}]
  %s5 = inlined_call_operand.vmem [shape: f32[1,8], index: 5, kind: input, shape index: {}]
  %s6 = inlined_call_operand.vmem [shape: bf16[2,4,8,8,8], index: 6, kind: output, shape index: {}]
  %s7 = sld [smem:[#allocation0]]
  $region57: #{down_forward.2} parent=0
    _
  %s9 = ssub.s32 1, %s7
  %s10 = scalar_select 0, %s9, %s7
  loop: start=0, step=1, limit=10
  $region2: #{down_forward.2} parent=0 // loop_pre_header
    _
  $region3: #{down_forward.2} parent=0 // loop_header
    %s12 = sphi 0, %s16
    %p13 = scmp.ge.s32.totalorder %s12, 10
    %s19 = sphi 0, %s31
    %s20 = sphi 0, %s27
    %s21 = sphi 0, %s19
    %s22 = sphi 0, %s20
    %s23 = sphi 0, %s21
    %s24 = sphi 0, %s22
    %s36 = sphi 0, %s38
    %s39 = sphi 0, %s36
    %s40 = sphi 0, %s39
    %s56 = sphi 0, %s40
    %s66 = sphi 0, %s68
    %s69 = sphi 0, %s66
    %s70 = sphi 0, %s69
    %s86 = sphi 0, %s70
    %s96 = sphi 0, %s98
    %s99 = sphi 0, %s96
    %s100 = sphi 0, %s99
    %s116 = sphi 0, %s100
    %s120 = sphi 0, %s120
    %s122 = sphi 0, %s120
    %s123 = sphi 0, %s122
    %s137 = sphi 0, %s123
    %s141 = sphi 0, %s141
    %s143 = sphi 0, %s141
    %s144 = sphi 0, %s143
    %s158 = sphi 0, %s144
    %s162 = sphi 0, %s162
    %s164 = sphi 0, %s162
    %s165 = sphi 0, %s164
    %s179 = sphi 0, %s165
    %s187 = sphi 0, %s189
    %s190 = sphi 0, %s187
    %s191 = sphi 0, %s190
    %s207 = sphi 0, %s191
  $region4: #{down_forward.2} parent=0 // loop_header_branch
    %15 = sbr.rel (%p13) target = $region8
  $region5: #{down_forward.2} parent=0 // loop_body
    %s17 = ssub.s32 %s12, 1
    %s18 = ssub.s32 %s12, 2
    %s25 = sadd.s32 1, %s20
    %p26 = scmp.ge.s32.totalorder %s25, 4
    %s27 = scalar_select %p26, 0, %s25
    %s28 = sadd.s32 1, %s19
    %s29 = scalar_select %p26, %s28, %s19
    %p30 = scmp.ge.s32.totalorder %s29, 2
    %s31 = scalar_select %p30, 0, %s29
    %s32 = ssub.s32 %s19, %s31
    %s33 = ssub.s32 %s20, %s27
    %s34 = sor.u32 %s32, %s33
    %p35 = scmp.eq.s32.totalorder %s34, 0
    %s37 = sadd.s32 %s36, 1
    %s38 = scalar_select %p35, %s36, %s37
    %p41 = pneg %p35
    %p42 = scmp.eq.s32.totalorder %s12, 7
    %p43 = por %p41, %p42
    %p44 = scmp.ne.s32.totalorder %s36, %s39
    %p45 = scmp.eq.s32.totalorder %s12, 0
    %p46 = por %p44, %p45
    %p47 = scmp.ne.s32.totalorder %s36, %s39
    %p48 = scmp.eq.s32.totalorder %s17, 7
    %p49 = por %p47, %p48
    %p50 = scmp.ne.s32.totalorder %s39, %s40
    %p51 = scmp.eq.s32.totalorder %s17, 0
    %p52 = por %p50, %p51
    %p53 = scmp.ne.s32.totalorder %s39, %s40
    %p54 = scmp.eq.s32.totalorder %s18, 7
    %p55 = por %p53, %p54
    %p57 = scmp.ne.s32.totalorder %s40, %s56
    %p58 = scmp.eq.s32.totalorder %s18, 0
    %p59 = por %p57, %p58
    %s60 = sadd.s32 %s20, 1
    %s61 = sadd.s32 %s27, 1
    %s62 = ssub.s32 %s19, %s31
    %s63 = ssub.s32 %s60, %s61
    %s64 = sor.u32 %s62, %s63
    %p65 = scmp.eq.s32.totalorder %s64, 0
    %s67 = sadd.s32 %s66, 1
    %s68 = scalar_select %p65, %s66, %s67
    %p71 = pneg %p65
    %p72 = scmp.eq.s32.totalorder %s12, 7
    %p73 = por %p71, %p72
    %p74 = scmp.ne.s32.totalorder %s66, %s69
    %p75 = scmp.eq.s32.totalorder %s12, 0
    %p76 = por %p74, %p75
    %p77 = scmp.ne.s32.totalorder %s66, %s69
    %p78 = scmp.eq.s32.totalorder %s17, 7
    %p79 = por %p77, %p78
    %p80 = scmp.ne.s32.totalorder %s69, %s70
    %p81 = scmp.eq.s32.totalorder %s17, 0
    %p82 = por %p80, %p81
    %p83 = scmp.ne.s32.totalorder %s69, %s70
    %p84 = scmp.eq.s32.totalorder %s18, 7
    %p85 = por %p83, %p84
    %p87 = scmp.ne.s32.totalorder %s70, %s86
    %p88 = scmp.eq.s32.totalorder %s18, 0
    %p89 = por %p87, %p88
    %s90 = sadd.s32 %s20, 2
    %s91 = sadd.s32 %s27, 2
    %s92 = ssub.s32 %s19, %s31
    %s93 = ssub.s32 %s90, %s91
    %s94 = sor.u32 %s92, %s93
    %p95 = scmp.eq.s32.totalorder %s94, 0
    %s97 = sadd.s32 %s96, 1
    %s98 = scalar_select %p95, %s96, %s97
    %p101 = pneg %p95
    %p102 = scmp.eq.s32.totalorder %s12, 7
    %p103 = por %p101, %p102
    %p104 = scmp.ne.s32.totalorder %s96, %s99
    %p105 = scmp.eq.s32.totalorder %s12, 0
    %p106 = por %p104, %p105
    %p107 = scmp.ne.s32.totalorder %s96, %s99
    %p108 = scmp.eq.s32.totalorder %s17, 7
    %p109 = por %p107, %p108
    %p110 = scmp.ne.s32.totalorder %s99, %s100
    %p111 = scmp.eq.s32.totalorder %s17, 0
    %p112 = por %p110, %p111
    %p113 = scmp.ne.s32.totalorder %s99, %s100
    %p114 = scmp.eq.s32.totalorder %s18, 7
    %p115 = por %p113, %p114
    %p117 = scmp.ne.s32.totalorder %s100, %s116
    %p118 = scmp.eq.s32.totalorder %s18, 0
    %p119 = por %p117, %p118
    %s121 = sadd.s32 %s120, 1
    %p124 = scmp.eq.s32.totalorder %s12, 7
    %p125 = scmp.ne.s32.totalorder %s120, %s122
    %p126 = scmp.eq.s32.totalorder %s12, 0
    %p127 = por %p125, %p126
    %p128 = scmp.ne.s32.totalorder %s120, %s122
    %p129 = scmp.eq.s32.totalorder %s17, 7
    %p130 = por %p128, %p129
    %p131 = scmp.ne.s32.totalorder %s122, %s123
    %p132 = scmp.eq.s32.totalorder %s17, 0
    %p133 = por %p131, %p132
    %p134 = scmp.ne.s32.totalorder %s122, %s123
    %p135 = scmp.eq.s32.totalorder %s18, 7
    %p136 = por %p134, %p135
    %p138 = scmp.ne.s32.totalorder %s123, %s137
    %p139 = scmp.eq.s32.totalorder %s18, 0
    %p140 = por %p138, %p139
    %s142 = sadd.s32 %s141, 1
    %p145 = scmp.eq.s32.totalorder %s12, 7
    %p146 = scmp.ne.s32.totalorder %s141, %s143
    %p147 = scmp.eq.s32.totalorder %s12, 0
    %p148 = por %p146, %p147
    %p149 = scmp.ne.s32.totalorder %s141, %s143
    %p150 = scmp.eq.s32.totalorder %s17, 7
    %p151 = por %p149, %p150
    %p152 = scmp.ne.s32.totalorder %s143, %s144
    %p153 = scmp.eq.s32.totalorder %s17, 0
    %p154 = por %p152, %p153
    %p155 = scmp.ne.s32.totalorder %s143, %s144
    %p156 = scmp.eq.s32.totalorder %s18, 7
    %p157 = por %p155, %p156
    %p159 = scmp.ne.s32.totalorder %s144, %s158
    %p160 = scmp.eq.s32.totalorder %s18, 0
    %p161 = por %p159, %p160
    %s163 = sadd.s32 %s162, 1
    %p166 = scmp.eq.s32.totalorder %s12, 7
    %p167 = scmp.ne.s32.totalorder %s162, %s164
    %p168 = scmp.eq.s32.totalorder %s12, 0
    %p169 = por %p167, %p168
    %p170 = scmp.ne.s32.totalorder %s162, %s164
    %p171 = scmp.eq.s32.totalorder %s17, 7
    %p172 = por %p170, %p171
    %p173 = scmp.ne.s32.totalorder %s164, %s165
    %p174 = scmp.eq.s32.totalorder %s17, 0
    %p175 = por %p173, %p174
    %p176 = scmp.ne.s32.totalorder %s164, %s165
    %p177 = scmp.eq.s32.totalorder %s18, 7
    %p178 = por %p176, %p177
    %p180 = scmp.ne.s32.totalorder %s165, %s179
    %p181 = scmp.eq.s32.totalorder %s18, 0
    %p182 = por %p180, %p181
    %s183 = ssub.s32 %s19, %s31
    %s184 = ssub.s32 %s20, %s27
    %s185 = sor.u32 %s183, %s184
    %p186 = scmp.eq.s32.totalorder %s185, 0
    %s188 = sadd.s32 %s187, 1
    %s189 = scalar_select %p186, %s187, %s188
    %p192 = pneg %p186
    %p193 = scmp.eq.s32.totalorder %s12, 7
    %p194 = por %p192, %p193
    %p195 = scmp.ne.s32.totalorder %s187, %s190
    %p196 = scmp.eq.s32.totalorder %s12, 0
    %p197 = por %p195, %p196
    %p198 = scmp.ne.s32.totalorder %s187, %s190
    %p199 = scmp.eq.s32.totalorder %s17, 7
    %p200 = por %p198, %p199
    %p201 = scmp.ne.s32.totalorder %s190, %s191
    %p202 = scmp.eq.s32.totalorder %s17, 0
    %p203 = por %p201, %p202
    %p204 = scmp.ne.s32.totalorder %s190, %s191
    %p205 = scmp.eq.s32.totalorder %s18, 7
    %p206 = por %p204, %p205
    %p208 = scmp.ne.s32.totalorder %s191, %s207
    %p209 = scmp.eq.s32.totalorder %s18, 0
    %p210 = por %p208, %p209
    %p211 = scmp.le.s32.totalorder 1, %s12
    %p212 = scmp.lt.s32.totalorder %s12, 9
    %p213 = pnand %p211, %p212
    %p214 = pneg %p213
    // Predicated region
    $region9: #{down_forward.2} parent=5 // pred_check
      _
    $region10: #{down_forward.2} parent=5 // pred_check_branch
      %216 = sbr.rel (%p213) target = $region12
    $region11: #{down_forward.2} parent=5 // pred_region
      %s217 = ssub.s32 %s12, 1
      // Predicated region
      $region13: #{down_forward.2} parent=11 // pred_check
        %p218 = pneg %p133
      $region14: #{down_forward.2} parent=11 // pred_check_branch
        %220 = sbr.rel (%p218) target = $region16
      $region15: #{down_forward.2} parent=11 // pred_region
        _
      $region16: #{down_forward.2} parent=11 // pred_fallthru
        _
      // Predicated region
      $region17: #{down_forward.2} parent=11 // pred_check
        %p221 = pneg %p154
      $region18: #{down_forward.2} parent=11 // pred_check_branch
        %223 = sbr.rel (%p221) target = $region20
      $region19: #{down_forward.2} parent=11 // pred_region
        _
      $region20: #{down_forward.2} parent=11 // pred_fallthru
        _
      // Predicated region
      $region21: #{down_forward.2} parent=11 // pred_check
        %p224 = pneg %p175
      $region22: #{down_forward.2} parent=11 // pred_check_branch
        %226 = sbr.rel (%p224) target = $region24
      $region23: #{down_forward.2} parent=11 // pred_region
        _
      $region24: #{down_forward.2} parent=11 // pred_fallthru
        _
    $region12: #{down_forward.2} parent=5 // pred_fallthru
      _
    %p227 = scmp.lt.s32.totalorder %s12, 8
    // Predicated region
    $region25: #{down_forward.2} parent=5 // pred_check
      %p228 = pneg %p227
    $region26: #{down_forward.2} parent=5 // pred_check_branch
      %230 = sbr.rel (%p228) target = $region28
    $region27: #{down_forward.2} parent=5 // pred_region
      // Predicated region
      $region29: #{down_forward.2} parent=27 // pred_check
        %p231 = pneg %p46
      $region30: #{down_forward.2} parent=27 // pred_check_branch
        %233 = sbr.rel (%p231) target = $region32
      $region31: #{down_forward.2} parent=27 // pred_region
        %p234 = scmp.lt.s32.totalorder %s19, 1
        %s235 = scalar_select %p234, %s19, 1
        %p236 = scmp.lt.s32.totalorder %s20, 5
        %s237 = scalar_select %p236, %s20, 5
        %s238 = smul.addr %s237, 20
        %s239 = smul.addr %s235, 120
        %s240 = sadd.s32 %s238, %s239
        %s241 = smul.addr %s240, 4
        %s242 = scalar_lea.vmem %s0, %s241
      $region32: #{down_forward.2} parent=27 // pred_fallthru
        _
      // Predicated region
      $region33: #{down_forward.2} parent=27 // pred_check
        %p243 = pneg %p76
      $region34: #{down_forward.2} parent=27 // pred_check_branch
        %245 = sbr.rel (%p243) target = $region36
      $region35: #{down_forward.2} parent=27 // pred_region
        %s246 = sadd.s32 %s20, 1
        %p247 = scmp.lt.s32.totalorder %s19, 1
        %s248 = scalar_select %p247, %s19, 1
        %p249 = scmp.lt.s32.totalorder %s246, 5
        %s250 = scalar_select %p249, %s246, 5
        %s251 = smul.addr %s250, 20
        %s252 = smul.addr %s248, 120
        %s253 = sadd.s32 %s251, %s252
        %s254 = smul.addr %s253, 4
        %s255 = scalar_lea.vmem %s1, %s254
        %s256 = sadd.s32 %s20, 1
      $region36: #{down_forward.2} parent=27 // pred_fallthru
        _
      // Predicated region
      $region37: #{down_forward.2} parent=27 // pred_check
        %p257 = pneg %p106
      $region38: #{down_forward.2} parent=27 // pred_check_branch
        %259 = sbr.rel (%p257) target = $region40
      $region39: #{down_forward.2} parent=27 // pred_region
        %s260 = sadd.s32 %s20, 2
        %p261 = scmp.lt.s32.totalorder %s19, 1
        %s262 = scalar_select %p261, %s19, 1
        %p263 = scmp.lt.s32.totalorder %s260, 5
        %s264 = scalar_select %p263, %s260, 5
        %s265 = smul.addr %s264, 20
        %s266 = smul.addr %s262, 120
        %s267 = sadd.s32 %s265, %s266
        %s268 = smul.addr %s267, 4
        %s269 = scalar_lea.vmem %s2, %s268
        %s270 = sadd.s32 %s20, 2
      $region40: #{down_forward.2} parent=27 // pred_fallthru
        _
    $region28: #{down_forward.2} parent=5 // pred_fallthru
      _
    %p271 = scmp.le.s32.totalorder 1, %s12
    %p272 = scmp.lt.s32.totalorder %s12, 9
    %p273 = pnand %p271, %p272
    %p274 = pneg %p273
    // Predicated region
    $region41: #{down_forward.2} parent=5 // pred_check
      _
    $region42: #{down_forward.2} parent=5 // pred_check_branch
      %276 = sbr.rel (%p273) target = $region44
    $region43: #{down_forward.2} parent=5 // pred_region
      %s277 = ssub.s32 %s12, 1
      %p278 = scmp.lt.s32.totalorder %s21, 1
      %s279 = scalar_select %p278, %s21, 1
      %p280 = scmp.lt.s32.totalorder %s22, 5
      %s281 = scalar_select %p280, %s22, 5
      %s282 = smul.addr %s281, 20
      %s283 = smul.addr %s279, 120
      %s284 = sadd.s32 %s282, %s283
      %s285 = smul.addr %s284, 4
      %s286 = scalar_lea.vmem %s0, %s285
      %p287 = pneg %p52
      %p288 = pneg %p49
      %s289 = sadd.s32 %s22, 1
      %p290 = scmp.lt.s32.totalorder %s21, 1
      %s291 = scalar_select %p290, %s21, 1
      %p292 = scmp.lt.s32.totalorder %s289, 5
      %s293 = scalar_select %p292, %s289, 5
      %s294 = smul.addr %s293, 20
      %s295 = smul.addr %s291, 120
      %s296 = sadd.s32 %s294, %s295
      %s297 = smul.addr %s296, 4
      %s298 = scalar_lea.vmem %s1, %s297
      %p299 = pneg %p82
      %p300 = pneg %p79
      %s301 = sadd.s32 %s22, 2
      %p302 = scmp.lt.s32.totalorder %s21, 1
      %s303 = scalar_select %p302, %s21, 1
      %p304 = scmp.lt.s32.totalorder %s301, 5
      %s305 = scalar_select %p304, %s301, 5
      %s306 = smul.addr %s305, 20
      %s307 = smul.addr %s303, 120
      %s308 = sadd.s32 %s306, %s307
      %s309 = smul.addr %s308, 4
      %s310 = scalar_lea.vmem %s2, %s309
      %p311 = pneg %p112
      %p312 = pneg %p109
      %p313 = pneg %p133
      %p314 = pneg %p130
      %p315 = pneg %p154
      %p316 = pneg %p151
      %p317 = pneg %p175
      %p318 = pneg %p172
      %p319 = pneg %p203
      %p320 = pneg %p200
      %p321 = scmp.lt.s32.totalorder %s21, 1
      %s322 = scalar_select %p321, %s21, 1
      %p323 = scmp.lt.s32.totalorder %s22, 3
      %s324 = scalar_select %p323, %s22, 3
      %s325 = smul.addr %s324, 8
      %s326 = smul.addr %s322, 32
      %s327 = sadd.s32 %s325, %s326
      %s328 = smul.addr %s327, 4
      %s329 = scalar_lea.vmem %s6, %s328
      %p330 = scmp.lt.s32.totalorder %s21, 1
      %s331 = scalar_select %p330, %s21, 1
      %p332 = scmp.lt.s32.totalorder %s22, 5
      %s333 = scalar_select %p332, %s22, 5
      %s334 = smul.addr %s333, 20
      %s335 = smul.addr %s331, 120
      %s336 = sadd.s32 %s334, %s335
      %s337 = smul.addr %s336, 4
      %s338 = scalar_lea.vmem %s0, %s337
      %s339 = sadd.s32 %s22, 1
      %p340 = scmp.lt.s32.totalorder %s21, 1
      %s341 = scalar_select %p340, %s21, 1
      %p342 = scmp.lt.s32.totalorder %s339, 5
      %s343 = scalar_select %p342, %s339, 5
      %s344 = smul.addr %s343, 20
      %s345 = smul.addr %s341, 120
      %s346 = sadd.s32 %s344, %s345
      %s347 = smul.addr %s346, 4
      %s348 = scalar_lea.vmem %s1, %s347
      %s349 = sadd.s32 %s22, 1
      %s350 = sadd.s32 %s22, 2
      %p351 = scmp.lt.s32.totalorder %s21, 1
      %s352 = scalar_select %p351, %s21, 1
      %p353 = scmp.lt.s32.totalorder %s350, 5
      %s354 = scalar_select %p353, %s350, 5
      %s355 = smul.addr %s354, 20
      %s356 = smul.addr %s352, 120
      %s357 = sadd.s32 %s355, %s356
      %s358 = smul.addr %s357, 4
      %s359 = scalar_lea.vmem %s2, %s358
      %s360 = sadd.s32 %s22, 2
      %p361 = scmp.lt.s32.totalorder %s21, 1
      %s362 = scalar_select %p361, %s21, 1
      %p363 = scmp.lt.s32.totalorder %s22, 3
      %s364 = scalar_select %p363, %s22, 3
      %s365 = smul.addr %s364, 8
      %s366 = smul.addr %s362, 32
      %s367 = sadd.s32 %s365, %s366
      %s368 = smul.addr %s367, 4
      %s369 = scalar_lea.vmem %s6, %s368
      %v371 = vld [vmem:[%s338] sm:$0xf]
      %v372 = vld [vmem:[%s338 + $0x4] sm:$0x1]
      %v373 = vld [vmem:[%s338 + $0x8] sm:$0xf]
      %v374 = vld [vmem:[%s338 + $0xc] sm:$0x1]
      %v375 = vld [vmem:[%s338 + $0x10] sm:$0xf]
      %v376 = vld [vmem:[%s338 + $0x14] sm:$0x1]
      %v377 = vld [vmem:[%s338 + $0x18] sm:$0xf]
      %v378 = vld [vmem:[%s338 + $0x1c] sm:$0x1]
      %v379 = vld [vmem:[%s338 + $0x20] sm:$0xf]
      %v380 = vld [vmem:[%s338 + $0x24] sm:$0x1]
      %v381 = vld [vmem:[%s338 + $0x28] sm:$0xf]
      %v382 = vld [vmem:[%s338 + $0x2c] sm:$0x1]
      %v383 = vld [vmem:[%s338 + $0x30] sm:$0xf]
      %v384 = vld [vmem:[%s338 + $0x34] sm:$0x1]
      %v385 = vld [vmem:[%s338 + $0x38] sm:$0xf]
      %v386 = vld [vmem:[%s338 + $0x3c] sm:$0x1]
      %v387 = vld [vmem:[%s338 + $0x40] sm:$0xf]
      %v388 = vld [vmem:[%s338 + $0x44] sm:$0x1]
      %v389 = vld [vmem:[%s338 + $0x48] sm:$0xf]
      %v390 = vld [vmem:[%s338 + $0x4c] sm:$0x1]
      %v391 = vld [vmem:[%s348] sm:$0xf]
      %v392 = vld [vmem:[%s348 + $0x4] sm:$0x1]
      %v393 = vld [vmem:[%s348 + $0x8] sm:$0xf]
      %v394 = vld [vmem:[%s348 + $0xc] sm:$0x1]
      %v395 = vld [vmem:[%s348 + $0x10] sm:$0xf]
      %v396 = vld [vmem:[%s348 + $0x14] sm:$0x1]
      %v397 = vld [vmem:[%s348 + $0x18] sm:$0xf]
      %v398 = vld [vmem:[%s348 + $0x1c] sm:$0x1]
      %v399 = vld [vmem:[%s348 + $0x20] sm:$0xf]
      %v400 = vld [vmem:[%s348 + $0x24] sm:$0x1]
      %v401 = vld [vmem:[%s348 + $0x28] sm:$0xf]
      %v402 = vld [vmem:[%s348 + $0x2c] sm:$0x1]
      %v403 = vld [vmem:[%s348 + $0x30] sm:$0xf]
      %v404 = vld [vmem:[%s348 + $0x34] sm:$0x1]
      %v405 = vld [vmem:[%s348 + $0x38] sm:$0xf]
      %v406 = vld [vmem:[%s348 + $0x3c] sm:$0x1]
      %v407 = vld [vmem:[%s348 + $0x40] sm:$0xf]
      %v408 = vld [vmem:[%s348 + $0x44] sm:$0x1]
      %v409 = vld [vmem:[%s348 + $0x48] sm:$0xf]
      %v410 = vld [vmem:[%s348 + $0x4c] sm:$0x1]
      %v411 = vld [vmem:[%s359] sm:$0xf]
      %v412 = vld [vmem:[%s359 + $0x4] sm:$0x1]
      %v413 = vld [vmem:[%s359 + $0x8] sm:$0xf]
      %v414 = vld [vmem:[%s359 + $0xc] sm:$0x1]
      %v415 = vld [vmem:[%s359 + $0x10] sm:$0xf]
      %v416 = vld [vmem:[%s359 + $0x14] sm:$0x1]
      %v417 = vld [vmem:[%s359 + $0x18] sm:$0xf]
      %v418 = vld [vmem:[%s359 + $0x1c] sm:$0x1]
      %v419 = vld [vmem:[%s359 + $0x20] sm:$0xf]
      %v420 = vld [vmem:[%s359 + $0x24] sm:$0x1]
      %v421 = vld [vmem:[%s359 + $0x28] sm:$0xf]
      %v422 = vld [vmem:[%s359 + $0x2c] sm:$0x1]
      %v423 = vld [vmem:[%s359 + $0x30] sm:$0xf]
      %v424 = vld [vmem:[%s359 + $0x34] sm:$0x1]
      %v425 = vld [vmem:[%s359 + $0x38] sm:$0xf]
      %v426 = vld [vmem:[%s359 + $0x3c] sm:$0x1]
      %v427 = vld [vmem:[%s359 + $0x40] sm:$0xf]
      %v428 = vld [vmem:[%s359 + $0x44] sm:$0x1]
      %v429 = vld [vmem:[%s359 + $0x48] sm:$0xf]
      %v430 = vld [vmem:[%s359 + $0x4c] sm:$0x1]
      %v447 = vunpack.c.l.b16 %v371
      %v448 = vunpack.c.l.b16 %v372
      %v449 = vunpack.c.l.b16 %v373
      %v450 = vunpack.c.l.b16 %v374
      %v451 = vunpack.c.l.b16 %v375
      %v452 = vunpack.c.l.b16 %v376
      %v453 = vunpack.c.l.b16 %v377
      %v454 = vunpack.c.l.b16 %v378
      %v455 = vunpack.c.l.b16 %v379
      %v456 = vunpack.c.l.b16 %v380
      %v457 = vunpack.c.l.b16 %v381
      %v458 = vunpack.c.l.b16 %v382
      %v459 = vunpack.c.l.b16 %v383
      %v460 = vunpack.c.l.b16 %v384
      %v461 = vunpack.c.l.b16 %v385
      %v462 = vunpack.c.l.b16 %v386
      %v463 = vpack.c.b16 %v448, %v447
      %v464 = vpack.c.b16 %v450, %v449
      %v465 = vpack.c.b16 %v452, %v451
      %v466 = vpack.c.b16 %v454, %v453
      %v467 = vpack.c.b16 %v456, %v455
      %v468 = vpack.c.b16 %v458, %v457
      %v469 = vpack.c.b16 %v460, %v459
      %v470 = vpack.c.b16 %v462, %v461
      %v472 = vshrl.u32 %v463, 16
      %v474 = vshll.u32 %v463, 16
      %v476 = vrot.slane %v474, 1
      %v477 = vor.u32 %v472, %v476
      %v479 = vshrl.u32 %v464, 16
      %v481 = vshll.u32 %v464, 16
      %v483 = vrot.slane %v481, 1
      %v484 = vor.u32 %v479, %v483
      %v486 = vshrl.u32 %v465, 16
      %v488 = vshll.u32 %v465, 16
      %v490 = vrot.slane %v488, 1
      %v491 = vor.u32 %v486, %v490
      %v493 = vshrl.u32 %v466, 16
      %v495 = vshll.u32 %v466, 16
      %v497 = vrot.slane %v495, 1
      %v498 = vor.u32 %v493, %v497
      %v500 = vshrl.u32 %v467, 16
      %v502 = vshll.u32 %v467, 16
      %v504 = vrot.slane %v502, 1
      %v505 = vor.u32 %v500, %v504
      %v507 = vshrl.u32 %v468, 16
      %v509 = vshll.u32 %v468, 16
      %v511 = vrot.slane %v509, 1
      %v512 = vor.u32 %v507, %v511
      %v514 = vshrl.u32 %v469, 16
      %v516 = vshll.u32 %v469, 16
      %v518 = vrot.slane %v516, 1
      %v519 = vor.u32 %v514, %v518
      %v521 = vshrl.u32 %v470, 16
      %v523 = vshll.u32 %v470, 16
      %v525 = vrot.slane %v523, 1
      %v526 = vor.u32 %v521, %v525
      %527 = vrot.lane.b32.xlu0 %v477, 4
      %v528 = vpop.permute.xlu0 %527
      %529 = vrot.lane.b32.xlu0 %v484, 4
      %v530 = vpop.permute.xlu0 %529
      %531 = vrot.lane.b32.xlu0 %v491, 4
      %v532 = vpop.permute.xlu0 %531
      %533 = vrot.lane.b32.xlu0 %v498, 4
      %v534 = vpop.permute.xlu0 %533
      %535 = vrot.lane.b32.xlu0 %v505, 4
      %v536 = vpop.permute.xlu0 %535
      %537 = vrot.lane.b32.xlu0 %v512, 4
      %v538 = vpop.permute.xlu0 %537
      %539 = vrot.lane.b32.xlu0 %v519, 4
      %v540 = vpop.permute.xlu0 %539
      %541 = vrot.lane.b32.xlu0 %v526, 4
      %v542 = vpop.permute.xlu0 %541
      %v543 = vrot.slane %v463, 1
      %v544 = vrot.slane %v464, 1
      %v545 = vrot.slane %v465, 1
      %v546 = vrot.slane %v466, 1
      %v547 = vrot.slane %v467, 1
      %v548 = vrot.slane %v468, 1
      %v549 = vrot.slane %v469, 1
      %v550 = vrot.slane %v470, 1
      %551 = vrot.lane.b32.xlu0 %v543, 8
      %v552 = vpop.permute.xlu0 %551
      %553 = vrot.lane.b32.xlu0 %v544, 8
      %v554 = vpop.permute.xlu0 %553
      %555 = vrot.lane.b32.xlu0 %v545, 8
      %v556 = vpop.permute.xlu0 %555
      %557 = vrot.lane.b32.xlu0 %v546, 8
      %v558 = vpop.permute.xlu0 %557
      %559 = vrot.lane.b32.xlu0 %v547, 8
      %v560 = vpop.permute.xlu0 %559
      %561 = vrot.lane.b32.xlu0 %v548, 8
      %v562 = vpop.permute.xlu0 %561
      %563 = vrot.lane.b32.xlu0 %v549, 8
      %v564 = vpop.permute.xlu0 %563
      %565 = vrot.lane.b32.xlu0 %v550, 8
      %v566 = vpop.permute.xlu0 %565
      %v568 = vunpack.c.l.b16 %v387
      %v569 = vpack.c.b16 %v449, %v449
      %v570 = vpack.c.b16 %v451, %v451
      %v571 = vpack.c.b16 %v453, %v453
      %v572 = vpack.c.b16 %v455, %v455
      %v573 = vpack.c.b16 %v457, %v457
      %v574 = vpack.c.b16 %v459, %v459
      %v575 = vpack.c.b16 %v461, %v461
      %v576 = vpack.c.b16 %v568, %v568
      %577 = vrot.lane.b32.xlu0 %v569, 12
      %v578 = vpop.permute.xlu0 %577
      %579 = vrot.lane.b32.xlu0 %v570, 12
      %v580 = vpop.permute.xlu0 %579
      %581 = vrot.lane.b32.xlu0 %v571, 12
      %v582 = vpop.permute.xlu0 %581
      %583 = vrot.lane.b32.xlu0 %v572, 12
      %v584 = vpop.permute.xlu0 %583
      %585 = vrot.lane.b32.xlu0 %v573, 12
      %v586 = vpop.permute.xlu0 %585
      %587 = vrot.lane.b32.xlu0 %v574, 12
      %v588 = vpop.permute.xlu0 %587
      %589 = vrot.lane.b32.xlu0 %v575, 12
      %v590 = vpop.permute.xlu0 %589
      %591 = vrot.lane.b32.xlu0 %v576, 12
      %v592 = vpop.permute.xlu0 %591
      %v594 = vunpack.c.l.b16 %v388
      %v595 = vpack.c.b16 %v594, %v568
      %v597 = vshrl.u32 %v595, 16
      %v599 = vshll.u32 %v595, 16
      %v601 = vrot.slane %v599, 1
      %v602 = vor.u32 %v597, %v601
      %603 = vrot.lane.b32.xlu0 %v484, 16
      %v604 = vpop.permute.xlu0 %603
      %605 = vrot.lane.b32.xlu0 %v491, 16
      %v606 = vpop.permute.xlu0 %605
      %607 = vrot.lane.b32.xlu0 %v498, 16
      %v608 = vpop.permute.xlu0 %607
      %609 = vrot.lane.b32.xlu0 %v505, 16
      %v610 = vpop.permute.xlu0 %609
      %611 = vrot.lane.b32.xlu0 %v512, 16
      %v612 = vpop.permute.xlu0 %611
      %613 = vrot.lane.b32.xlu0 %v519, 16
      %v614 = vpop.permute.xlu0 %613
      %615 = vrot.lane.b32.xlu0 %v526, 16
      %v616 = vpop.permute.xlu0 %615
      %617 = vrot.lane.b32.xlu0 %v602, 16
      %v618 = vpop.permute.xlu0 %617
      %v619 = vrot.slane %v595, 1
      %620 = vrot.lane.b32.xlu0 %v544, 20
      %v621 = vpop.permute.xlu0 %620
      %622 = vrot.lane.b32.xlu0 %v545, 20
      %v623 = vpop.permute.xlu0 %622
      %624 = vrot.lane.b32.xlu0 %v546, 20
      %v625 = vpop.permute.xlu0 %624
      %626 = vrot.lane.b32.xlu0 %v547, 20
      %v627 = vpop.permute.xlu0 %626
      %628 = vrot.lane.b32.xlu0 %v548, 20
      %v629 = vpop.permute.xlu0 %628
      %630 = vrot.lane.b32.xlu0 %v549, 20
      %v631 = vpop.permute.xlu0 %630
      %632 = vrot.lane.b32.xlu0 %v550, 20
      %v633 = vpop.permute.xlu0 %632
      %634 = vrot.lane.b32.xlu0 %v619, 20
      %v635 = vpop.permute.xlu0 %634
      %v637 = vunpack.c.l.b16 %v389
      %v638 = vpack.c.b16 %v637, %v637
      %639 = vrot.lane.b32.xlu0 %v570, 24
      %v640 = vpop.permute.xlu0 %639
      %641 = vrot.lane.b32.xlu0 %v571, 24
      %v642 = vpop.permute.xlu0 %641
      %643 = vrot.lane.b32.xlu0 %v572, 24
      %v644 = vpop.permute.xlu0 %643
      %645 = vrot.lane.b32.xlu0 %v573, 24
      %v646 = vpop.permute.xlu0 %645
      %647 = vrot.lane.b32.xlu0 %v574, 24
      %v648 = vpop.permute.xlu0 %647
      %649 = vrot.lane.b32.xlu0 %v575, 24
      %v650 = vpop.permute.xlu0 %649
      %651 = vrot.lane.b32.xlu0 %v576, 24
      %v652 = vpop.permute.xlu0 %651
      %653 = vrot.lane.b32.xlu0 %v638, 24
      %v654 = vpop.permute.xlu0 %653
      %v656 = vunpack.c.l.b16 %v390
      %v657 = vpack.c.b16 %v656, %v637
      %v659 = vshrl.u32 %v657, 16
      %v661 = vshll.u32 %v657, 16
      %v663 = vrot.slane %v661, 1
      %v664 = vor.u32 %v659, %v663
      %665 = vrot.lane.b32.xlu0 %v491, 28
      %v666 = vpop.permute.xlu0 %665
      %667 = vrot.lane.b32.xlu0 %v498, 28
      %v668 = vpop.permute.xlu0 %667
      %669 = vrot.lane.b32.xlu0 %v505, 28
      %v670 = vpop.permute.xlu0 %669
      %671 = vrot.lane.b32.xlu0 %v512, 28
      %v672 = vpop.permute.xlu0 %671
      %673 = vrot.lane.b32.xlu0 %v519, 28
      %v674 = vpop.permute.xlu0 %673
      %675 = vrot.lane.b32.xlu0 %v526, 28
      %v676 = vpop.permute.xlu0 %675
      %677 = vrot.lane.b32.xlu0 %v602, 28
      %v678 = vpop.permute.xlu0 %677
      %679 = vrot.lane.b32.xlu0 %v664, 28
      %v680 = vpop.permute.xlu0 %679
      %v681 = vrot.slane %v657, 1
      %682 = vrot.lane.b32.xlu0 %v545, 32
      %v683 = vpop.permute.xlu0 %682
      %684 = vrot.lane.b32.xlu0 %v546, 32
      %v685 = vpop.permute.xlu0 %684
      %686 = vrot.lane.b32.xlu0 %v547, 32
      %v687 = vpop.permute.xlu0 %686
      %688 = vrot.lane.b32.xlu0 %v548, 32
      %v689 = vpop.permute.xlu0 %688
      %690 = vrot.lane.b32.xlu0 %v549, 32
      %v691 = vpop.permute.xlu0 %690
      %692 = vrot.lane.b32.xlu0 %v550, 32
      %v693 = vpop.permute.xlu0 %692
      %694 = vrot.lane.b32.xlu0 %v619, 32
      %v695 = vpop.permute.xlu0 %694
      %696 = vrot.lane.b32.xlu0 %v681, 32
      %v697 = vpop.permute.xlu0 %696
      %v706 = vunpack.c.l.b16 %v391
      %v707 = vunpack.c.l.b16 %v393
      %v708 = vunpack.c.l.b16 %v395
      %v709 = vunpack.c.l.b16 %v397
      %v710 = vunpack.c.l.b16 %v399
      %v711 = vunpack.c.l.b16 %v401
      %v712 = vunpack.c.l.b16 %v403
      %v713 = vunpack.c.l.b16 %v405
      %v714 = vpack.c.b16 %v706, %v706
      %v715 = vpack.c.b16 %v707, %v707
      %v716 = vpack.c.b16 %v708, %v708
      %v717 = vpack.c.b16 %v709, %v709
      %v718 = vpack.c.b16 %v710, %v710
      %v719 = vpack.c.b16 %v711, %v711
      %v720 = vpack.c.b16 %v712, %v712
      %v721 = vpack.c.b16 %v713, %v713
      %722 = vrot.lane.b32.xlu0 %v714, 36
      %v723 = vpop.permute.xlu0 %722
      %724 = vrot.lane.b32.xlu0 %v715, 36
      %v725 = vpop.permute.xlu0 %724
      %726 = vrot.lane.b32.xlu0 %v716, 36
      %v727 = vpop.permute.xlu0 %726
      %728 = vrot.lane.b32.xlu0 %v717, 36
      %v729 = vpop.permute.xlu0 %728
      %730 = vrot.lane.b32.xlu0 %v718, 36
      %v731 = vpop.permute.xlu0 %730
      %732 = vrot.lane.b32.xlu0 %v719, 36
      %v733 = vpop.permute.xlu0 %732
      %734 = vrot.lane.b32.xlu0 %v720, 36
      %v735 = vpop.permute.xlu0 %734
      %736 = vrot.lane.b32.xlu0 %v721, 36
      %v737 = vpop.permute.xlu0 %736
      %v746 = vunpack.c.l.b16 %v392
      %v747 = vunpack.c.l.b16 %v394
      %v748 = vunpack.c.l.b16 %v396
      %v749 = vunpack.c.l.b16 %v398
      %v750 = vunpack.c.l.b16 %v400
      %v751 = vunpack.c.l.b16 %v402
      %v752 = vunpack.c.l.b16 %v404
      %v753 = vunpack.c.l.b16 %v406
      %v754 = vpack.c.b16 %v746, %v706
      %v755 = vpack.c.b16 %v747, %v707
      %v756 = vpack.c.b16 %v748, %v708
      %v757 = vpack.c.b16 %v749, %v709
      %v758 = vpack.c.b16 %v750, %v710
      %v759 = vpack.c.b16 %v751, %v711
      %v760 = vpack.c.b16 %v752, %v712
      %v761 = vpack.c.b16 %v753, %v713
      %v763 = vshrl.u32 %v754, 16
      %v765 = vshll.u32 %v754, 16
      %v767 = vrot.slane %v765, 1
      %v768 = vor.u32 %v763, %v767
      %v770 = vshrl.u32 %v755, 16
      %v772 = vshll.u32 %v755, 16
      %v774 = vrot.slane %v772, 1
      %v775 = vor.u32 %v770, %v774
      %v777 = vshrl.u32 %v756, 16
      %v779 = vshll.u32 %v756, 16
      %v781 = vrot.slane %v779, 1
      %v782 = vor.u32 %v777, %v781
      %v784 = vshrl.u32 %v757, 16
      %v786 = vshll.u32 %v757, 16
      %v788 = vrot.slane %v786, 1
      %v789 = vor.u32 %v784, %v788
      %v791 = vshrl.u32 %v758, 16
      %v793 = vshll.u32 %v758, 16
      %v795 = vrot.slane %v793, 1
      %v796 = vor.u32 %v791, %v795
      %v798 = vshrl.u32 %v759, 16
      %v800 = vshll.u32 %v759, 16
      %v802 = vrot.slane %v800, 1
      %v803 = vor.u32 %v798, %v802
      %v805 = vshrl.u32 %v760, 16
      %v807 = vshll.u32 %v760, 16
      %v809 = vrot.slane %v807, 1
      %v810 = vor.u32 %v805, %v809
      %v812 = vshrl.u32 %v761, 16
      %v814 = vshll.u32 %v761, 16
      %v816 = vrot.slane %v814, 1
      %v817 = vor.u32 %v812, %v816
      %818 = vrot.lane.b32.xlu0 %v768, 40
      %v819 = vpop.permute.xlu0 %818
      %820 = vrot.lane.b32.xlu0 %v775, 40
      %v821 = vpop.permute.xlu0 %820
      %822 = vrot.lane.b32.xlu0 %v782, 40
      %v823 = vpop.permute.xlu0 %822
      %824 = vrot.lane.b32.xlu0 %v789, 40
      %v825 = vpop.permute.xlu0 %824
      %826 = vrot.lane.b32.xlu0 %v796, 40
      %v827 = vpop.permute.xlu0 %826
      %828 = vrot.lane.b32.xlu0 %v803, 40
      %v829 = vpop.permute.xlu0 %828
      %830 = vrot.lane.b32.xlu0 %v810, 40
      %v831 = vpop.permute.xlu0 %830
      %832 = vrot.lane.b32.xlu0 %v817, 40
      %v833 = vpop.permute.xlu0 %832
      %v834 = vrot.slane %v754, 1
      %v835 = vrot.slane %v755, 1
      %v836 = vrot.slane %v756, 1
      %v837 = vrot.slane %v757, 1
      %v838 = vrot.slane %v758, 1
      %v839 = vrot.slane %v759, 1
      %v840 = vrot.slane %v760, 1
      %v841 = vrot.slane %v761, 1
      %842 = vrot.lane.b32.xlu0 %v834, 44
      %v843 = vpop.permute.xlu0 %842
      %844 = vrot.lane.b32.xlu0 %v835, 44
      %v845 = vpop.permute.xlu0 %844
      %846 = vrot.lane.b32.xlu0 %v836, 44
      %v847 = vpop.permute.xlu0 %846
      %848 = vrot.lane.b32.xlu0 %v837, 44
      %v849 = vpop.permute.xlu0 %848
      %850 = vrot.lane.b32.xlu0 %v838, 44
      %v851 = vpop.permute.xlu0 %850
      %852 = vrot.lane.b32.xlu0 %v839, 44
      %v853 = vpop.permute.xlu0 %852
      %854 = vrot.lane.b32.xlu0 %v840, 44
      %v855 = vpop.permute.xlu0 %854
      %856 = vrot.lane.b32.xlu0 %v841, 44
      %v857 = vpop.permute.xlu0 %856
      %v859 = vunpack.c.l.b16 %v407
      %v860 = vpack.c.b16 %v859, %v859
      %861 = vrot.lane.b32.xlu0 %v715, 48
      %v862 = vpop.permute.xlu0 %861
      %863 = vrot.lane.b32.xlu0 %v716, 48
      %v864 = vpop.permute.xlu0 %863
      %865 = vrot.lane.b32.xlu0 %v717, 48
      %v866 = vpop.permute.xlu0 %865
      %867 = vrot.lane.b32.xlu0 %v718, 48
      %v868 = vpop.permute.xlu0 %867
      %869 = vrot.lane.b32.xlu0 %v719, 48
      %v870 = vpop.permute.xlu0 %869
      %871 = vrot.lane.b32.xlu0 %v720, 48
      %v872 = vpop.permute.xlu0 %871
      %873 = vrot.lane.b32.xlu0 %v721, 48
      %v874 = vpop.permute.xlu0 %873
      %875 = vrot.lane.b32.xlu0 %v860, 48
      %v876 = vpop.permute.xlu0 %875
      %v878 = vunpack.c.l.b16 %v408
      %v879 = vpack.c.b16 %v878, %v859
      %v881 = vshrl.u32 %v879, 16
      %v883 = vshll.u32 %v879, 16
      %v885 = vrot.slane %v883, 1
      %v886 = vor.u32 %v881, %v885
      %887 = vrot.lane.b32.xlu0 %v775, 52
      %v888 = vpop.permute.xlu0 %887
      %889 = vrot.lane.b32.xlu0 %v782, 52
      %v890 = vpop.permute.xlu0 %889
      %891 = vrot.lane.b32.xlu0 %v789, 52
      %v892 = vpop.permute.xlu0 %891
      %893 = vrot.lane.b32.xlu0 %v796, 52
      %v894 = vpop.permute.xlu0 %893
      %895 = vrot.lane.b32.xlu0 %v803, 52
      %v896 = vpop.permute.xlu0 %895
      %897 = vrot.lane.b32.xlu0 %v810, 52
      %v898 = vpop.permute.xlu0 %897
      %899 = vrot.lane.b32.xlu0 %v817, 52
      %v900 = vpop.permute.xlu0 %899
      %901 = vrot.lane.b32.xlu0 %v886, 52
      %v902 = vpop.permute.xlu0 %901
      %v903 = vrot.slane %v879, 1
      %904 = vrot.lane.b32.xlu0 %v835, 56
      %v905 = vpop.permute.xlu0 %904
      %906 = vrot.lane.b32.xlu0 %v836, 56
      %v907 = vpop.permute.xlu0 %906
      %908 = vrot.lane.b32.xlu0 %v837, 56
      %v909 = vpop.permute.xlu0 %908
      %910 = vrot.lane.b32.xlu0 %v838, 56
      %v911 = vpop.permute.xlu0 %910
      %912 = vrot.lane.b32.xlu0 %v839, 56
      %v913 = vpop.permute.xlu0 %912
      %914 = vrot.lane.b32.xlu0 %v840, 56
      %v915 = vpop.permute.xlu0 %914
      %916 = vrot.lane.b32.xlu0 %v841, 56
      %v917 = vpop.permute.xlu0 %916
      %918 = vrot.lane.b32.xlu0 %v903, 56
      %v919 = vpop.permute.xlu0 %918
      %v921 = vunpack.c.l.b16 %v409
      %v922 = vpack.c.b16 %v921, %v921
      %923 = vrot.lane.b32.xlu0 %v716, 60
      %v924 = vpop.permute.xlu0 %923
      %925 = vrot.lane.b32.xlu0 %v717, 60
      %v926 = vpop.permute.xlu0 %925
      %927 = vrot.lane.b32.xlu0 %v718, 60
      %v928 = vpop.permute.xlu0 %927
      %929 = vrot.lane.b32.xlu0 %v719, 60
      %v930 = vpop.permute.xlu0 %929
      %931 = vrot.lane.b32.xlu0 %v720, 60
      %v932 = vpop.permute.xlu0 %931
      %933 = vrot.lane.b32.xlu0 %v721, 60
      %v934 = vpop.permute.xlu0 %933
      %935 = vrot.lane.b32.xlu0 %v860, 60
      %v936 = vpop.permute.xlu0 %935
      %937 = vrot.lane.b32.xlu0 %v922, 60
      %v938 = vpop.permute.xlu0 %937
      %vm939 = vcmask 31744
      %v942 = vsel %vm939, %v371, %v528
      %v945 = vsel %vm939, %v373, %v530
      %v948 = vsel %vm939, %v375, %v532
      %v951 = vsel %vm939, %v377, %v534
      %v954 = vsel %vm939, %v379, %v536
      %v957 = vsel %vm939, %v381, %v538
      %v960 = vsel %vm939, %v383, %v540
      %v963 = vsel %vm939, %v385, %v542
      %vm964 = vcmask 64512
      %v966 = vsel %vm964, %v942, %v552
      %v968 = vsel %vm964, %v945, %v554
      %v970 = vsel %vm964, %v948, %v556
      %v972 = vsel %vm964, %v951, %v558
      %v974 = vsel %vm964, %v954, %v560
      %v976 = vsel %vm964, %v957, %v562
      %v978 = vsel %vm964, %v960, %v564
      %v980 = vsel %vm964, %v963, %v566
      %vm981 = vcmask 97280
      %v983 = vsel %vm981, %v966, %v578
      %v985 = vsel %vm981, %v968, %v580
      %v987 = vsel %vm981, %v970, %v582
      %v989 = vsel %vm981, %v972, %v584
      %v991 = vsel %vm981, %v974, %v586
      %v993 = vsel %vm981, %v976, %v588
      %v995 = vsel %vm981, %v978, %v590
      %v997 = vsel %vm981, %v980, %v592
      %vm998 = vcmask 130048
      %v1000 = vsel %vm998, %v983, %v604
      %v1002 = vsel %vm998, %v985, %v606
      %v1004 = vsel %vm998, %v987, %v608
      %v1006 = vsel %vm998, %v989, %v610
      %v1008 = vsel %vm998, %v991, %v612
      %v1010 = vsel %vm998, %v993, %v614
      %v1012 = vsel %vm998, %v995, %v616
      %v1014 = vsel %vm998, %v997, %v618
      %vm1015 = vcmask 162816
      %v1017 = vsel %vm1015, %v1000, %v621
      %v1019 = vsel %vm1015, %v1002, %v623
      %v1021 = vsel %vm1015, %v1004, %v625
      %v1023 = vsel %vm1015, %v1006, %v627
      %v1025 = vsel %vm1015, %v1008, %v629
      %v1027 = vsel %vm1015, %v1010, %v631
      %v1029 = vsel %vm1015, %v1012, %v633
      %v1031 = vsel %vm1015, %v1014, %v635
      %vm1032 = vcmask 195584
      %v1034 = vsel %vm1032, %v1017, %v640
      %v1036 = vsel %vm1032, %v1019, %v642
      %v1038 = vsel %vm1032, %v1021, %v644
      %v1040 = vsel %vm1032, %v1023, %v646
      %v1042 = vsel %vm1032, %v1025, %v648
      %v1044 = vsel %vm1032, %v1027, %v650
      %v1046 = vsel %vm1032, %v1029, %v652
      %v1048 = vsel %vm1032, %v1031, %v654
      %vm1049 = vcmask 228352
      %v1051 = vsel %vm1049, %v1034, %v666
      %v1053 = vsel %vm1049, %v1036, %v668
      %v1055 = vsel %vm1049, %v1038, %v670
      %v1057 = vsel %vm1049, %v1040, %v672
      %v1059 = vsel %vm1049, %v1042, %v674
      %v1061 = vsel %vm1049, %v1044, %v676
      %v1063 = vsel %vm1049, %v1046, %v678
      %v1065 = vsel %vm1049, %v1048, %v680
      %vm1066 = vcmask 261120
      %v1068 = vsel %vm1066, %v1051, %v683
      %v1070 = vsel %vm1066, %v1053, %v685
      %v1072 = vsel %vm1066, %v1055, %v687
      %v1074 = vsel %vm1066, %v1057, %v689
      %v1076 = vsel %vm1066, %v1059, %v691
      %v1078 = vsel %vm1066, %v1061, %v693
      %v1080 = vsel %vm1066, %v1063, %v695
      %v1082 = vsel %vm1066, %v1065, %v697
      %vm1083 = vcmask 293888
      %v1085 = vsel %vm1083, %v1068, %v723
      %v1087 = vsel %vm1083, %v1070, %v725
      %v1089 = vsel %vm1083, %v1072, %v727
      %v1091 = vsel %vm1083, %v1074, %v729
      %v1093 = vsel %vm1083, %v1076, %v731
      %v1095 = vsel %vm1083, %v1078, %v733
      %v1097 = vsel %vm1083, %v1080, %v735
      %v1099 = vsel %vm1083, %v1082, %v737
      %vm1100 = vcmask 326656
      %v1102 = vsel %vm1100, %v1085, %v819
      %v1104 = vsel %vm1100, %v1087, %v821
      %v1106 = vsel %vm1100, %v1089, %v823
      %v1108 = vsel %vm1100, %v1091, %v825
      %v1110 = vsel %vm1100, %v1093, %v827
      %v1112 = vsel %vm1100, %v1095, %v829
      %v1114 = vsel %vm1100, %v1097, %v831
      %v1116 = vsel %vm1100, %v1099, %v833
      %vm1117 = vcmask 359424
      %v1119 = vsel %vm1117, %v1102, %v843
      %v1121 = vsel %vm1117, %v1104, %v845
      %v1123 = vsel %vm1117, %v1106, %v847
      %v1125 = vsel %vm1117, %v1108, %v849
      %v1127 = vsel %vm1117, %v1110, %v851
      %v1129 = vsel %vm1117, %v1112, %v853
      %v1131 = vsel %vm1117, %v1114, %v855
      %v1133 = vsel %vm1117, %v1116, %v857
      %vm1134 = vcmask 392192
      %v1136 = vsel %vm1134, %v1119, %v862
      %v1138 = vsel %vm1134, %v1121, %v864
      %v1140 = vsel %vm1134, %v1123, %v866
      %v1142 = vsel %vm1134, %v1125, %v868
      %v1144 = vsel %vm1134, %v1127, %v870
      %v1146 = vsel %vm1134, %v1129, %v872
      %v1148 = vsel %vm1134, %v1131, %v874
      %v1150 = vsel %vm1134, %v1133, %v876
      %vm1151 = vcmask 424960
      %v1153 = vsel %vm1151, %v1136, %v888
      %v1155 = vsel %vm1151, %v1138, %v890
      %v1157 = vsel %vm1151, %v1140, %v892
      %v1159 = vsel %vm1151, %v1142, %v894
      %v1161 = vsel %vm1151, %v1144, %v896
      %v1163 = vsel %vm1151, %v1146, %v898
      %v1165 = vsel %vm1151, %v1148, %v900
      %v1167 = vsel %vm1151, %v1150, %v902
      %vm1168 = vcmask 457728
      %v1170 = vsel %vm1168, %v1153, %v905
      %v1172 = vsel %vm1168, %v1155, %v907
      %v1174 = vsel %vm1168, %v1157, %v909
      %v1176 = vsel %vm1168, %v1159, %v911
      %v1178 = vsel %vm1168, %v1161, %v913
      %v1180 = vsel %vm1168, %v1163, %v915
      %v1182 = vsel %vm1168, %v1165, %v917
      %v1184 = vsel %vm1168, %v1167, %v919
      %vm1185 = vcmask 490496
      %v1187 = vsel %vm1185, %v1170, %v924
      %v1189 = vsel %vm1185, %v1172, %v926
      %v1191 = vsel %vm1185, %v1174, %v928
      %v1193 = vsel %vm1185, %v1176, %v930
      %v1195 = vsel %vm1185, %v1178, %v932
      %v1197 = vsel %vm1185, %v1180, %v934
      %v1199 = vsel %vm1185, %v1182, %v936
      %v1201 = vsel %vm1185, %v1184, %v938
      %v1203 = vunpack.c.l.b16 %v410
      %v1204 = vpack.c.b16 %v1203, %v921
      %v1206 = vshrl.u32 %v1204, 16
      %v1208 = vshll.u32 %v1204, 16
      %v1210 = vrot.slane %v1208, 1
      %v1211 = vor.u32 %v1206, %v1210
      %1212 = vrot.lane.b32.xlu0 %v782, 4
      %v1213 = vpop.permute.xlu0 %1212
      %1214 = vrot.lane.b32.xlu0 %v789, 4
      %v1215 = vpop.permute.xlu0 %1214
      %1216 = vrot.lane.b32.xlu0 %v796, 4
      %v1217 = vpop.permute.xlu0 %1216
      %1218 = vrot.lane.b32.xlu0 %v803, 4
      %v1219 = vpop.permute.xlu0 %1218
      %1220 = vrot.lane.b32.xlu0 %v810, 4
      %v1221 = vpop.permute.xlu0 %1220
      %1222 = vrot.lane.b32.xlu0 %v817, 4
      %v1223 = vpop.permute.xlu0 %1222
      %1224 = vrot.lane.b32.xlu0 %v886, 4
      %v1225 = vpop.permute.xlu0 %1224
      %1226 = vrot.lane.b32.xlu0 %v1211, 4
      %v1227 = vpop.permute.xlu0 %1226
      %v1236 = vunpack.c.l.b16 %v411
      %v1237 = vunpack.c.l.b16 %v413
      %v1238 = vunpack.c.l.b16 %v415
      %v1239 = vunpack.c.l.b16 %v417
      %v1240 = vunpack.c.l.b16 %v419
      %v1241 = vunpack.c.l.b16 %v421
      %v1242 = vunpack.c.l.b16 %v423
      %v1243 = vunpack.c.l.b16 %v425
      %v1244 = vpack.c.b16 %v1236, %v1236
      %v1245 = vpack.c.b16 %v1237, %v1237
      %v1246 = vpack.c.b16 %v1238, %v1238
      %v1247 = vpack.c.b16 %v1239, %v1239
      %v1248 = vpack.c.b16 %v1240, %v1240
      %v1249 = vpack.c.b16 %v1241, %v1241
      %v1250 = vpack.c.b16 %v1242, %v1242
      %v1251 = vpack.c.b16 %v1243, %v1243
      %v1253 = vshrl.u32 %v1244, 16
      %v1255 = vrot.slane %v1253, 7
      %v1256 = vshll.u32 %v1244, 16
      %v1258 = vor.u32 %v1255, %v1256
      %v1260 = vshrl.u32 %v1245, 16
      %v1262 = vrot.slane %v1260, 7
      %v1263 = vshll.u32 %v1245, 16
      %v1265 = vor.u32 %v1262, %v1263
      %v1267 = vshrl.u32 %v1246, 16
      %v1269 = vrot.slane %v1267, 7
      %v1270 = vshll.u32 %v1246, 16
      %v1272 = vor.u32 %v1269, %v1270
      %v1274 = vshrl.u32 %v1247, 16
      %v1276 = vrot.slane %v1274, 7
      %v1277 = vshll.u32 %v1247, 16
      %v1279 = vor.u32 %v1276, %v1277
      %v1281 = vshrl.u32 %v1248, 16
      %v1283 = vrot.slane %v1281, 7
      %v1284 = vshll.u32 %v1248, 16
      %v1286 = vor.u32 %v1283, %v1284
      %v1288 = vshrl.u32 %v1249, 16
      %v1290 = vrot.slane %v1288, 7
      %v1291 = vshll.u32 %v1249, 16
      %v1293 = vor.u32 %v1290, %v1291
      %v1295 = vshrl.u32 %v1250, 16
      %v1297 = vrot.slane %v1295, 7
      %v1298 = vshll.u32 %v1250, 16
      %v1300 = vor.u32 %v1297, %v1298
      %v1302 = vshrl.u32 %v1251, 16
      %v1304 = vrot.slane %v1302, 7
      %v1305 = vshll.u32 %v1251, 16
      %v1307 = vor.u32 %v1304, %v1305
      %1308 = vrot.lane.b32.xlu0 %v1258, 8
      %v1309 = vpop.permute.xlu0 %1308
      %1310 = vrot.lane.b32.xlu0 %v1265, 8
      %v1311 = vpop.permute.xlu0 %1310
      %1312 = vrot.lane.b32.xlu0 %v1272, 8
      %v1313 = vpop.permute.xlu0 %1312
      %1314 = vrot.lane.b32.xlu0 %v1279, 8
      %v1315 = vpop.permute.xlu0 %1314
      %1316 = vrot.lane.b32.xlu0 %v1286, 8
      %v1317 = vpop.permute.xlu0 %1316
      %1318 = vrot.lane.b32.xlu0 %v1293, 8
      %v1319 = vpop.permute.xlu0 %1318
      %1320 = vrot.lane.b32.xlu0 %v1300, 8
      %v1321 = vpop.permute.xlu0 %1320
      %1322 = vrot.lane.b32.xlu0 %v1307, 8
      %v1323 = vpop.permute.xlu0 %1322
      %v1332 = vunpack.c.l.b16 %v412
      %v1333 = vunpack.c.l.b16 %v414
      %v1334 = vunpack.c.l.b16 %v416
      %v1335 = vunpack.c.l.b16 %v418
      %v1336 = vunpack.c.l.b16 %v420
      %v1337 = vunpack.c.l.b16 %v422
      %v1338 = vunpack.c.l.b16 %v424
      %v1339 = vunpack.c.l.b16 %v426
      %v1340 = vpack.c.b16 %v1332, %v1236
      %v1341 = vpack.c.b16 %v1333, %v1237
      %v1342 = vpack.c.b16 %v1334, %v1238
      %v1343 = vpack.c.b16 %v1335, %v1239
      %v1344 = vpack.c.b16 %v1336, %v1240
      %v1345 = vpack.c.b16 %v1337, %v1241
      %v1346 = vpack.c.b16 %v1338, %v1242
      %v1347 = vpack.c.b16 %v1339, %v1243
      %1348 = vrot.lane.b32.xlu0 %v1340, 12
      %v1349 = vpop.permute.xlu0 %1348
      %1350 = vrot.lane.b32.xlu0 %v1341, 12
      %v1351 = vpop.permute.xlu0 %1350
      %1352 = vrot.lane.b32.xlu0 %v1342, 12
      %v1353 = vpop.permute.xlu0 %1352
      %1354 = vrot.lane.b32.xlu0 %v1343, 12
      %v1355 = vpop.permute.xlu0 %1354
      %1356 = vrot.lane.b32.xlu0 %v1344, 12
      %v1357 = vpop.permute.xlu0 %1356
      %1358 = vrot.lane.b32.xlu0 %v1345, 12
      %v1359 = vpop.permute.xlu0 %1358
      %1360 = vrot.lane.b32.xlu0 %v1346, 12
      %v1361 = vpop.permute.xlu0 %1360
      %1362 = vrot.lane.b32.xlu0 %v1347, 12
      %v1363 = vpop.permute.xlu0 %1362
      %v1365 = vshrl.u32 %v1340, 16
      %v1367 = vshll.u32 %v1340, 16
      %v1369 = vrot.slane %v1367, 1
      %v1370 = vor.u32 %v1365, %v1369
      %v1372 = vshrl.u32 %v1341, 16
      %v1374 = vshll.u32 %v1341, 16
      %v1376 = vrot.slane %v1374, 1
      %v1377 = vor.u32 %v1372, %v1376
      %v1379 = vshrl.u32 %v1342, 16
      %v1381 = vshll.u32 %v1342, 16
      %v1383 = vrot.slane %v1381, 1
      %v1384 = vor.u32 %v1379, %v1383
      %v1386 = vshrl.u32 %v1343, 16
      %v1388 = vshll.u32 %v1343, 16
      %v1390 = vrot.slane %v1388, 1
      %v1391 = vor.u32 %v1386, %v1390
      %v1393 = vshrl.u32 %v1344, 16
      %v1395 = vshll.u32 %v1344, 16
      %v1397 = vrot.slane %v1395, 1
      %v1398 = vor.u32 %v1393, %v1397
      %v1400 = vshrl.u32 %v1345, 16
      %v1402 = vshll.u32 %v1345, 16
      %v1404 = vrot.slane %v1402, 1
      %v1405 = vor.u32 %v1400, %v1404
      %v1407 = vshrl.u32 %v1346, 16
      %v1409 = vshll.u32 %v1346, 16
      %v1411 = vrot.slane %v1409, 1
      %v1412 = vor.u32 %v1407, %v1411
      %v1414 = vshrl.u32 %v1347, 16
      %v1416 = vshll.u32 %v1347, 16
      %v1418 = vrot.slane %v1416, 1
      %v1419 = vor.u32 %v1414, %v1418
      %1420 = vrot.lane.b32.xlu0 %v1370, 16
      %v1421 = vpop.permute.xlu0 %1420
      %1422 = vrot.lane.b32.xlu0 %v1377, 16
      %v1423 = vpop.permute.xlu0 %1422
      %1424 = vrot.lane.b32.xlu0 %v1384, 16
      %v1425 = vpop.permute.xlu0 %1424
      %1426 = vrot.lane.b32.xlu0 %v1391, 16
      %v1427 = vpop.permute.xlu0 %1426
      %1428 = vrot.lane.b32.xlu0 %v1398, 16
      %v1429 = vpop.permute.xlu0 %1428
      %1430 = vrot.lane.b32.xlu0 %v1405, 16
      %v1431 = vpop.permute.xlu0 %1430
      %1432 = vrot.lane.b32.xlu0 %v1412, 16
      %v1433 = vpop.permute.xlu0 %1432
      %1434 = vrot.lane.b32.xlu0 %v1419, 16
      %v1435 = vpop.permute.xlu0 %1434
      %v1437 = vunpack.c.l.b16 %v427
      %v1438 = vpack.c.b16 %v1437, %v1437
      %v1440 = vshrl.u32 %v1438, 16
      %v1442 = vrot.slane %v1440, 7
      %v1443 = vshll.u32 %v1438, 16
      %v1445 = vor.u32 %v1442, %v1443
      %1446 = vrot.lane.b32.xlu0 %v1265, 20
      %v1447 = vpop.permute.xlu0 %1446
      %1448 = vrot.lane.b32.xlu0 %v1272, 20
      %v1449 = vpop.permute.xlu0 %1448
      %1450 = vrot.lane.b32.xlu0 %v1279, 20
      %v1451 = vpop.permute.xlu0 %1450
      %1452 = vrot.lane.b32.xlu0 %v1286, 20
      %v1453 = vpop.permute.xlu0 %1452
      %1454 = vrot.lane.b32.xlu0 %v1293, 20
      %v1455 = vpop.permute.xlu0 %1454
      %1456 = vrot.lane.b32.xlu0 %v1300, 20
      %v1457 = vpop.permute.xlu0 %1456
      %1458 = vrot.lane.b32.xlu0 %v1307, 20
      %v1459 = vpop.permute.xlu0 %1458
      %1460 = vrot.lane.b32.xlu0 %v1445, 20
      %v1461 = vpop.permute.xlu0 %1460
      %v1463 = vunpack.c.l.b16 %v428
      %v1464 = vpack.c.b16 %v1463, %v1437
      %1465 = vrot.lane.b32.xlu0 %v1341, 24
      %v1466 = vpop.permute.xlu0 %1465
      %1467 = vrot.lane.b32.xlu0 %v1342, 24
      %v1468 = vpop.permute.xlu0 %1467
      %1469 = vrot.lane.b32.xlu0 %v1343, 24
      %v1470 = vpop.permute.xlu0 %1469
      %1471 = vrot.lane.b32.xlu0 %v1344, 24
      %v1472 = vpop.permute.xlu0 %1471
      %1473 = vrot.lane.b32.xlu0 %v1345, 24
      %v1474 = vpop.permute.xlu0 %1473
      %1475 = vrot.lane.b32.xlu0 %v1346, 24
      %v1476 = vpop.permute.xlu0 %1475
      %1477 = vrot.lane.b32.xlu0 %v1347, 24
      %v1478 = vpop.permute.xlu0 %1477
      %1479 = vrot.lane.b32.xlu0 %v1464, 24
      %v1480 = vpop.permute.xlu0 %1479
      %v1482 = vshrl.u32 %v1464, 16
      %v1484 = vshll.u32 %v1464, 16
      %v1486 = vrot.slane %v1484, 1
      %v1487 = vor.u32 %v1482, %v1486
      %1488 = vrot.lane.b32.xlu0 %v1377, 28
      %v1489 = vpop.permute.xlu0 %1488
      %1490 = vrot.lane.b32.xlu0 %v1384, 28
      %v1491 = vpop.permute.xlu0 %1490
      %1492 = vrot.lane.b32.xlu0 %v1391, 28
      %v1493 = vpop.permute.xlu0 %1492
      %1494 = vrot.lane.b32.xlu0 %v1398, 28
      %v1495 = vpop.permute.xlu0 %1494
      %1496 = vrot.lane.b32.xlu0 %v1405, 28
      %v1497 = vpop.permute.xlu0 %1496
      %1498 = vrot.lane.b32.xlu0 %v1412, 28
      %v1499 = vpop.permute.xlu0 %1498
      %1500 = vrot.lane.b32.xlu0 %v1419, 28
      %v1501 = vpop.permute.xlu0 %1500
      %1502 = vrot.lane.b32.xlu0 %v1487, 28
      %v1503 = vpop.permute.xlu0 %1502
      %v1505 = vunpack.c.l.b16 %v429
      %v1506 = vpack.c.b16 %v1505, %v1505
      %v1508 = vshrl.u32 %v1506, 16
      %v1510 = vrot.slane %v1508, 7
      %v1511 = vshll.u32 %v1506, 16
      %v1513 = vor.u32 %v1510, %v1511
      %1514 = vrot.lane.b32.xlu0 %v1272, 32
      %v1515 = vpop.permute.xlu0 %1514
      %1516 = vrot.lane.b32.xlu0 %v1279, 32
      %v1517 = vpop.permute.xlu0 %1516
      %1518 = vrot.lane.b32.xlu0 %v1286, 32
      %v1519 = vpop.permute.xlu0 %1518
      %1520 = vrot.lane.b32.xlu0 %v1293, 32
      %v1521 = vpop.permute.xlu0 %1520
      %1522 = vrot.lane.b32.xlu0 %v1300, 32
      %v1523 = vpop.permute.xlu0 %1522
      %1524 = vrot.lane.b32.xlu0 %v1307, 32
      %v1525 = vpop.permute.xlu0 %1524
      %1526 = vrot.lane.b32.xlu0 %v1445, 32
      %v1527 = vpop.permute.xlu0 %1526
      %1528 = vrot.lane.b32.xlu0 %v1513, 32
      %v1529 = vpop.permute.xlu0 %1528
      %v1531 = vunpack.c.l.b16 %v430
      %v1532 = vpack.c.b16 %v1531, %v1505
      %1533 = vrot.lane.b32.xlu0 %v1342, 36
      %v1534 = vpop.permute.xlu0 %1533
      %1535 = vrot.lane.b32.xlu0 %v1343, 36
      %v1536 = vpop.permute.xlu0 %1535
      %1537 = vrot.lane.b32.xlu0 %v1344, 36
      %v1538 = vpop.permute.xlu0 %1537
      %1539 = vrot.lane.b32.xlu0 %v1345, 36
      %v1540 = vpop.permute.xlu0 %1539
      %1541 = vrot.lane.b32.xlu0 %v1346, 36
      %v1542 = vpop.permute.xlu0 %1541
      %1543 = vrot.lane.b32.xlu0 %v1347, 36
      %v1544 = vpop.permute.xlu0 %1543
      %1545 = vrot.lane.b32.xlu0 %v1464, 36
      %v1546 = vpop.permute.xlu0 %1545
      %1547 = vrot.lane.b32.xlu0 %v1532, 36
      %v1548 = vpop.permute.xlu0 %1547
      %v1550 = vshrl.u32 %v1532, 16
      %v1552 = vshll.u32 %v1532, 16
      %v1554 = vrot.slane %v1552, 1
      %v1555 = vor.u32 %v1550, %v1554
      %1556 = vrot.lane.b32.xlu0 %v1384, 40
      %v1557 = vpop.permute.xlu0 %1556
      %1558 = vrot.lane.b32.xlu0 %v1391, 40
      %v1559 = vpop.permute.xlu0 %1558
      %1560 = vrot.lane.b32.xlu0 %v1398, 40
      %v1561 = vpop.permute.xlu0 %1560
      %1562 = vrot.lane.b32.xlu0 %v1405, 40
      %v1563 = vpop.permute.xlu0 %1562
      %1564 = vrot.lane.b32.xlu0 %v1412, 40
      %v1565 = vpop.permute.xlu0 %1564
      %1566 = vrot.lane.b32.xlu0 %v1419, 40
      %v1567 = vpop.permute.xlu0 %1566
      %1568 = vrot.lane.b32.xlu0 %v1487, 40
      %v1569 = vpop.permute.xlu0 %1568
      %1570 = vrot.lane.b32.xlu0 %v1555, 40
      %v1571 = vpop.permute.xlu0 %1570
      %v1573 = vsel %vm939, %v756, %v1213
      %v1575 = vsel %vm939, %v757, %v1215
      %v1577 = vsel %vm939, %v758, %v1217
      %v1579 = vsel %vm939, %v759, %v1219
      %v1581 = vsel %vm939, %v760, %v1221
      %v1583 = vsel %vm939, %v761, %v1223
      %v1585 = vsel %vm939, %v879, %v1225
      %v1587 = vsel %vm939, %v1204, %v1227
      %v1589 = vsel %vm964, %v1573, %v1309
      %v1591 = vsel %vm964, %v1575, %v1311
      %v1593 = vsel %vm964, %v1577, %v1313
      %v1595 = vsel %vm964, %v1579, %v1315
      %v1597 = vsel %vm964, %v1581, %v1317
      %v1599 = vsel %vm964, %v1583, %v1319
      %v1601 = vsel %vm964, %v1585, %v1321
      %v1603 = vsel %vm964, %v1587, %v1323
      %v1605 = vsel %vm981, %v1589, %v1349
      %v1607 = vsel %vm981, %v1591, %v1351
      %v1609 = vsel %vm981, %v1593, %v1353
      %v1611 = vsel %vm981, %v1595, %v1355
      %v1613 = vsel %vm981, %v1597, %v1357
      %v1615 = vsel %vm981, %v1599, %v1359
      %v1617 = vsel %vm981, %v1601, %v1361
      %v1619 = vsel %vm981, %v1603, %v1363
      %v1621 = vsel %vm998, %v1605, %v1421
      %v1623 = vsel %vm998, %v1607, %v1423
      %v1625 = vsel %vm998, %v1609, %v1425
      %v1627 = vsel %vm998, %v1611, %v1427
      %v1629 = vsel %vm998, %v1613, %v1429
      %v1631 = vsel %vm998, %v1615, %v1431
      %v1633 = vsel %vm998, %v1617, %v1433
      %v1635 = vsel %vm998, %v1619, %v1435
      %v1637 = vsel %vm1015, %v1621, %v1447
      %v1639 = vsel %vm1015, %v1623, %v1449
      %v1641 = vsel %vm1015, %v1625, %v1451
      %v1643 = vsel %vm1015, %v1627, %v1453
      %v1645 = vsel %vm1015, %v1629, %v1455
      %v1647 = vsel %vm1015, %v1631, %v1457
      %v1649 = vsel %vm1015, %v1633, %v1459
      %v1651 = vsel %vm1015, %v1635, %v1461
      %v1653 = vsel %vm1032, %v1637, %v1466
      %v1655 = vsel %vm1032, %v1639, %v1468
      %v1657 = vsel %vm1032, %v1641, %v1470
      %v1659 = vsel %vm1032, %v1643, %v1472
      %v1661 = vsel %vm1032, %v1645, %v1474
      %v1663 = vsel %vm1032, %v1647, %v1476
      %v1665 = vsel %vm1032, %v1649, %v1478
      %v1667 = vsel %vm1032, %v1651, %v1480
      %v1669 = vsel %vm1049, %v1653, %v1489
      %v1671 = vsel %vm1049, %v1655, %v1491
      %v1673 = vsel %vm1049, %v1657, %v1493
      %v1675 = vsel %vm1049, %v1659, %v1495
      %v1677 = vsel %vm1049, %v1661, %v1497
      %v1679 = vsel %vm1049, %v1663, %v1499
      %v1681 = vsel %vm1049, %v1665, %v1501
      %v1683 = vsel %vm1049, %v1667, %v1503
      %v1685 = vsel %vm1066, %v1669, %v1515
      %v1687 = vsel %vm1066, %v1671, %v1517
      %v1689 = vsel %vm1066, %v1673, %v1519
      %v1691 = vsel %vm1066, %v1675, %v1521
      %v1693 = vsel %vm1066, %v1677, %v1523
      %v1695 = vsel %vm1066, %v1679, %v1525
      %v1697 = vsel %vm1066, %v1681, %v1527
      %v1699 = vsel %vm1066, %v1683, %v1529
      %v1701 = vsel %vm1083, %v1685, %v1534
      %v1703 = vsel %vm1083, %v1687, %v1536
      %v1705 = vsel %vm1083, %v1689, %v1538
      %v1707 = vsel %vm1083, %v1691, %v1540
      %v1709 = vsel %vm1083, %v1693, %v1542
      %v1711 = vsel %vm1083, %v1695, %v1544
      %v1713 = vsel %vm1083, %v1697, %v1546
      %v1715 = vsel %vm1083, %v1699, %v1548
      %v1717 = vsel %vm1100, %v1701, %v1557
      %v1719 = vsel %vm1100, %v1703, %v1559
      %v1721 = vsel %vm1100, %v1705, %v1561
      %v1723 = vsel %vm1100, %v1707, %v1563
      %v1725 = vsel %vm1100, %v1709, %v1565
      %v1727 = vsel %vm1100, %v1711, %v1567
      %v1729 = vsel %vm1100, %v1713, %v1569
      %v1731 = vsel %vm1100, %v1715, %v1571
      %v1732 = vshrl.u32 %v1717, 16
      %v1734 = vshll.u32 %v1717, 16
      %v1736 = vrot.slane %v1734, 1
      %v1737 = vor.u32 %v1732, %v1736
      %v1738 = vshrl.u32 %v1719, 16
      %v1740 = vshll.u32 %v1719, 16
      %v1742 = vrot.slane %v1740, 1
      %v1743 = vor.u32 %v1738, %v1742
      %v1744 = vshrl.u32 %v1721, 16
      %v1746 = vshll.u32 %v1721, 16
      %v1748 = vrot.slane %v1746, 1
      %v1749 = vor.u32 %v1744, %v1748
      %v1750 = vshrl.u32 %v1723, 16
      %v1752 = vshll.u32 %v1723, 16
      %v1754 = vrot.slane %v1752, 1
      %v1755 = vor.u32 %v1750, %v1754
      %v1756 = vshrl.u32 %v1725, 16
      %v1758 = vshll.u32 %v1725, 16
      %v1760 = vrot.slane %v1758, 1
      %v1761 = vor.u32 %v1756, %v1760
      %v1762 = vshrl.u32 %v1727, 16
      %v1764 = vshll.u32 %v1727, 16
      %v1766 = vrot.slane %v1764, 1
      %v1767 = vor.u32 %v1762, %v1766
      %v1768 = vshrl.u32 %v1729, 16
      %v1770 = vshll.u32 %v1729, 16
      %v1772 = vrot.slane %v1770, 1
      %v1773 = vor.u32 %v1768, %v1772
      %v1774 = vshrl.u32 %v1731, 16
      %v1776 = vshll.u32 %v1731, 16
      %v1778 = vrot.slane %v1776, 1
      %v1779 = vor.u32 %v1774, %v1778
      %1780 = vrot.lane.b32.xlu0 %v1737, 64
      %v1781 = vpop.permute.xlu0 %1780
      %1782 = vrot.lane.b32.xlu0 %v1743, 64
      %v1783 = vpop.permute.xlu0 %1782
      %1784 = vrot.lane.b32.xlu0 %v1749, 64
      %v1785 = vpop.permute.xlu0 %1784
      %1786 = vrot.lane.b32.xlu0 %v1755, 64
      %v1787 = vpop.permute.xlu0 %1786
      %1788 = vrot.lane.b32.xlu0 %v1761, 64
      %v1789 = vpop.permute.xlu0 %1788
      %1790 = vrot.lane.b32.xlu0 %v1767, 64
      %v1791 = vpop.permute.xlu0 %1790
      %1792 = vrot.lane.b32.xlu0 %v1773, 64
      %v1793 = vpop.permute.xlu0 %1792
      %1794 = vrot.lane.b32.xlu0 %v1779, 64
      %v1795 = vpop.permute.xlu0 %1794
      %vm1796 = vcmask 523264
      %v1798 = vsel %vm1796, %v1187, %v1781
      %v1800 = vsel %vm1796, %v1189, %v1783
      %v1802 = vsel %vm1796, %v1191, %v1785
      %v1804 = vsel %vm1796, %v1193, %v1787
      %v1806 = vsel %vm1796, %v1195, %v1789
      %v1808 = vsel %vm1796, %v1197, %v1791
      %v1810 = vsel %vm1796, %v1199, %v1793
      %v1812 = vsel %vm1796, %v1201, %v1795
      %v1813 = vld [vmem:[%s3] sm:$0xf]
      %v1814 = vld [vmem:[%s3 + $0x4] sm:$0xf]
      %v1815 = vld [vmem:[%s3 + $0x8] sm:$0xf]
      %v1816 = vld [vmem:[%s3 + $0xc] sm:$0xf]
      %v1817 = vld [vmem:[%s3 + $0x10] sm:$0xf]
      %v1818 = vld [vmem:[%s3 + $0x14] sm:$0xf]
      %v1819 = vld [vmem:[%s3 + $0x18] sm:$0xf]
      %v1820 = vld [vmem:[%s3 + $0x1c] sm:$0xf]
      %v1821 = vld [vmem:[%s3 + $0x20] sm:$0xf]
      %v1822 = vld [vmem:[%s3 + $0x24] sm:$0xf]
      %v1823 = vld [vmem:[%s3 + $0x28] sm:$0xf]
      %v1824 = vld [vmem:[%s3 + $0x2c] sm:$0xf]
      %v1825 = vld [vmem:[%s3 + $0x30] sm:$0xf]
      %v1826 = vld [vmem:[%s3 + $0x34] sm:$0x3]
      %v1835 = vunpack.c.l.b16 %v1798
      %v1836 = vunpack.c.l.b16 %v1800
      %v1837 = vunpack.c.l.b16 %v1802
      %v1838 = vunpack.c.l.b16 %v1804
      %v1839 = vunpack.c.l.b16 %v1806
      %v1840 = vunpack.c.l.b16 %v1808
      %v1841 = vunpack.c.l.b16 %v1810
      %v1842 = vunpack.c.l.b16 %v1812
      %v1843 = vpack.c.b16 %v1836, %v1835
      %v1844 = vpack.c.b16 %v1838, %v1837
      %v1845 = vpack.c.b16 %v1840, %v1839
      %v1846 = vpack.c.b16 %v1842, %v1841
      %v1861 = vunpack.c.l.b16 %v1813
      %v1862 = vunpack.c.l.b16 %v1814
      %v1863 = vunpack.c.l.b16 %v1815
      %v1864 = vunpack.c.l.b16 %v1816
      %v1865 = vunpack.c.l.b16 %v1817
      %v1866 = vunpack.c.l.b16 %v1818
      %v1867 = vunpack.c.l.b16 %v1819
      %v1868 = vunpack.c.l.b16 %v1820
      %v1869 = vunpack.c.l.b16 %v1821
      %v1870 = vunpack.c.l.b16 %v1822
      %v1871 = vunpack.c.l.b16 %v1823
      %v1872 = vunpack.c.l.b16 %v1824
      %v1873 = vunpack.c.l.b16 %v1825
      %v1874 = vunpack.c.l.b16 %v1826
      %v1875 = vpack.c.b16 %v1862, %v1861
      %v1876 = vpack.c.b16 %v1864, %v1863
      %v1877 = vpack.c.b16 %v1866, %v1865
      %v1878 = vpack.c.b16 %v1868, %v1867
      %v1879 = vpack.c.b16 %v1870, %v1869
      %v1880 = vpack.c.b16 %v1872, %v1871
      %v1881 = vpack.c.b16 %v1874, %v1873
      %vm1888 = vcmask 883712
      %v1890 = vsel %vm1888, %v1843, 0
      %v1893 = vsel %vm1888, %v1844, 0
      %v1896 = vsel %vm1888, %v1845, 0
      %v1899 = vsel %vm1888, %v1846, 0
      %vm1901 = vcmask 1045504
      %v1903 = vsel %vm1901, %v1881, 0
      %1905 = vmatprep.subr.bf16.mxu0 0
      %1906 = vmatpush1.bf16.msra.mxu0 %v1875
      %1907 = vmatprep.subr.bf16.mxu0 0
      %1908 = vmatpush1.bf16.msra.mxu0 %v1876
      %1909 = vmatprep.subr.bf16.mxu0 0
      %1910 = vmatpush1.bf16.msra.mxu0 %v1877
      %1911 = vmatprep.subr.bf16.mxu0 0
      %1912 = vmatpush1.bf16.msra.mxu0 %v1878
      %1913 = vmatprep.subr.bf16.mxu0 0
      %1914 = vmatpush1.bf16.msra.mxu0 %v1879
      %1915 = vmatprep.subr.bf16.mxu0 0
      %1916 = vmatpush1.bf16.msra.mxu0 %v1880
      %1917 = vmatprep.subr.bf16.mxu0 0
      %1918 = vmatpush1.bf16.msra.mxu0 %v1903
      %1919 = vmatprep.subr.bf16.mxu0 0
      %1920 = vmatpush1.bf16.msra.mxu0 0
      %1921 = vmatprep.subr.bf16.mxu0 0
      %1922 = vmatpush1.bf16.msra.mxu0 0
      %1923 = vmatprep.subr.bf16.mxu0 0
      %1924 = vmatpush1.bf16.msra.mxu0 0
      %1925 = vmatprep.subr.bf16.mxu0 0
      %1926 = vmatpush1.bf16.msra.mxu0 0
      %1927 = vmatprep.subr.bf16.mxu0 0
      %1928 = vmatpush1.bf16.msra.mxu0 0
      %1929 = vmatprep.subr.bf16.mxu0 0
      %1930 = vmatpush1.bf16.msra.mxu0 0
      %1931 = vmatprep.subr.bf16.mxu0 0
      %1932 = vmatpush1.bf16.msra.mxu0 0
      %1933 = vmatprep.subr.bf16.mxu0 0
      %1934 = vmatpush1.bf16.msra.mxu0 0
      %1935 = vmatprep.subr.bf16.mxu0 0
      %1936 = vmatpush1.bf16.msra.mxu0 0
      %1937 = vmatprep.mubr.bf16.mxu0 0
      %1938 = vmatmul.mubr.bf16.gmra.mrb[0].mxu0 %v1890
      %v1939 = vpop.f32.mrb[0].mxu0
      %v1940 = vadd.f32 0.0, %v1939
      %v1941 = vpop.f32.mrb[0].mxu0
      %v1942 = vpop.f32.mrb[0].mxu0
      %v1943 = vadd.f32 0.0, %v1942
      %v1944 = vpop.f32.mrb[0].mxu0
      %1945 = vmatprep.mubr.bf16.mxu0 0
      %1946 = vmatmul.mubr.bf16.gmra.mrb[0].mxu0 %v1893
      %v1947 = vpop.f32.mrb[0].mxu0
      %v1948 = vadd.f32 0.0, %v1947
      %v1949 = vpop.f32.mrb[0].mxu0
      %v1950 = vpop.f32.mrb[0].mxu0
      %v1951 = vadd.f32 0.0, %v1950
      %v1952 = vpop.f32.mrb[0].mxu0
      %1953 = vmatprep.mubr.bf16.mxu0 0
      %1954 = vmatmul.mubr.bf16.gmra.mrb[0].mxu0 %v1896
      %v1955 = vpop.f32.mrb[0].mxu0
      %v1956 = vadd.f32 0.0, %v1955
      %v1957 = vpop.f32.mrb[0].mxu0
      %v1958 = vpop.f32.mrb[0].mxu0
      %v1959 = vadd.f32 0.0, %v1958
      %v1960 = vpop.f32.mrb[0].mxu0
      %1961 = vmatprep.mubr.bf16.mxu0 0
      %1962 = vmatmul.mubr.bf16.gmra.mrb[0].mxu0 %v1899
      %v1963 = vpop.f32.mrb[0].mxu0
      %v1964 = vadd.f32 0.0, %v1963
      %v1965 = vpop.f32.mrb[0].mxu0
      %v1966 = vpop.f32.mrb[0].mxu0
      %v1967 = vadd.f32 0.0, %v1966
      %v1968 = vpop.f32.mrb[0].mxu0
      %1969 = vdwg.mxu0
      %v1970 = vld [vmem:[%s4] sm:$0x1]
      %v1972 = vlaneseq
      %v1973 = vshrl.u32 %v1972, 7
      %v1974 = vsub.s32 0, %v1973
      %v1975 = vrot.slane %v1970, %v1974
      %v1977 = vmul.f32 %v1940, %v1975
      %v1978 = vmul.f32 %v1943, %v1975
      %v1979 = vmul.f32 %v1948, %v1975
      %v1980 = vmul.f32 %v1951, %v1975
      %v1981 = vmul.f32 %v1956, %v1975
      %v1982 = vmul.f32 %v1959, %v1975
      %v1983 = vmul.f32 %v1964, %v1975
      %v1984 = vmul.f32 %v1967, %v1975
      %v1985 = vld [vmem:[%s5] sm:$0x1]
      %v1987 = vlaneseq
      %v1988 = vshrl.u32 %v1987, 7
      %v1989 = vsub.s32 0, %v1988
      %v1990 = vrot.slane %v1985, %v1989
      %v1992 = vadd.f32 %v1977, %v1990
      %v1993 = vadd.f32 %v1978, %v1990
      %v1994 = vadd.f32 %v1979, %v1990
      %v1995 = vadd.f32 %v1980, %v1990
      %v1996 = vadd.f32 %v1981, %v1990
      %v1997 = vadd.f32 %v1982, %v1990
      %v1998 = vadd.f32 %v1983, %v1990
      %v1999 = vadd.f32 %v1984, %v1990
      %v2000 = vmax.f32 %v1992, 0.0
      %v2001 = vmax.f32 %v1993, 0.0
      %v2002 = vmax.f32 %v1994, 0.0
      %v2003 = vmax.f32 %v1995, 0.0
      %v2004 = vmax.f32 %v1996, 0.0
      %v2005 = vmax.f32 %v1997, 0.0
      %v2006 = vmax.f32 %v1998, 0.0
      %v2007 = vmax.f32 %v1999, 0.0
      %v2008 = vpack.c.bf16 %v2000, %v2000
      %v2009 = vpack.c.bf16 %v2001, %v2001
      %v2010 = vpack.c.bf16 %v2002, %v2002
      %v2011 = vpack.c.bf16 %v2003, %v2003
      %v2012 = vpack.c.bf16 %v2004, %v2004
      %v2013 = vpack.c.bf16 %v2005, %v2005
      %v2014 = vpack.c.bf16 %v2006, %v2006
      %v2015 = vpack.c.bf16 %v2007, %v2007
      %vm2016 = vcmask 60416
      %2017 = vst.msk [vmem:[%s369] sm:$0xf] %vm2016, %v2008
      %2018 = vst.msk [vmem:[%s369 + $0x4] sm:$0xf] %vm2016, %v2009
      %2019 = vst.msk [vmem:[%s369 + $0x8] sm:$0xf] %vm2016, %v2010
      %2020 = vst.msk [vmem:[%s369 + $0xc] sm:$0xf] %vm2016, %v2011
      %2021 = vst.msk [vmem:[%s369 + $0x10] sm:$0xf] %vm2016, %v2012
      %2022 = vst.msk [vmem:[%s369 + $0x14] sm:$0xf] %vm2016, %v2013
      %2023 = vst.msk [vmem:[%s369 + $0x18] sm:$0xf] %vm2016, %v2014
      %2024 = vst.msk [vmem:[%s369 + $0x1c] sm:$0xf] %vm2016, %v2015
      %p2025 = scmp.lt.s32.totalorder %s21, 1
      %s2026 = scalar_select %p2025, %s21, 1
      %p2027 = scmp.lt.s32.totalorder %s22, 3
      %s2028 = scalar_select %p2027, %s22, 3
      %s2029 = smul.addr %s2028, 8
      %s2030 = smul.addr %s2026, 32
      %s2031 = sadd.s32 %s2029, %s2030
      %s2032 = smul.addr %s2031, 4
      %s2033 = scalar_lea.vmem %s6, %s2032
      // Predicated region
      $region45: #{down_forward.2} parent=43 // pred_check
        %p2034 = pneg %p200
      $region46: #{down_forward.2} parent=43 // pred_check_branch
        %2036 = sbr.rel (%p2034) target = $region48
      $region47: #{down_forward.2} parent=43 // pred_region
        _
      $region48: #{down_forward.2} parent=43 // pred_fallthru
        _
    $region44: #{down_forward.2} parent=5 // pred_fallthru
      _
    %p2037 = scmp.le.s32.totalorder 2, %s12
    // Predicated region
    $region49: #{down_forward.2} parent=5 // pred_check
      %p2038 = pneg %p2037
    $region50: #{down_forward.2} parent=5 // pred_check_branch
      %2040 = sbr.rel (%p2038) target = $region52
    $region51: #{down_forward.2} parent=5 // pred_region
      %s2041 = ssub.s32 %s12, 2
      // Predicated region
      $region53: #{down_forward.2} parent=51 // pred_check
        %p2042 = pneg %p206
      $region54: #{down_forward.2} parent=51 // pred_check_branch
        %2044 = sbr.rel (%p2042) target = $region56
      $region55: #{down_forward.2} parent=51 // pred_region
        %p2045 = scmp.lt.s32.totalorder %s23, 1
        %s2046 = scalar_select %p2045, %s23, 1
        %p2047 = scmp.lt.s32.totalorder %s24, 3
        %s2048 = scalar_select %p2047, %s24, 3
        %s2049 = smul.addr %s2048, 8
        %s2050 = smul.addr %s2046, 32
        %s2051 = sadd.s32 %s2049, %s2050
        %s2052 = smul.addr %s2051, 4
        %s2053 = scalar_lea.vmem %s6, %s2052
      $region56: #{down_forward.2} parent=51 // pred_fallthru
        _
    $region52: #{down_forward.2} parent=5 // pred_fallthru
      _
  $region6: #{down_forward.2} parent=0 // loop_footer
    %s16 = sadd.s32 1, %s12
  $region7: #{down_forward.2} parent=0 // loop_footer_branch
    %11 = sbr.rel target = $region3
  $region8: #{down_forward.2} parent=0 // loop_exit
    _

// kernel: down_forward.3
$region0: #{down_forward.3}
  #allocation0 [shape = 'u32[]', space=smem, size = 0x4, offset = 0x4, fixed_abs, tag = 'smem constant byte address 0x4 - core index']
  #allocation1 [shape = 'u32[144,128]{1,0:T(1,128)}', space=vmem, size = 0x12000, scoped, tag = 'internal scratch']
  %s0 = inlined_call_operand.vmem [shape: bf16[2,6,10,10,8], index: 0, kind: input, shape index: {}, may-alias: {0,1,2}]
  %s1 = inlined_call_operand.vmem [shape: bf16[2,6,10,10,8], index: 1, kind: input, shape index: {}, may-alias: {0,1,2}]
  %s2 = inlined_call_operand.vmem [shape: bf16[2,6,10,10,8], index: 2, kind: input, shape index: {}, may-alias: {0,1,2}]
  %s3 = inlined_call_operand.vmem [shape: bf16[216,8], index: 3, kind: input, shape index: {}]
  %s4 = inlined_call_operand.vmem [shape: f32[1,8], index: 4, kind: input, shape index: {}]
  %s5 = inlined_call_operand.vmem [shape: f32[1,8], index: 5, kind: input, shape index: {}]
  %s6 = inlined_call_operand.vmem [shape: f32[2,4,8,8,8], index: 6, kind: output, shape index: {}]
  %s7 = sld [smem:[#allocation0]]
  $region57: #{down_forward.3} parent=0
    _
  %s9 = ssub.s32 1, %s7
  %s10 = scalar_select 0, %s9, %s7
  loop: start=0, step=1, limit=10
  $region2: #{down_forward.3} parent=0 // loop_pre_header
    _
  $region3: #{down_forward.3} parent=0 // loop_header
    %s12 = sphi 0, %s16
    %p13 = scmp.ge.s32.totalorder %s12, 10
    %s19 = sphi 0, %s31
    %s20 = sphi 0, %s27
    %s21 = sphi 0, %s19
    %s22 = sphi 0, %s20
    %s23 = sphi 0, %s21
    %s24 = sphi 0, %s22
    %s36 = sphi 0, %s38
    %s39 = sphi 0, %s36
    %s40 = sphi 0, %s39
    %s56 = sphi 0, %s40
    %s66 = sphi 0, %s68
    %s69 = sphi 0, %s66
    %s70 = sphi 0, %s69
    %s86 = sphi 0, %s70
    %s96 = sphi 0, %s98
    %s99 = sphi 0, %s96
    %s100 = sphi 0, %s99
    %s116 = sphi 0, %s100
    %s120 = sphi 0, %s120
    %s122 = sphi 0, %s120
    %s123 = sphi 0, %s122
    %s137 = sphi 0, %s123
    %s141 = sphi 0, %s141
    %s143 = sphi 0, %s141
    %s144 = sphi 0, %s143
    %s158 = sphi 0, %s144
    %s162 = sphi 0, %s162
    %s164 = sphi 0, %s162
    %s165 = sphi 0, %s164
    %s179 = sphi 0, %s165
    %s187 = sphi 0, %s189
    %s190 = sphi 0, %s187
    %s191 = sphi 0, %s190
    %s207 = sphi 0, %s191
  $region4: #{down_forward.3} parent=0 // loop_header_branch
    %15 = sbr.rel (%p13) target = $region8
  $region5: #{down_forward.3} parent=0 // loop_body
    %s17 = ssub.s32 %s12, 1
    %s18 = ssub.s32 %s12, 2
    %s25 = sadd.s32 1, %s20
    %p26 = scmp.ge.s32.totalorder %s25, 4
    %s27 = scalar_select %p26, 0, %s25
    %s28 = sadd.s32 1, %s19
    %s29 = scalar_select %p26, %s28, %s19
    %p30 = scmp.ge.s32.totalorder %s29, 2
    %s31 = scalar_select %p30, 0, %s29
    %s32 = ssub.s32 %s19, %s31
    %s33 = ssub.s32 %s20, %s27
    %s34 = sor.u32 %s32, %s33
    %p35 = scmp.eq.s32.totalorder %s34, 0
    %s37 = sadd.s32 %s36, 1
    %s38 = scalar_select %p35, %s36, %s37
    %p41 = pneg %p35
    %p42 = scmp.eq.s32.totalorder %s12, 7
    %p43 = por %p41, %p42
    %p44 = scmp.ne.s32.totalorder %s36, %s39
    %p45 = scmp.eq.s32.totalorder %s12, 0
    %p46 = por %p44, %p45
    %p47 = scmp.ne.s32.totalorder %s36, %s39
    %p48 = scmp.eq.s32.totalorder %s17, 7
    %p49 = por %p47, %p48
    %p50 = scmp.ne.s32.totalorder %s39, %s40
    %p51 = scmp.eq.s32.totalorder %s17, 0
    %p52 = por %p50, %p51
    %p53 = scmp.ne.s32.totalorder %s39, %s40
    %p54 = scmp.eq.s32.totalorder %s18, 7
    %p55 = por %p53, %p54
    %p57 = scmp.ne.s32.totalorder %s40, %s56
    %p58 = scmp.eq.s32.totalorder %s18, 0
    %p59 = por %p57, %p58
    %s60 = sadd.s32 %s20, 1
    %s61 = sadd.s32 %s27, 1
    %s62 = ssub.s32 %s19, %s31
    %s63 = ssub.s32 %s60, %s61
    %s64 = sor.u32 %s62, %s63
    %p65 = scmp.eq.s32.totalorder %s64, 0
    %s67 = sadd.s32 %s66, 1
    %s68 = scalar_select %p65, %s66, %s67
    %p71 = pneg %p65
    %p72 = scmp.eq.s32.totalorder %s12, 7
    %p73 = por %p71, %p72
    %p74 = scmp.ne.s32.totalorder %s66, %s69
    %p75 = scmp.eq.s32.totalorder %s12, 0
    %p76 = por %p74, %p75
    %p77 = scmp.ne.s32.totalorder %s66, %s69
    %p78 = scmp.eq.s32.totalorder %s17, 7
    %p79 = por %p77, %p78
    %p80 = scmp.ne.s32.totalorder %s69, %s70
    %p81 = scmp.eq.s32.totalorder %s17, 0
    %p82 = por %p80, %p81
    %p83 = scmp.ne.s32.totalorder %s69, %s70
    %p84 = scmp.eq.s32.totalorder %s18, 7
    %p85 = por %p83, %p84
    %p87 = scmp.ne.s32.totalorder %s70, %s86
    %p88 = scmp.eq.s32.totalorder %s18, 0
    %p89 = por %p87, %p88
    %s90 = sadd.s32 %s20, 2
    %s91 = sadd.s32 %s27, 2
    %s92 = ssub.s32 %s19, %s31
    %s93 = ssub.s32 %s90, %s91
    %s94 = sor.u32 %s92, %s93
    %p95 = scmp.eq.s32.totalorder %s94, 0
    %s97 = sadd.s32 %s96, 1
    %s98 = scalar_select %p95, %s96, %s97
    %p101 = pneg %p95
    %p102 = scmp.eq.s32.totalorder %s12, 7
    %p103 = por %p101, %p102
    %p104 = scmp.ne.s32.totalorder %s96, %s99
    %p105 = scmp.eq.s32.totalorder %s12, 0
    %p106 = por %p104, %p105
    %p107 = scmp.ne.s32.totalorder %s96, %s99
    %p108 = scmp.eq.s32.totalorder %s17, 7
    %p109 = por %p107, %p108
    %p110 = scmp.ne.s32.totalorder %s99, %s100
    %p111 = scmp.eq.s32.totalorder %s17, 0
    %p112 = por %p110, %p111
    %p113 = scmp.ne.s32.totalorder %s99, %s100
    %p114 = scmp.eq.s32.totalorder %s18, 7
    %p115 = por %p113, %p114
    %p117 = scmp.ne.s32.totalorder %s100, %s116
    %p118 = scmp.eq.s32.totalorder %s18, 0
    %p119 = por %p117, %p118
    %s121 = sadd.s32 %s120, 1
    %p124 = scmp.eq.s32.totalorder %s12, 7
    %p125 = scmp.ne.s32.totalorder %s120, %s122
    %p126 = scmp.eq.s32.totalorder %s12, 0
    %p127 = por %p125, %p126
    %p128 = scmp.ne.s32.totalorder %s120, %s122
    %p129 = scmp.eq.s32.totalorder %s17, 7
    %p130 = por %p128, %p129
    %p131 = scmp.ne.s32.totalorder %s122, %s123
    %p132 = scmp.eq.s32.totalorder %s17, 0
    %p133 = por %p131, %p132
    %p134 = scmp.ne.s32.totalorder %s122, %s123
    %p135 = scmp.eq.s32.totalorder %s18, 7
    %p136 = por %p134, %p135
    %p138 = scmp.ne.s32.totalorder %s123, %s137
    %p139 = scmp.eq.s32.totalorder %s18, 0
    %p140 = por %p138, %p139
    %s142 = sadd.s32 %s141, 1
    %p145 = scmp.eq.s32.totalorder %s12, 7
    %p146 = scmp.ne.s32.totalorder %s141, %s143
    %p147 = scmp.eq.s32.totalorder %s12, 0
    %p148 = por %p146, %p147
    %p149 = scmp.ne.s32.totalorder %s141, %s143
    %p150 = scmp.eq.s32.totalorder %s17, 7
    %p151 = por %p149, %p150
    %p152 = scmp.ne.s32.totalorder %s143, %s144
    %p153 = scmp.eq.s32.totalorder %s17, 0
    %p154 = por %p152, %p153
    %p155 = scmp.ne.s32.totalorder %s143, %s144
    %p156 = scmp.eq.s32.totalorder %s18, 7
    %p157 = por %p155, %p156
    %p159 = scmp.ne.s32.totalorder %s144, %s158
    %p160 = scmp.eq.s32.totalorder %s18, 0
    %p161 = por %p159, %p160
    %s163 = sadd.s32 %s162, 1
    %p166 = scmp.eq.s32.totalorder %s12, 7
    %p167 = scmp.ne.s32.totalorder %s162, %s164
    %p168 = scmp.eq.s32.totalorder %s12, 0
    %p169 = por %p167, %p168
    %p170 = scmp.ne.s32.totalorder %s162, %s164
    %p171 = scmp.eq.s32.totalorder %s17, 7
    %p172 = por %p170, %p171
    %p173 = scmp.ne.s32.totalorder %s164, %s165
    %p174 = scmp.eq.s32.totalorder %s17, 0
    %p175 = por %p173, %p174
    %p176 = scmp.ne.s32.totalorder %s164, %s165
    %p177 = scmp.eq.s32.totalorder %s18, 7
    %p178 = por %p176, %p177
    %p180 = scmp.ne.s32.totalorder %s165, %s179
    %p181 = scmp.eq.s32.totalorder %s18, 0
    %p182 = por %p180, %p181
    %s183 = ssub.s32 %s19, %s31
    %s184 = ssub.s32 %s20, %s27
    %s185 = sor.u32 %s183, %s184
    %p186 = scmp.eq.s32.totalorder %s185, 0
    %s188 = sadd.s32 %s187, 1
    %s189 = scalar_select %p186, %s187, %s188
    %p192 = pneg %p186
    %p193 = scmp.eq.s32.totalorder %s12, 7
    %p194 = por %p192, %p193
    %p195 = scmp.ne.s32.totalorder %s187, %s190
    %p196 = scmp.eq.s32.totalorder %s12, 0
    %p197 = por %p195, %p196
    %p198 = scmp.ne.s32.totalorder %s187, %s190
    %p199 = scmp.eq.s32.totalorder %s17, 7
    %p200 = por %p198, %p199
    %p201 = scmp.ne.s32.totalorder %s190, %s191
    %p202 = scmp.eq.s32.totalorder %s17, 0
    %p203 = por %p201, %p202
    %p204 = scmp.ne.s32.totalorder %s190, %s191
    %p205 = scmp.eq.s32.totalorder %s18, 7
    %p206 = por %p204, %p205
    %p208 = scmp.ne.s32.totalorder %s191, %s207
    %p209 = scmp.eq.s32.totalorder %s18, 0
    %p210 = por %p208, %p209
    %p211 = scmp.le.s32.totalorder 1, %s12
    %p212 = scmp.lt.s32.totalorder %s12, 9
    %p213 = pnand %p211, %p212
    %p214 = pneg %p213
    // Predicated region
    $region9: #{down_forward.3} parent=5 // pred_check
      _
    $region10: #{down_forward.3} parent=5 // pred_check_branch
      %216 = sbr.rel (%p213) target = $region12
    $region11: #{down_forward.3} parent=5 // pred_region
      %s217 = ssub.s32 %s12, 1
      // Predicated region
      $region13: #{down_forward.3} parent=11 // pred_check
        %p218 = pneg %p133
      $region14: #{down_forward.3} parent=11 // pred_check_branch
        %220 = sbr.rel (%p218) target = $region16
      $region15: #{down_forward.3} parent=11 // pred_region
        _
      $region16: #{down_forward.3} parent=11 // pred_fallthru
        _
      // Predicated region
      $region17: #{down_forward.3} parent=11 // pred_check
        %p221 = pneg %p154
      $region18: #{down_forward.3} parent=11 // pred_check_branch
        %223 = sbr.rel (%p221) target = $region20
      $region19: #{down_forward.3} parent=11 // pred_region
        _
      $region20: #{down_forward.3} parent=11 // pred_fallthru
        _
      // Predicated region
      $region21: #{down_forward.3} parent=11 // pred_check
        %p224 = pneg %p175
      $region22: #{down_forward.3} parent=11 // pred_check_branch
        %226 = sbr.rel (%p224) target = $region24
      $region23: #{down_forward.3} parent=11 // pred_region
        _
      $region24: #{down_forward.3} parent=11 // pred_fallthru
        _
    $region12: #{down_forward.3} parent=5 // pred_fallthru
      _
    %p227 = scmp.lt.s32.totalorder %s12, 8
    // Predicated region
    $region25: #{down_forward.3} parent=5 // pred_check
      %p228 = pneg %p227
    $region26: #{down_forward.3} parent=5 // pred_check_branch
      %230 = sbr.rel (%p228) target = $region28
    $region27: #{down_forward.3} parent=5 // pred_region
      // Predicated region
      $region29: #{down_forward.3} parent=27 // pred_check
        %p231 = pneg %p46
      $region30: #{down_forward.3} parent=27 // pred_check_branch
        %233 = sbr.rel (%p231) target = $region32
      $region31: #{down_forward.3} parent=27 // pred_region
        %p234 = scmp.lt.s32.totalorder %s19, 1
        %s235 = scalar_select %p234, %s19, 1
        %p236 = scmp.lt.s32.totalorder %s20, 5
        %s237 = scalar_select %p236, %s20, 5
        %s238 = smul.addr %s237, 20
        %s239 = smul.addr %s235, 120
        %s240 = sadd.s32 %s238, %s239
        %s241 = smul.addr %s240, 4
        %s242 = scalar_lea.vmem %s0, %s241
      $region32: #{down_forward.3} parent=27 // pred_fallthru
        _
      // Predicated region
      $region33: #{down_forward.3} parent=27 // pred_check
        %p243 = pneg %p76
      $region34: #{down_forward.3} parent=27 // pred_check_branch
        %245 = sbr.rel (%p243) target = $region36
      $region35: #{down_forward.3} parent=27 // pred_region
        %s246 = sadd.s32 %s20, 1
        %p247 = scmp.lt.s32.totalorder %s19, 1
        %s248 = scalar_select %p247, %s19, 1
        %p249 = scmp.lt.s32.totalorder %s246, 5
        %s250 = scalar_select %p249, %s246, 5
        %s251 = smul.addr %s250, 20
        %s252 = smul.addr %s248, 120
        %s253 = sadd.s32 %s251, %s252
        %s254 = smul.addr %s253, 4
        %s255 = scalar_lea.vmem %s1, %s254
        %s256 = sadd.s32 %s20, 1
      $region36: #{down_forward.3} parent=27 // pred_fallthru
        _
      // Predicated region
      $region37: #{down_forward.3} parent=27 // pred_check
        %p257 = pneg %p106
      $region38: #{down_forward.3} parent=27 // pred_check_branch
        %259 = sbr.rel (%p257) target = $region40
      $region39: #{down_forward.3} parent=27 // pred_region
        %s260 = sadd.s32 %s20, 2
        %p261 = scmp.lt.s32.totalorder %s19, 1
        %s262 = scalar_select %p261, %s19, 1
        %p263 = scmp.lt.s32.totalorder %s260, 5
        %s264 = scalar_select %p263, %s260, 5
        %s265 = smul.addr %s264, 20
        %s266 = smul.addr %s262, 120
        %s267 = sadd.s32 %s265, %s266
        %s268 = smul.addr %s267, 4
        %s269 = scalar_lea.vmem %s2, %s268
        %s270 = sadd.s32 %s20, 2
      $region40: #{down_forward.3} parent=27 // pred_fallthru
        _
    $region28: #{down_forward.3} parent=5 // pred_fallthru
      _
    %p271 = scmp.le.s32.totalorder 1, %s12
    %p272 = scmp.lt.s32.totalorder %s12, 9
    %p273 = pnand %p271, %p272
    %p274 = pneg %p273
    // Predicated region
    $region41: #{down_forward.3} parent=5 // pred_check
      _
    $region42: #{down_forward.3} parent=5 // pred_check_branch
      %276 = sbr.rel (%p273) target = $region44
    $region43: #{down_forward.3} parent=5 // pred_region
      %s277 = ssub.s32 %s12, 1
      %p278 = scmp.lt.s32.totalorder %s21, 1
      %s279 = scalar_select %p278, %s21, 1
      %p280 = scmp.lt.s32.totalorder %s22, 5
      %s281 = scalar_select %p280, %s22, 5
      %s282 = smul.addr %s281, 20
      %s283 = smul.addr %s279, 120
      %s284 = sadd.s32 %s282, %s283
      %s285 = smul.addr %s284, 4
      %s286 = scalar_lea.vmem %s0, %s285
      %p287 = pneg %p52
      %p288 = pneg %p49
      %s289 = sadd.s32 %s22, 1
      %p290 = scmp.lt.s32.totalorder %s21, 1
      %s291 = scalar_select %p290, %s21, 1
      %p292 = scmp.lt.s32.totalorder %s289, 5
      %s293 = scalar_select %p292, %s289, 5
      %s294 = smul.addr %s293, 20
      %s295 = smul.addr %s291, 120
      %s296 = sadd.s32 %s294, %s295
      %s297 = smul.addr %s296, 4
      %s298 = scalar_lea.vmem %s1, %s297
      %p299 = pneg %p82
      %p300 = pneg %p79
      %s301 = sadd.s32 %s22, 2
      %p302 = scmp.lt.s32.totalorder %s21, 1
      %s303 = scalar_select %p302, %s21, 1
      %p304 = scmp.lt.s32.totalorder %s301, 5
      %s305 = scalar_select %p304, %s301, 5
      %s306 = smul.addr %s305, 20
      %s307 = smul.addr %s303, 120
      %s308 = sadd.s32 %s306, %s307
      %s309 = smul.addr %s308, 4
      %s310 = scalar_lea.vmem %s2, %s309
      %p311 = pneg %p112
      %p312 = pneg %p109
      %p313 = pneg %p133
      %p314 = pneg %p130
      %p315 = pneg %p154
      %p316 = pneg %p151
      %p317 = pneg %p175
      %p318 = pneg %p172
      %p319 = pneg %p203
      %p320 = pneg %p200
      %p321 = scmp.lt.s32.totalorder %s21, 1
      %s322 = scalar_select %p321, %s21, 1
      %p323 = scmp.lt.s32.totalorder %s22, 3
      %s324 = scalar_select %p323, %s22, 3
      %s325 = smul.addr %s324, 8
      %s326 = smul.addr %s322, 32
      %s327 = sadd.s32 %s325, %s326
      %s328 = smul.addr %s327, 8
      %s329 = scalar_lea.vmem %s6, %s328
      %p330 = scmp.lt.s32.totalorder %s21, 1
      %s331 = scalar_select %p330, %s21, 1
      %p332 = scmp.lt.s32.totalorder %s22, 5
      %s333 = scalar_select %p332, %s22, 5
      %s334 = smul.addr %s333, 20
      %s335 = smul.addr %s331, 120
      %s336 = sadd.s32 %s334, %s335
      %s337 = smul.addr %s336, 4
      %s338 = scalar_lea.vmem %s0, %s337
      %s339 = sadd.s32 %s22, 1
      %p340 = scmp.lt.s32.totalorder %s21, 1
      %s341 = scalar_select %p340, %s21, 1
      %p342 = scmp.lt.s32.totalorder %s339, 5
      %s343 = scalar_select %p342, %s339, 5
      %s344 = smul.addr %s343, 20
      %s345 = smul.addr %s341, 120
      %s346 = sadd.s32 %s344, %s345
      %s347 = smul.addr %s346, 4
      %s348 = scalar_lea.vmem %s1, %s347
      %s349 = sadd.s32 %s22, 1
      %s350 = sadd.s32 %s22, 2
      %p351 = scmp.lt.s32.totalorder %s21, 1
      %s352 = scalar_select %p351, %s21, 1
      %p353 = scmp.lt.s32.totalorder %s350, 5
      %s354 = scalar_select %p353, %s350, 5
      %s355 = smul.addr %s354, 20
      %s356 = smul.addr %s352, 120
      %s357 = sadd.s32 %s355, %s356
      %s358 = smul.addr %s357, 4
      %s359 = scalar_lea.vmem %s2, %s358
      %s360 = sadd.s32 %s22, 2
      %p361 = scmp.lt.s32.totalorder %s21, 1
      %s362 = scalar_select %p361, %s21, 1
      %p363 = scmp.lt.s32.totalorder %s22, 3
      %s364 = scalar_select %p363, %s22, 3
      %s365 = smul.addr %s364, 8
      %s366 = smul.addr %s362, 32
      %s367 = sadd.s32 %s365, %s366
      %s368 = smul.addr %s367, 8
      %s369 = scalar_lea.vmem %s6, %s368
      %v371 = vld [vmem:[%s338] sm:$0xf]
      %v372 = vld [vmem:[%s338 + $0x4] sm:$0x1]
      %v373 = vld [vmem:[%s338 + $0x8] sm:$0xf]
      %v374 = vld [vmem:[%s338 + $0xc] sm:$0x1]
      %v375 = vld [vmem:[%s338 + $0x10] sm:$0xf]
      %v376 = vld [vmem:[%s338 + $0x14] sm:$0x1]
      %v377 = vld [vmem:[%s338 + $0x18] sm:$0xf]
      %v378 = vld [vmem:[%s338 + $0x1c] sm:$0x1]
      %v379 = vld [vmem:[%s338 + $0x20] sm:$0xf]
      %v380 = vld [vmem:[%s338 + $0x24] sm:$0x1]
      %v381 = vld [vmem:[%s338 + $0x28] sm:$0xf]
      %v382 = vld [vmem:[%s338 + $0x2c] sm:$0x1]
      %v383 = vld [vmem:[%s338 + $0x30] sm:$0xf]
      %v384 = vld [vmem:[%s338 + $0x34] sm:$0x1]
      %v385 = vld [vmem:[%s338 + $0x38] sm:$0xf]
      %v386 = vld [vmem:[%s338 + $0x3c] sm:$0x1]
      %v387 = vld [vmem:[%s338 + $0x40] sm:$0xf]
      %v388 = vld [vmem:[%s338 + $0x44] sm:$0x1]
      %v389 = vld [vmem:[%s338 + $0x48] sm:$0xf]
      %v390 = vld [vmem:[%s338 + $0x4c] sm:$0x1]
      %v391 = vld [vmem:[%s348] sm:$0xf]
      %v392 = vld [vmem:[%s348 + $0x4] sm:$0x1]
      %v393 = vld [vmem:[%s348 + $0x8] sm:$0xf]
      %v394 = vld [vmem:[%s348 + $0xc] sm:$0x1]
      %v395 = vld [vmem:[%s348 + $0x10] sm:$0xf]
      %v396 = vld [vmem:[%s348 + $0x14] sm:$0x1]
      %v397 = vld [vmem:[%s348 + $0x18] sm:$0xf]
      %v398 = vld [vmem:[%s348 + $0x1c] sm:$0x1]
      %v399 = vld [vmem:[%s348 + $0x20] sm:$0xf]
      %v400 = vld [vmem:[%s348 + $0x24] sm:$0x1]
      %v401 = vld [vmem:[%s348 + $0x28] sm:$0xf]
      %v402 = vld [vmem:[%s348 + $0x2c] sm:$0x1]
      %v403 = vld [vmem:[%s348 + $0x30] sm:$0xf]
      %v404 = vld [vmem:[%s348 + $0x34] sm:$0x1]
      %v405 = vld [vmem:[%s348 + $0x38] sm:$0xf]
      %v406 = vld [vmem:[%s348 + $0x3c] sm:$0x1]
      %v407 = vld [vmem:[%s348 + $0x40] sm:$0xf]
      %v408 = vld [vmem:[%s348 + $0x44] sm:$0x1]
      %v409 = vld [vmem:[%s348 + $0x48] sm:$0xf]
      %v410 = vld [vmem:[%s348 + $0x4c] sm:$0x1]
      %v411 = vld [vmem:[%s359] sm:$0xf]
      %v412 = vld [vmem:[%s359 + $0x4] sm:$0x1]
      %v413 = vld [vmem:[%s359 + $0x8] sm:$0xf]
      %v414 = vld [vmem:[%s359 + $0xc] sm:$0x1]
      %v415 = vld [vmem:[%s359 + $0x10] sm:$0xf]
      %v416 = vld [vmem:[%s359 + $0x14] sm:$0x1]
      %v417 = vld [vmem:[%s359 + $0x18] sm:$0xf]
      %v418 = vld [vmem:[%s359 + $0x1c] sm:$0x1]
      %v419 = vld [vmem:[%s359 + $0x20] sm:$0xf]
      %v420 = vld [vmem:[%s359 + $0x24] sm:$0x1]
      %v421 = vld [vmem:[%s359 + $0x28] sm:$0xf]
      %v422 = vld [vmem:[%s359 + $0x2c] sm:$0x1]
      %v423 = vld [vmem:[%s359 + $0x30] sm:$0xf]
      %v424 = vld [vmem:[%s359 + $0x34] sm:$0x1]
      %v425 = vld [vmem:[%s359 + $0x38] sm:$0xf]
      %v426 = vld [vmem:[%s359 + $0x3c] sm:$0x1]
      %v427 = vld [vmem:[%s359 + $0x40] sm:$0xf]
      %v428 = vld [vmem:[%s359 + $0x44] sm:$0x1]
      %v429 = vld [vmem:[%s359 + $0x48] sm:$0xf]
      %v430 = vld [vmem:[%s359 + $0x4c] sm:$0x1]
      %v447 = vunpack.c.l.b16 %v371
      %v448 = vunpack.c.l.b16 %v372
      %v449 = vunpack.c.l.b16 %v373
      %v450 = vunpack.c.l.b16 %v374
      %v451 = vunpack.c.l.b16 %v375
      %v452 = vunpack.c.l.b16 %v376
      %v453 = vunpack.c.l.b16 %v377
      %v454 = vunpack.c.l.b16 %v378
      %v455 = vunpack.c.l.b16 %v379
      %v456 = vunpack.c.l.b16 %v380
      %v457 = vunpack.c.l.b16 %v381
      %v458 = vunpack.c.l.b16 %v382
      %v459 = vunpack.c.l.b16 %v383
      %v460 = vunpack.c.l.b16 %v384
      %v461 = vunpack.c.l.b16 %v385
      %v462 = vunpack.c.l.b16 %v386
      %v463 = vpack.c.b16 %v448, %v447
      %v464 = vpack.c.b16 %v450, %v449
      %v465 = vpack.c.b16 %v452, %v451
      %v466 = vpack.c.b16 %v454, %v453
      %v467 = vpack.c.b16 %v456, %v455
      %v468 = vpack.c.b16 %v458, %v457
      %v469 = vpack.c.b16 %v460, %v459
      %v470 = vpack.c.b16 %v462, %v461
      %v472 = vshrl.u32 %v463, 16
      %v474 = vshll.u32 %v463, 16
      %v476 = vrot.slane %v474, 1
      %v477 = vor.u32 %v472, %v476
      %v479 = vshrl.u32 %v464, 16
      %v481 = vshll.u32 %v464, 16
      %v483 = vrot.slane %v481, 1
      %v484 = vor.u32 %v479, %v483
      %v486 = vshrl.u32 %v465, 16
      %v488 = vshll.u32 %v465, 16
      %v490 = vrot.slane %v488, 1
      %v491 = vor.u32 %v486, %v490
      %v493 = vshrl.u32 %v466, 16
      %v495 = vshll.u32 %v466, 16
      %v497 = vrot.slane %v495, 1
      %v498 = vor.u32 %v493, %v497
      %v500 = vshrl.u32 %v467, 16
      %v502 = vshll.u32 %v467, 16
      %v504 = vrot.slane %v502, 1
      %v505 = vor.u32 %v500, %v504
      %v507 = vshrl.u32 %v468, 16
      %v509 = vshll.u32 %v468, 16
      %v511 = vrot.slane %v509, 1
      %v512 = vor.u32 %v507, %v511
      %v514 = vshrl.u32 %v469, 16
      %v516 = vshll.u32 %v469, 16
      %v518 = vrot.slane %v516, 1
      %v519 = vor.u32 %v514, %v518
      %v521 = vshrl.u32 %v470, 16
      %v523 = vshll.u32 %v470, 16
      %v525 = vrot.slane %v523, 1
      %v526 = vor.u32 %v521, %v525
      %527 = vrot.lane.b32.xlu0 %v477, 8
      %v528 = vpop.permute.xlu0 %527
      %529 = vrot.lane.b32.xlu0 %v484, 8
      %v530 = vpop.permute.xlu0 %529
      %531 = vrot.lane.b32.xlu0 %v491, 8
      %v532 = vpop.permute.xlu0 %531
      %533 = vrot.lane.b32.xlu0 %v498, 8
      %v534 = vpop.permute.xlu0 %533
      %535 = vrot.lane.b32.xlu0 %v505, 8
      %v536 = vpop.permute.xlu0 %535
      %537 = vrot.lane.b32.xlu0 %v512, 8
      %v538 = vpop.permute.xlu0 %537
      %539 = vrot.lane.b32.xlu0 %v519, 8
      %v540 = vpop.permute.xlu0 %539
      %541 = vrot.lane.b32.xlu0 %v526, 8
      %v542 = vpop.permute.xlu0 %541
      %v543 = vrot.slane %v463, 1
      %v544 = vrot.slane %v464, 1
      %v545 = vrot.slane %v465, 1
      %v546 = vrot.slane %v466, 1
      %v547 = vrot.slane %v467, 1
      %v548 = vrot.slane %v468, 1
      %v549 = vrot.slane %v469, 1
      %v550 = vrot.slane %v470, 1
      %551 = vrot.lane.b32.xlu0 %v543, 16
      %v552 = vpop.permute.xlu0 %551
      %553 = vrot.lane.b32.xlu0 %v544, 16
      %v554 = vpop.permute.xlu0 %553
      %555 = vrot.lane.b32.xlu0 %v545, 16
      %v556 = vpop.permute.xlu0 %555
      %557 = vrot.lane.b32.xlu0 %v546, 16
      %v558 = vpop.permute.xlu0 %557
      %559 = vrot.lane.b32.xlu0 %v547, 16
      %v560 = vpop.permute.xlu0 %559
      %561 = vrot.lane.b32.xlu0 %v548, 16
      %v562 = vpop.permute.xlu0 %561
      %563 = vrot.lane.b32.xlu0 %v549, 16
      %v564 = vpop.permute.xlu0 %563
      %565 = vrot.lane.b32.xlu0 %v550, 16
      %v566 = vpop.permute.xlu0 %565
      %v568 = vunpack.c.l.b16 %v387
      %v569 = vpack.c.b16 %v449, %v449
      %v570 = vpack.c.b16 %v451, %v451
      %v571 = vpack.c.b16 %v453, %v453
      %v572 = vpack.c.b16 %v455, %v455
      %v573 = vpack.c.b16 %v457, %v457
      %v574 = vpack.c.b16 %v459, %v459
      %v575 = vpack.c.b16 %v461, %v461
      %v576 = vpack.c.b16 %v568, %v568
      %577 = vrot.lane.b32.xlu0 %v569, 24
      %v578 = vpop.permute.xlu0 %577
      %579 = vrot.lane.b32.xlu0 %v570, 24
      %v580 = vpop.permute.xlu0 %579
      %581 = vrot.lane.b32.xlu0 %v571, 24
      %v582 = vpop.permute.xlu0 %581
      %583 = vrot.lane.b32.xlu0 %v572, 24
      %v584 = vpop.permute.xlu0 %583
      %585 = vrot.lane.b32.xlu0 %v573, 24
      %v586 = vpop.permute.xlu0 %585
      %587 = vrot.lane.b32.xlu0 %v574, 24
      %v588 = vpop.permute.xlu0 %587
      %589 = vrot.lane.b32.xlu0 %v575, 24
      %v590 = vpop.permute.xlu0 %589
      %591 = vrot.lane.b32.xlu0 %v576, 24
      %v592 = vpop.permute.xlu0 %591
      %v594 = vunpack.c.l.b16 %v388
      %v595 = vpack.c.b16 %v594, %v568
      %v597 = vshrl.u32 %v595, 16
      %v599 = vshll.u32 %v595, 16
      %v601 = vrot.slane %v599, 1
      %v602 = vor.u32 %v597, %v601
      %603 = vrot.lane.b32.xlu0 %v484, 32
      %v604 = vpop.permute.xlu0 %603
      %605 = vrot.lane.b32.xlu0 %v491, 32
      %v606 = vpop.permute.xlu0 %605
      %607 = vrot.lane.b32.xlu0 %v498, 32
      %v608 = vpop.permute.xlu0 %607
      %609 = vrot.lane.b32.xlu0 %v505, 32
      %v610 = vpop.permute.xlu0 %609
      %611 = vrot.lane.b32.xlu0 %v512, 32
      %v612 = vpop.permute.xlu0 %611
      %613 = vrot.lane.b32.xlu0 %v519, 32
      %v614 = vpop.permute.xlu0 %613
      %615 = vrot.lane.b32.xlu0 %v526, 32
      %v616 = vpop.permute.xlu0 %615
      %617 = vrot.lane.b32.xlu0 %v602, 32
      %v618 = vpop.permute.xlu0 %617
      %v619 = vrot.slane %v595, 1
      %620 = vrot.lane.b32.xlu0 %v544, 40
      %v621 = vpop.permute.xlu0 %620
      %622 = vrot.lane.b32.xlu0 %v545, 40
      %v623 = vpop.permute.xlu0 %622
      %624 = vrot.lane.b32.xlu0 %v546, 40
      %v625 = vpop.permute.xlu0 %624
      %626 = vrot.lane.b32.xlu0 %v547, 40
      %v627 = vpop.permute.xlu0 %626
      %628 = vrot.lane.b32.xlu0 %v548, 40
      %v629 = vpop.permute.xlu0 %628
      %630 = vrot.lane.b32.xlu0 %v549, 40
      %v631 = vpop.permute.xlu0 %630
      %632 = vrot.lane.b32.xlu0 %v550, 40
      %v633 = vpop.permute.xlu0 %632
      %634 = vrot.lane.b32.xlu0 %v619, 40
      %v635 = vpop.permute.xlu0 %634
      %v637 = vunpack.c.l.b16 %v389
      %v638 = vpack.c.b16 %v637, %v637
      %639 = vrot.lane.b32.xlu0 %v570, 48
      %v640 = vpop.permute.xlu0 %639
      %641 = vrot.lane.b32.xlu0 %v571, 48
      %v642 = vpop.permute.xlu0 %641
      %643 = vrot.lane.b32.xlu0 %v572, 48
      %v644 = vpop.permute.xlu0 %643
      %645 = vrot.lane.b32.xlu0 %v573, 48
      %v646 = vpop.permute.xlu0 %645
      %647 = vrot.lane.b32.xlu0 %v574, 48
      %v648 = vpop.permute.xlu0 %647
      %649 = vrot.lane.b32.xlu0 %v575, 48
      %v650 = vpop.permute.xlu0 %649
      %651 = vrot.lane.b32.xlu0 %v576, 48
      %v652 = vpop.permute.xlu0 %651
      %653 = vrot.lane.b32.xlu0 %v638, 48
      %v654 = vpop.permute.xlu0 %653
      %v656 = vunpack.c.l.b16 %v390
      %v657 = vpack.c.b16 %v656, %v637
      %v659 = vshrl.u32 %v657, 16
      %v661 = vshll.u32 %v657, 16
      %v663 = vrot.slane %v661, 1
      %v664 = vor.u32 %v659, %v663
      %665 = vrot.lane.b32.xlu0 %v491, 56
      %v666 = vpop.permute.xlu0 %665
      %667 = vrot.lane.b32.xlu0 %v498, 56
      %v668 = vpop.permute.xlu0 %667
      %669 = vrot.lane.b32.xlu0 %v505, 56
      %v670 = vpop.permute.xlu0 %669
      %671 = vrot.lane.b32.xlu0 %v512, 56
      %v672 = vpop.permute.xlu0 %671
      %673 = vrot.lane.b32.xlu0 %v519, 56
      %v674 = vpop.permute.xlu0 %673
      %675 = vrot.lane.b32.xlu0 %v526, 56
      %v676 = vpop.permute.xlu0 %675
      %677 = vrot.lane.b32.xlu0 %v602, 56
      %v678 = vpop.permute.xlu0 %677
      %679 = vrot.lane.b32.xlu0 %v664, 56
      %v680 = vpop.permute.xlu0 %679
      %v681 = vrot.slane %v657, 1
      %682 = vrot.lane.b32.xlu0 %v545, 64
      %v683 = vpop.permute.xlu0 %682
      %684 = vrot.lane.b32.xlu0 %v546, 64
      %v685 = vpop.permute.xlu0 %684
      %686 = vrot.lane.b32.xlu0 %v547, 64
      %v687 = vpop.permute.xlu0 %686
      %688 = vrot.lane.b32.xlu0 %v548, 64
      %v689 = vpop.permute.xlu0 %688
      %690 = vrot.lane.b32.xlu0 %v549, 64
      %v691 = vpop.permute.xlu0 %690
      %692 = vrot.lane.b32.xlu0 %v550, 64
      %v693 = vpop.permute.xlu0 %692
      %694 = vrot.lane.b32.xlu0 %v619, 64
      %v695 = vpop.permute.xlu0 %694
      %696 = vrot.lane.b32.xlu0 %v681, 64
      %v697 = vpop.permute.xlu0 %696
      %v706 = vunpack.c.l.b16 %v391
      %v707 = vunpack.c.l.b16 %v393
      %v708 = vunpack.c.l.b16 %v395
      %v709 = vunpack.c.l.b16 %v397
      %v710 = vunpack.c.l.b16 %v399
      %v711 = vunpack.c.l.b16 %v401
      %v712 = vunpack.c.l.b16 %v403
      %v713 = vunpack.c.l.b16 %v405
      %v714 = vpack.c.b16 %v706, %v706
      %v715 = vpack.c.b16 %v707, %v707
      %v716 = vpack.c.b16 %v708, %v708
      %v717 = vpack.c.b16 %v709, %v709
      %v718 = vpack.c.b16 %v710, %v710
      %v719 = vpack.c.b16 %v711, %v711
      %v720 = vpack.c.b16 %v712, %v712
      %v721 = vpack.c.b16 %v713, %v713
      %722 = vrot.lane.b32.xlu0 %v714, 72
      %v723 = vpop.permute.xlu0 %722
      %724 = vrot.lane.b32.xlu0 %v715, 72
      %v725 = vpop.permute.xlu0 %724
      %726 = vrot.lane.b32.xlu0 %v716, 72
      %v727 = vpop.permute.xlu0 %726
      %728 = vrot.lane.b32.xlu0 %v717, 72
      %v729 = vpop.permute.xlu0 %728
      %730 = vrot.lane.b32.xlu0 %v718, 72
      %v731 = vpop.permute.xlu0 %730
      %732 = vrot.lane.b32.xlu0 %v719, 72
      %v733 = vpop.permute.xlu0 %732
      %734 = vrot.lane.b32.xlu0 %v720, 72
      %v735 = vpop.permute.xlu0 %734
      %736 = vrot.lane.b32.xlu0 %v721, 72
      %v737 = vpop.permute.xlu0 %736
      %v746 = vunpack.c.l.b16 %v392
      %v747 = vunpack.c.l.b16 %v394
      %v748 = vunpack.c.l.b16 %v396
      %v749 = vunpack.c.l.b16 %v398
      %v750 = vunpack.c.l.b16 %v400
      %v751 = vunpack.c.l.b16 %v402
      %v752 = vunpack.c.l.b16 %v404
      %v753 = vunpack.c.l.b16 %v406
      %v754 = vpack.c.b16 %v746, %v706
      %v755 = vpack.c.b16 %v747, %v707
      %v756 = vpack.c.b16 %v748, %v708
      %v757 = vpack.c.b16 %v749, %v709
      %v758 = vpack.c.b16 %v750, %v710
      %v759 = vpack.c.b16 %v751, %v711
      %v760 = vpack.c.b16 %v752, %v712
      %v761 = vpack.c.b16 %v753, %v713
      %v763 = vshrl.u32 %v754, 16
      %v765 = vshll.u32 %v754, 16
      %v767 = vrot.slane %v765, 1
      %v768 = vor.u32 %v763, %v767
      %v770 = vshrl.u32 %v755, 16
      %v772 = vshll.u32 %v755, 16
      %v774 = vrot.slane %v772, 1
      %v775 = vor.u32 %v770, %v774
      %v777 = vshrl.u32 %v756, 16
      %v779 = vshll.u32 %v756, 16
      %v781 = vrot.slane %v779, 1
      %v782 = vor.u32 %v777, %v781
      %v784 = vshrl.u32 %v757, 16
      %v786 = vshll.u32 %v757, 16
      %v788 = vrot.slane %v786, 1
      %v789 = vor.u32 %v784, %v788
      %v791 = vshrl.u32 %v758, 16
      %v793 = vshll.u32 %v758, 16
      %v795 = vrot.slane %v793, 1
      %v796 = vor.u32 %v791, %v795
      %v798 = vshrl.u32 %v759, 16
      %v800 = vshll.u32 %v759, 16
      %v802 = vrot.slane %v800, 1
      %v803 = vor.u32 %v798, %v802
      %v805 = vshrl.u32 %v760, 16
      %v807 = vshll.u32 %v760, 16
      %v809 = vrot.slane %v807, 1
      %v810 = vor.u32 %v805, %v809
      %v812 = vshrl.u32 %v761, 16
      %v814 = vshll.u32 %v761, 16
      %v816 = vrot.slane %v814, 1
      %v817 = vor.u32 %v812, %v816
      %818 = vrot.lane.b32.xlu0 %v768, 80
      %v819 = vpop.permute.xlu0 %818
      %820 = vrot.lane.b32.xlu0 %v775, 80
      %v821 = vpop.permute.xlu0 %820
      %822 = vrot.lane.b32.xlu0 %v782, 80
      %v823 = vpop.permute.xlu0 %822
      %824 = vrot.lane.b32.xlu0 %v789, 80
      %v825 = vpop.permute.xlu0 %824
      %826 = vrot.lane.b32.xlu0 %v796, 80
      %v827 = vpop.permute.xlu0 %826
      %828 = vrot.lane.b32.xlu0 %v803, 80
      %v829 = vpop.permute.xlu0 %828
      %830 = vrot.lane.b32.xlu0 %v810, 80
      %v831 = vpop.permute.xlu0 %830
      %832 = vrot.lane.b32.xlu0 %v817, 80
      %v833 = vpop.permute.xlu0 %832
      %v834 = vrot.slane %v754, 1
      %v835 = vrot.slane %v755, 1
      %v836 = vrot.slane %v756, 1
      %v837 = vrot.slane %v757, 1
      %v838 = vrot.slane %v758, 1
      %v839 = vrot.slane %v759, 1
      %v840 = vrot.slane %v760, 1
      %v841 = vrot.slane %v761, 1
      %842 = vrot.lane.b32.xlu0 %v834, 88
      %v843 = vpop.permute.xlu0 %842
      %844 = vrot.lane.b32.xlu0 %v835, 88
      %v845 = vpop.permute.xlu0 %844
      %846 = vrot.lane.b32.xlu0 %v836, 88
      %v847 = vpop.permute.xlu0 %846
      %848 = vrot.lane.b32.xlu0 %v837, 88
      %v849 = vpop.permute.xlu0 %848
      %850 = vrot.lane.b32.xlu0 %v838, 88
      %v851 = vpop.permute.xlu0 %850
      %852 = vrot.lane.b32.xlu0 %v839, 88
      %v853 = vpop.permute.xlu0 %852
      %854 = vrot.lane.b32.xlu0 %v840, 88
      %v855 = vpop.permute.xlu0 %854
      %856 = vrot.lane.b32.xlu0 %v841, 88
      %v857 = vpop.permute.xlu0 %856
      %v859 = vunpack.c.l.b16 %v407
      %v860 = vpack.c.b16 %v859, %v859
      %861 = vrot.lane.b32.xlu0 %v715, 96
      %v862 = vpop.permute.xlu0 %861
      %863 = vrot.lane.b32.xlu0 %v716, 96
      %v864 = vpop.permute.xlu0 %863
      %865 = vrot.lane.b32.xlu0 %v717, 96
      %v866 = vpop.permute.xlu0 %865
      %867 = vrot.lane.b32.xlu0 %v718, 96
      %v868 = vpop.permute.xlu0 %867
      %869 = vrot.lane.b32.xlu0 %v719, 96
      %v870 = vpop.permute.xlu0 %869
      %871 = vrot.lane.b32.xlu0 %v720, 96
      %v872 = vpop.permute.xlu0 %871
      %873 = vrot.lane.b32.xlu0 %v721, 96
      %v874 = vpop.permute.xlu0 %873
      %875 = vrot.lane.b32.xlu0 %v860, 96
      %v876 = vpop.permute.xlu0 %875
      %v878 = vunpack.c.l.b16 %v408
      %v879 = vpack.c.b16 %v878, %v859
      %v881 = vshrl.u32 %v879, 16
      %v883 = vshll.u32 %v879, 16
      %v885 = vrot.slane %v883, 1
      %v886 = vor.u32 %v881, %v885
      %887 = vrot.lane.b32.xlu0 %v775, 104
      %v888 = vpop.permute.xlu0 %887
      %889 = vrot.lane.b32.xlu0 %v782, 104
      %v890 = vpop.permute.xlu0 %889
      %891 = vrot.lane.b32.xlu0 %v789, 104
      %v892 = vpop.permute.xlu0 %891
      %893 = vrot.lane.b32.xlu0 %v796, 104
      %v894 = vpop.permute.xlu0 %893
      %895 = vrot.lane.b32.xlu0 %v803, 104
      %v896 = vpop.permute.xlu0 %895
      %897 = vrot.lane.b32.xlu0 %v810, 104
      %v898 = vpop.permute.xlu0 %897
      %899 = vrot.lane.b32.xlu0 %v817, 104
      %v900 = vpop.permute.xlu0 %899
      %901 = vrot.lane.b32.xlu0 %v886, 104
      %v902 = vpop.permute.xlu0 %901
      %v903 = vrot.slane %v879, 1
      %904 = vrot.lane.b32.xlu0 %v835, 112
      %v905 = vpop.permute.xlu0 %904
      %906 = vrot.lane.b32.xlu0 %v836, 112
      %v907 = vpop.permute.xlu0 %906
      %908 = vrot.lane.b32.xlu0 %v837, 112
      %v909 = vpop.permute.xlu0 %908
      %910 = vrot.lane.b32.xlu0 %v838, 112
      %v911 = vpop.permute.xlu0 %910
      %912 = vrot.lane.b32.xlu0 %v839, 112
      %v913 = vpop.permute.xlu0 %912
      %914 = vrot.lane.b32.xlu0 %v840, 112
      %v915 = vpop.permute.xlu0 %914
      %916 = vrot.lane.b32.xlu0 %v841, 112
      %v917 = vpop.permute.xlu0 %916
      %918 = vrot.lane.b32.xlu0 %v903, 112
      %v919 = vpop.permute.xlu0 %918
      %v921 = vunpack.c.l.b16 %v409
      %v922 = vpack.c.b16 %v921, %v921
      %923 = vrot.lane.b32.xlu0 %v716, 120
      %v924 = vpop.permute.xlu0 %923
      %925 = vrot.lane.b32.xlu0 %v717, 120
      %v926 = vpop.permute.xlu0 %925
      %927 = vrot.lane.b32.xlu0 %v718, 120
      %v928 = vpop.permute.xlu0 %927
      %929 = vrot.lane.b32.xlu0 %v719, 120
      %v930 = vpop.permute.xlu0 %929
      %931 = vrot.lane.b32.xlu0 %v720, 120
      %v932 = vpop.permute.xlu0 %931
      %933 = vrot.lane.b32.xlu0 %v721, 120
      %v934 = vpop.permute.xlu0 %933
      %935 = vrot.lane.b32.xlu0 %v860, 120
      %v936 = vpop.permute.xlu0 %935
      %937 = vrot.lane.b32.xlu0 %v922, 120
      %v938 = vpop.permute.xlu0 %937
      %vm939 = vcmask 64512
      %v942 = vsel %vm939, %v371, %v528
      %v945 = vsel %vm939, %v373, %v530
      %v948 = vsel %vm939, %v375, %v532
      %v951 = vsel %vm939, %v377, %v534
      %v954 = vsel %vm939, %v379, %v536
      %v957 = vsel %vm939, %v381, %v538
      %v960 = vsel %vm939, %v383, %v540
      %v963 = vsel %vm939, %v385, %v542
      %vm964 = vcmask 130048
      %v966 = vsel %vm964, %v942, %v552
      %v968 = vsel %vm964, %v945, %v554
      %v970 = vsel %vm964, %v948, %v556
      %v972 = vsel %vm964, %v951, %v558
      %v974 = vsel %vm964, %v954, %v560
      %v976 = vsel %vm964, %v957, %v562
      %v978 = vsel %vm964, %v960, %v564
      %v980 = vsel %vm964, %v963, %v566
      %vm981 = vcmask 195584
      %v983 = vsel %vm981, %v966, %v578
      %v985 = vsel %vm981, %v968, %v580
      %v987 = vsel %vm981, %v970, %v582
      %v989 = vsel %vm981, %v972, %v584
      %v991 = vsel %vm981, %v974, %v586
      %v993 = vsel %vm981, %v976, %v588
      %v995 = vsel %vm981, %v978, %v590
      %v997 = vsel %vm981, %v980, %v592
      %vm998 = vcmask 261120
      %v1000 = vsel %vm998, %v983, %v604
      %v1002 = vsel %vm998, %v985, %v606
      %v1004 = vsel %vm998, %v987, %v608
      %v1006 = vsel %vm998, %v989, %v610
      %v1008 = vsel %vm998, %v991, %v612
      %v1010 = vsel %vm998, %v993, %v614
      %v1012 = vsel %vm998, %v995, %v616
      %v1014 = vsel %vm998, %v997, %v618
      %vm1015 = vcmask 326656
      %v1017 = vsel %vm1015, %v1000, %v621
      %v1019 = vsel %vm1015, %v1002, %v623
      %v1021 = vsel %vm1015, %v1004, %v625
      %v1023 = vsel %vm1015, %v1006, %v627
      %v1025 = vsel %vm1015, %v1008, %v629
      %v1027 = vsel %vm1015, %v1010, %v631
      %v1029 = vsel %vm1015, %v1012, %v633
      %v1031 = vsel %vm1015, %v1014, %v635
      %vm1032 = vcmask 392192
      %v1034 = vsel %vm1032, %v1017, %v640
      %v1036 = vsel %vm1032, %v1019, %v642
      %v1038 = vsel %vm1032, %v1021, %v644
      %v1040 = vsel %vm1032, %v1023, %v646
      %v1042 = vsel %vm1032, %v1025, %v648
      %v1044 = vsel %vm1032, %v1027, %v650
      %v1046 = vsel %vm1032, %v1029, %v652
      %v1048 = vsel %vm1032, %v1031, %v654
      %vm1049 = vcmask 457728
      %v1051 = vsel %vm1049, %v1034, %v666
      %v1053 = vsel %vm1049, %v1036, %v668
      %v1055 = vsel %vm1049, %v1038, %v670
      %v1057 = vsel %vm1049, %v1040, %v672
      %v1059 = vsel %vm1049, %v1042, %v674
      %v1061 = vsel %vm1049, %v1044, %v676
      %v1063 = vsel %vm1049, %v1046, %v678
      %v1065 = vsel %vm1049, %v1048, %v680
      %vm1066 = vcmask 523264
      %v1068 = vsel %vm1066, %v1051, %v683
      %v1070 = vsel %vm1066, %v1053, %v685
      %v1072 = vsel %vm1066, %v1055, %v687
      %v1074 = vsel %vm1066, %v1057, %v689
      %v1076 = vsel %vm1066, %v1059, %v691
      %v1078 = vsel %vm1066, %v1061, %v693
      %v1080 = vsel %vm1066, %v1063, %v695
      %v1082 = vsel %vm1066, %v1065, %v697
      %vm1083 = vcmask 588800
      %v1085 = vsel %vm1083, %v1068, %v723
      %v1087 = vsel %vm1083, %v1070, %v725
      %v1089 = vsel %vm1083, %v1072, %v727
      %v1091 = vsel %vm1083, %v1074, %v729
      %v1093 = vsel %vm1083, %v1076, %v731
      %v1095 = vsel %vm1083, %v1078, %v733
      %v1097 = vsel %vm1083, %v1080, %v735
      %v1099 = vsel %vm1083, %v1082, %v737
      %vm1100 = vcmask 654336
      %v1102 = vsel %vm1100, %v1085, %v819
      %v1104 = vsel %vm1100, %v1087, %v821
      %v1106 = vsel %vm1100, %v1089, %v823
      %v1108 = vsel %vm1100, %v1091, %v825
      %v1110 = vsel %vm1100, %v1093, %v827
      %v1112 = vsel %vm1100, %v1095, %v829
      %v1114 = vsel %vm1100, %v1097, %v831
      %v1116 = vsel %vm1100, %v1099, %v833
      %vm1117 = vcmask 719872
      %v1119 = vsel %vm1117, %v1102, %v843
      %v1121 = vsel %vm1117, %v1104, %v845
      %v1123 = vsel %vm1117, %v1106, %v847
      %v1125 = vsel %vm1117, %v1108, %v849
      %v1127 = vsel %vm1117, %v1110, %v851
      %v1129 = vsel %vm1117, %v1112, %v853
      %v1131 = vsel %vm1117, %v1114, %v855
      %v1133 = vsel %vm1117, %v1116, %v857
      %vm1134 = vcmask 785408
      %v1136 = vsel %vm1134, %v1119, %v862
      %v1138 = vsel %vm1134, %v1121, %v864
      %v1140 = vsel %vm1134, %v1123, %v866
      %v1142 = vsel %vm1134, %v1125, %v868
      %v1144 = vsel %vm1134, %v1127, %v870
      %v1146 = vsel %vm1134, %v1129, %v872
      %v1148 = vsel %vm1134, %v1131, %v874
      %v1150 = vsel %vm1134, %v1133, %v876
      %vm1151 = vcmask 850944
      %v1153 = vsel %vm1151, %v1136, %v888
      %v1155 = vsel %vm1151, %v1138, %v890
      %v1157 = vsel %vm1151, %v1140, %v892
      %v1159 = vsel %vm1151, %v1142, %v894
      %v1161 = vsel %vm1151, %v1144, %v896
      %v1163 = vsel %vm1151, %v1146, %v898
      %v1165 = vsel %vm1151, %v1148, %v900
      %v1167 = vsel %vm1151, %v1150, %v902
      %vm1168 = vcmask 916480
      %v1170 = vsel %vm1168, %v1153, %v905
      %v1172 = vsel %vm1168, %v1155, %v907
      %v1174 = vsel %vm1168, %v1157, %v909
      %v1176 = vsel %vm1168, %v1159, %v911
      %v1178 = vsel %vm1168, %v1161, %v913
      %v1180 = vsel %vm1168, %v1163, %v915
      %v1182 = vsel %vm1168, %v1165, %v917
      %v1184 = vsel %vm1168, %v1167, %v919
      %vm1185 = vcmask 982016
      %v1187 = vsel %vm1185, %v1170, %v924
      %v1189 = vsel %vm1185, %v1172, %v926
      %v1191 = vsel %vm1185, %v1174, %v928
      %v1193 = vsel %vm1185, %v1176, %v930
      %v1195 = vsel %vm1185, %v1178, %v932
      %v1197 = vsel %vm1185, %v1180, %v934
      %v1199 = vsel %vm1185, %v1182, %v936
      %v1201 = vsel %vm1185, %v1184, %v938
      %v1203 = vunpack.c.l.b16 %v410
      %v1204 = vpack.c.b16 %v1203, %v921
      %v1206 = vshrl.u32 %v1204, 16
      %v1208 = vshll.u32 %v1204, 16
      %v1210 = vrot.slane %v1208, 1
      %v1211 = vor.u32 %v1206, %v1210
      %1212 = vrot.lane.b32.xlu0 %v782, 8
      %v1213 = vpop.permute.xlu0 %1212
      %1214 = vrot.lane.b32.xlu0 %v789, 8
      %v1215 = vpop.permute.xlu0 %1214
      %1216 = vrot.lane.b32.xlu0 %v796, 8
      %v1217 = vpop.permute.xlu0 %1216
      %1218 = vrot.lane.b32.xlu0 %v803, 8
      %v1219 = vpop.permute.xlu0 %1218
      %1220 = vrot.lane.b32.xlu0 %v810, 8
      %v1221 = vpop.permute.xlu0 %1220
      %1222 = vrot.lane.b32.xlu0 %v817, 8
      %v1223 = vpop.permute.xlu0 %1222
      %1224 = vrot.lane.b32.xlu0 %v886, 8
      %v1225 = vpop.permute.xlu0 %1224
      %1226 = vrot.lane.b32.xlu0 %v1211, 8
      %v1227 = vpop.permute.xlu0 %1226
      %v1236 = vunpack.c.l.b16 %v411
      %v1237 = vunpack.c.l.b16 %v413
      %v1238 = vunpack.c.l.b16 %v415
      %v1239 = vunpack.c.l.b16 %v417
      %v1240 = vunpack.c.l.b16 %v419
      %v1241 = vunpack.c.l.b16 %v421
      %v1242 = vunpack.c.l.b16 %v423
      %v1243 = vunpack.c.l.b16 %v425
      %v1244 = vpack.c.b16 %v1236, %v1236
      %v1245 = vpack.c.b16 %v1237, %v1237
      %v1246 = vpack.c.b16 %v1238, %v1238
      %v1247 = vpack.c.b16 %v1239, %v1239
      %v1248 = vpack.c.b16 %v1240, %v1240
      %v1249 = vpack.c.b16 %v1241, %v1241
      %v1250 = vpack.c.b16 %v1242, %v1242
      %v1251 = vpack.c.b16 %v1243, %v1243
      %v1253 = vshrl.u32 %v1244, 16
      %v1255 = vrot.slane %v1253, 7
      %v1256 = vshll.u32 %v1244, 16
      %v1258 = vor.u32 %v1255, %v1256
      %v1260 = vshrl.u32 %v1245, 16
      %v1262 = vrot.slane %v1260, 7
      %v1263 = vshll.u32 %v1245, 16
      %v1265 = vor.u32 %v1262, %v1263
      %v1267 = vshrl.u32 %v1246, 16
      %v1269 = vrot.slane %v1267, 7
      %v1270 = vshll.u32 %v1246, 16
      %v1272 = vor.u32 %v1269, %v1270
      %v1274 = vshrl.u32 %v1247, 16
      %v1276 = vrot.slane %v1274, 7
      %v1277 = vshll.u32 %v1247, 16
      %v1279 = vor.u32 %v1276, %v1277
      %v1281 = vshrl.u32 %v1248, 16
      %v1283 = vrot.slane %v1281, 7
      %v1284 = vshll.u32 %v1248, 16
      %v1286 = vor.u32 %v1283, %v1284
      %v1288 = vshrl.u32 %v1249, 16
      %v1290 = vrot.slane %v1288, 7
      %v1291 = vshll.u32 %v1249, 16
      %v1293 = vor.u32 %v1290, %v1291
      %v1295 = vshrl.u32 %v1250, 16
      %v1297 = vrot.slane %v1295, 7
      %v1298 = vshll.u32 %v1250, 16
      %v1300 = vor.u32 %v1297, %v1298
      %v1302 = vshrl.u32 %v1251, 16
      %v1304 = vrot.slane %v1302, 7
      %v1305 = vshll.u32 %v1251, 16
      %v1307 = vor.u32 %v1304, %v1305
      %1308 = vrot.lane.b32.xlu0 %v1258, 16
      %v1309 = vpop.permute.xlu0 %1308
      %1310 = vrot.lane.b32.xlu0 %v1265, 16
      %v1311 = vpop.permute.xlu0 %1310
      %1312 = vrot.lane.b32.xlu0 %v1272, 16
      %v1313 = vpop.permute.xlu0 %1312
      %1314 = vrot.lane.b32.xlu0 %v1279, 16
      %v1315 = vpop.permute.xlu0 %1314
      %1316 = vrot.lane.b32.xlu0 %v1286, 16
      %v1317 = vpop.permute.xlu0 %1316
      %1318 = vrot.lane.b32.xlu0 %v1293, 16
      %v1319 = vpop.permute.xlu0 %1318
      %1320 = vrot.lane.b32.xlu0 %v1300, 16
      %v1321 = vpop.permute.xlu0 %1320
      %1322 = vrot.lane.b32.xlu0 %v1307, 16
      %v1323 = vpop.permute.xlu0 %1322
      %v1332 = vunpack.c.l.b16 %v412
      %v1333 = vunpack.c.l.b16 %v414
      %v1334 = vunpack.c.l.b16 %v416
      %v1335 = vunpack.c.l.b16 %v418
      %v1336 = vunpack.c.l.b16 %v420
      %v1337 = vunpack.c.l.b16 %v422
      %v1338 = vunpack.c.l.b16 %v424
      %v1339 = vunpack.c.l.b16 %v426
      %v1340 = vpack.c.b16 %v1332, %v1236
      %v1341 = vpack.c.b16 %v1333, %v1237
      %v1342 = vpack.c.b16 %v1334, %v1238
      %v1343 = vpack.c.b16 %v1335, %v1239
      %v1344 = vpack.c.b16 %v1336, %v1240
      %v1345 = vpack.c.b16 %v1337, %v1241
      %v1346 = vpack.c.b16 %v1338, %v1242
      %v1347 = vpack.c.b16 %v1339, %v1243
      %1348 = vrot.lane.b32.xlu0 %v1340, 24
      %v1349 = vpop.permute.xlu0 %1348
      %1350 = vrot.lane.b32.xlu0 %v1341, 24
      %v1351 = vpop.permute.xlu0 %1350
      %1352 = vrot.lane.b32.xlu0 %v1342, 24
      %v1353 = vpop.permute.xlu0 %1352
      %1354 = vrot.lane.b32.xlu0 %v1343, 24
      %v1355 = vpop.permute.xlu0 %1354
      %1356 = vrot.lane.b32.xlu0 %v1344, 24
      %v1357 = vpop.permute.xlu0 %1356
      %1358 = vrot.lane.b32.xlu0 %v1345, 24
      %v1359 = vpop.permute.xlu0 %1358
      %1360 = vrot.lane.b32.xlu0 %v1346, 24
      %v1361 = vpop.permute.xlu0 %1360
      %1362 = vrot.lane.b32.xlu0 %v1347, 24
      %v1363 = vpop.permute.xlu0 %1362
      %v1365 = vshrl.u32 %v1340, 16
      %v1367 = vshll.u32 %v1340, 16
      %v1369 = vrot.slane %v1367, 1
      %v1370 = vor.u32 %v1365, %v1369
      %v1372 = vshrl.u32 %v1341, 16
      %v1374 = vshll.u32 %v1341, 16
      %v1376 = vrot.slane %v1374, 1
      %v1377 = vor.u32 %v1372, %v1376
      %v1379 = vshrl.u32 %v1342, 16
      %v1381 = vshll.u32 %v1342, 16
      %v1383 = vrot.slane %v1381, 1
      %v1384 = vor.u32 %v1379, %v1383
      %v1386 = vshrl.u32 %v1343, 16
      %v1388 = vshll.u32 %v1343, 16
      %v1390 = vrot.slane %v1388, 1
      %v1391 = vor.u32 %v1386, %v1390
      %v1393 = vshrl.u32 %v1344, 16
      %v1395 = vshll.u32 %v1344, 16
      %v1397 = vrot.slane %v1395, 1
      %v1398 = vor.u32 %v1393, %v1397
      %v1400 = vshrl.u32 %v1345, 16
      %v1402 = vshll.u32 %v1345, 16
      %v1404 = vrot.slane %v1402, 1
      %v1405 = vor.u32 %v1400, %v1404
      %v1407 = vshrl.u32 %v1346, 16
      %v1409 = vshll.u32 %v1346, 16
      %v1411 = vrot.slane %v1409, 1
      %v1412 = vor.u32 %v1407, %v1411
      %v1414 = vshrl.u32 %v1347, 16
      %v1416 = vshll.u32 %v1347, 16
      %v1418 = vrot.slane %v1416, 1
      %v1419 = vor.u32 %v1414, %v1418
      %1420 = vrot.lane.b32.xlu0 %v1370, 32
      %v1421 = vpop.permute.xlu0 %1420
      %1422 = vrot.lane.b32.xlu0 %v1377, 32
      %v1423 = vpop.permute.xlu0 %1422
      %1424 = vrot.lane.b32.xlu0 %v1384, 32
      %v1425 = vpop.permute.xlu0 %1424
      %1426 = vrot.lane.b32.xlu0 %v1391, 32
      %v1427 = vpop.permute.xlu0 %1426
      %1428 = vrot.lane.b32.xlu0 %v1398, 32
      %v1429 = vpop.permute.xlu0 %1428
      %1430 = vrot.lane.b32.xlu0 %v1405, 32
      %v1431 = vpop.permute.xlu0 %1430
      %1432 = vrot.lane.b32.xlu0 %v1412, 32
      %v1433 = vpop.permute.xlu0 %1432
      %1434 = vrot.lane.b32.xlu0 %v1419, 32
      %v1435 = vpop.permute.xlu0 %1434
      %v1437 = vunpack.c.l.b16 %v427
      %v1438 = vpack.c.b16 %v1437, %v1437
      %v1440 = vshrl.u32 %v1438, 16
      %v1442 = vrot.slane %v1440, 7
      %v1443 = vshll.u32 %v1438, 16
      %v1445 = vor.u32 %v1442, %v1443
      %1446 = vrot.lane.b32.xlu0 %v1265, 40
      %v1447 = vpop.permute.xlu0 %1446
      %1448 = vrot.lane.b32.xlu0 %v1272, 40
      %v1449 = vpop.permute.xlu0 %1448
      %1450 = vrot.lane.b32.xlu0 %v1279, 40
      %v1451 = vpop.permute.xlu0 %1450
      %1452 = vrot.lane.b32.xlu0 %v1286, 40
      %v1453 = vpop.permute.xlu0 %1452
      %1454 = vrot.lane.b32.xlu0 %v1293, 40
      %v1455 = vpop.permute.xlu0 %1454
      %1456 = vrot.lane.b32.xlu0 %v1300, 40
      %v1457 = vpop.permute.xlu0 %1456
      %1458 = vrot.lane.b32.xlu0 %v1307, 40
      %v1459 = vpop.permute.xlu0 %1458
      %1460 = vrot.lane.b32.xlu0 %v1445, 40
      %v1461 = vpop.permute.xlu0 %1460
      %v1463 = vunpack.c.l.b16 %v428
      %v1464 = vpack.c.b16 %v1463, %v1437
      %1465 = vrot.lane.b32.xlu0 %v1341, 48
      %v1466 = vpop.permute.xlu0 %1465
      %1467 = vrot.lane.b32.xlu0 %v1342, 48
      %v1468 = vpop.permute.xlu0 %1467
      %1469 = vrot.lane.b32.xlu0 %v1343, 48
      %v1470 = vpop.permute.xlu0 %1469
      %1471 = vrot.lane.b32.xlu0 %v1344, 48
      %v1472 = vpop.permute.xlu0 %1471
      %1473 = vrot.lane.b32.xlu0 %v1345, 48
      %v1474 = vpop.permute.xlu0 %1473
      %1475 = vrot.lane.b32.xlu0 %v1346, 48
      %v1476 = vpop.permute.xlu0 %1475
      %1477 = vrot.lane.b32.xlu0 %v1347, 48
      %v1478 = vpop.permute.xlu0 %1477
      %1479 = vrot.lane.b32.xlu0 %v1464, 48
      %v1480 = vpop.permute.xlu0 %1479
      %v1482 = vshrl.u32 %v1464, 16
      %v1484 = vshll.u32 %v1464, 16
      %v1486 = vrot.slane %v1484, 1
      %v1487 = vor.u32 %v1482, %v1486
      %1488 = vrot.lane.b32.xlu0 %v1377, 56
      %v1489 = vpop.permute.xlu0 %1488
      %1490 = vrot.lane.b32.xlu0 %v1384, 56
      %v1491 = vpop.permute.xlu0 %1490
      %1492 = vrot.lane.b32.xlu0 %v1391, 56
      %v1493 = vpop.permute.xlu0 %1492
      %1494 = vrot.lane.b32.xlu0 %v1398, 56
      %v1495 = vpop.permute.xlu0 %1494
      %1496 = vrot.lane.b32.xlu0 %v1405, 56
      %v1497 = vpop.permute.xlu0 %1496
      %1498 = vrot.lane.b32.xlu0 %v1412, 56
      %v1499 = vpop.permute.xlu0 %1498
      %1500 = vrot.lane.b32.xlu0 %v1419, 56
      %v1501 = vpop.permute.xlu0 %1500
      %1502 = vrot.lane.b32.xlu0 %v1487, 56
      %v1503 = vpop.permute.xlu0 %1502
      %v1505 = vunpack.c.l.b16 %v429
      %v1506 = vpack.c.b16 %v1505, %v1505
      %v1508 = vshrl.u32 %v1506, 16
      %v1510 = vrot.slane %v1508, 7
      %v1511 = vshll.u32 %v1506, 16
      %v1513 = vor.u32 %v1510, %v1511
      %1514 = vrot.lane.b32.xlu0 %v1272, 64
      %v1515 = vpop.permute.xlu0 %1514
      %1516 = vrot.lane.b32.xlu0 %v1279, 64
      %v1517 = vpop.permute.xlu0 %1516
      %1518 = vrot.lane.b32.xlu0 %v1286, 64
      %v1519 = vpop.permute.xlu0 %1518
      %1520 = vrot.lane.b32.xlu0 %v1293, 64
      %v1521 = vpop.permute.xlu0 %1520
      %1522 = vrot.lane.b32.xlu0 %v1300, 64
      %v1523 = vpop.permute.xlu0 %1522
      %1524 = vrot.lane.b32.xlu0 %v1307, 64
      %v1525 = vpop.permute.xlu0 %1524
      %1526 = vrot.lane.b32.xlu0 %v1445, 64
      %v1527 = vpop.permute.xlu0 %1526
      %1528 = vrot.lane.b32.xlu0 %v1513, 64
      %v1529 = vpop.permute.xlu0 %1528
      %v1531 = vunpack.c.l.b16 %v430
      %v1532 = vpack.c.b16 %v1531, %v1505
      %1533 = vrot.lane.b32.xlu0 %v1342, 72
      %v1534 = vpop.permute.xlu0 %1533
      %1535 = vrot.lane.b32.xlu0 %v1343, 72
      %v1536 = vpop.permute.xlu0 %1535
      %1537 = vrot.lane.b32.xlu0 %v1344, 72
      %v1538 = vpop.permute.xlu0 %1537
      %1539 = vrot.lane.b32.xlu0 %v1345, 72
      %v1540 = vpop.permute.xlu0 %1539
      %1541 = vrot.lane.b32.xlu0 %v1346, 72
      %v1542 = vpop.permute.xlu0 %1541
      %1543 = vrot.lane.b32.xlu0 %v1347, 72
      %v1544 = vpop.permute.xlu0 %1543
      %1545 = vrot.lane.b32.xlu0 %v1464, 72
      %v1546 = vpop.permute.xlu0 %1545
      %1547 = vrot.lane.b32.xlu0 %v1532, 72
      %v1548 = vpop.permute.xlu0 %1547
      %v1550 = vshrl.u32 %v1532, 16
      %v1552 = vshll.u32 %v1532, 16
      %v1554 = vrot.slane %v1552, 1
      %v1555 = vor.u32 %v1550, %v1554
      %1556 = vrot.lane.b32.xlu0 %v1384, 80
      %v1557 = vpop.permute.xlu0 %1556
      %1558 = vrot.lane.b32.xlu0 %v1391, 80
      %v1559 = vpop.permute.xlu0 %1558
      %1560 = vrot.lane.b32.xlu0 %v1398, 80
      %v1561 = vpop.permute.xlu0 %1560
      %1562 = vrot.lane.b32.xlu0 %v1405, 80
      %v1563 = vpop.permute.xlu0 %1562
      %1564 = vrot.lane.b32.xlu0 %v1412, 80
      %v1565 = vpop.permute.xlu0 %1564
      %1566 = vrot.lane.b32.xlu0 %v1419, 80
      %v1567 = vpop.permute.xlu0 %1566
      %1568 = vrot.lane.b32.xlu0 %v1487, 80
      %v1569 = vpop.permute.xlu0 %1568
      %1570 = vrot.lane.b32.xlu0 %v1555, 80
      %v1571 = vpop.permute.xlu0 %1570
      %v1573 = vsel %vm939, %v756, %v1213
      %v1575 = vsel %vm939, %v757, %v1215
      %v1577 = vsel %vm939, %v758, %v1217
      %v1579 = vsel %vm939, %v759, %v1219
      %v1581 = vsel %vm939, %v760, %v1221
      %v1583 = vsel %vm939, %v761, %v1223
      %v1585 = vsel %vm939, %v879, %v1225
      %v1587 = vsel %vm939, %v1204, %v1227
      %v1589 = vsel %vm964, %v1573, %v1309
      %v1591 = vsel %vm964, %v1575, %v1311
      %v1593 = vsel %vm964, %v1577, %v1313
      %v1595 = vsel %vm964, %v1579, %v1315
      %v1597 = vsel %vm964, %v1581, %v1317
      %v1599 = vsel %vm964, %v1583, %v1319
      %v1601 = vsel %vm964, %v1585, %v1321
      %v1603 = vsel %vm964, %v1587, %v1323
      %v1605 = vsel %vm981, %v1589, %v1349
      %v1607 = vsel %vm981, %v1591, %v1351
      %v1609 = vsel %vm981, %v1593, %v1353
      %v1611 = vsel %vm981, %v1595, %v1355
      %v1613 = vsel %vm981, %v1597, %v1357
      %v1615 = vsel %vm981, %v1599, %v1359
      %v1617 = vsel %vm981, %v1601, %v1361
      %v1619 = vsel %vm981, %v1603, %v1363
      %v1621 = vsel %vm998, %v1605, %v1421
      %v1623 = vsel %vm998, %v1607, %v1423
      %v1625 = vsel %vm998, %v1609, %v1425
      %v1627 = vsel %vm998, %v1611, %v1427
      %v1629 = vsel %vm998, %v1613, %v1429
      %v1631 = vsel %vm998, %v1615, %v1431
      %v1633 = vsel %vm998, %v1617, %v1433
      %v1635 = vsel %vm998, %v1619, %v1435
      %v1637 = vsel %vm1015, %v1621, %v1447
      %v1639 = vsel %vm1015, %v1623, %v1449
      %v1641 = vsel %vm1015, %v1625, %v1451
      %v1643 = vsel %vm1015, %v1627, %v1453
      %v1645 = vsel %vm1015, %v1629, %v1455
      %v1647 = vsel %vm1015, %v1631, %v1457
      %v1649 = vsel %vm1015, %v1633, %v1459
      %v1651 = vsel %vm1015, %v1635, %v1461
      %v1653 = vsel %vm1032, %v1637, %v1466
      %v1655 = vsel %vm1032, %v1639, %v1468
      %v1657 = vsel %vm1032, %v1641, %v1470
      %v1659 = vsel %vm1032, %v1643, %v1472
      %v1661 = vsel %vm1032, %v1645, %v1474
      %v1663 = vsel %vm1032, %v1647, %v1476
      %v1665 = vsel %vm1032, %v1649, %v1478
      %v1667 = vsel %vm1032, %v1651, %v1480
      %v1669 = vsel %vm1049, %v1653, %v1489
      %v1671 = vsel %vm1049, %v1655, %v1491
      %v1673 = vsel %vm1049, %v1657, %v1493
      %v1675 = vsel %vm1049, %v1659, %v1495
      %v1677 = vsel %vm1049, %v1661, %v1497
      %v1679 = vsel %vm1049, %v1663, %v1499
      %v1681 = vsel %vm1049, %v1665, %v1501
      %v1683 = vsel %vm1049, %v1667, %v1503
      %v1685 = vsel %vm1066, %v1669, %v1515
      %v1687 = vsel %vm1066, %v1671, %v1517
      %v1689 = vsel %vm1066, %v1673, %v1519
      %v1691 = vsel %vm1066, %v1675, %v1521
      %v1693 = vsel %vm1066, %v1677, %v1523
      %v1695 = vsel %vm1066, %v1679, %v1525
      %v1697 = vsel %vm1066, %v1681, %v1527
      %v1699 = vsel %vm1066, %v1683, %v1529
      %v1701 = vsel %vm1083, %v1685, %v1534
      %v1703 = vsel %vm1083, %v1687, %v1536
      %v1705 = vsel %vm1083, %v1689, %v1538
      %v1707 = vsel %vm1083, %v1691, %v1540
      %v1709 = vsel %vm1083, %v1693, %v1542
      %v1711 = vsel %vm1083, %v1695, %v1544
      %v1713 = vsel %vm1083, %v1697, %v1546
      %v1715 = vsel %vm1083, %v1699, %v1548
      %v1717 = vsel %vm1100, %v1701, %v1557
      %v1719 = vsel %vm1100, %v1703, %v1559
      %v1721 = vsel %vm1100, %v1705, %v1561
      %v1723 = vsel %vm1100, %v1707, %v1563
      %v1725 = vsel %vm1100, %v1709, %v1565
      %v1727 = vsel %vm1100, %v1711, %v1567
      %v1729 = vsel %vm1100, %v1713, %v1569
      %v1731 = vsel %vm1100, %v1715, %v1571
      %v1732 = vshrl.u32 %v1717, 16
      %v1734 = vshll.u32 %v1717, 16
      %v1736 = vrot.slane %v1734, 1
      %v1737 = vor.u32 %v1732, %v1736
      %v1738 = vshrl.u32 %v1719, 16
      %v1740 = vshll.u32 %v1719, 16
      %v1742 = vrot.slane %v1740, 1
      %v1743 = vor.u32 %v1738, %v1742
      %v1744 = vshrl.u32 %v1721, 16
      %v1746 = vshll.u32 %v1721, 16
      %v1748 = vrot.slane %v1746, 1
      %v1749 = vor.u32 %v1744, %v1748
      %v1750 = vshrl.u32 %v1723, 16
      %v1752 = vshll.u32 %v1723, 16
      %v1754 = vrot.slane %v1752, 1
      %v1755 = vor.u32 %v1750, %v1754
      %v1756 = vshrl.u32 %v1725, 16
      %v1758 = vshll.u32 %v1725, 16
      %v1760 = vrot.slane %v1758, 1
      %v1761 = vor.u32 %v1756, %v1760
      %v1762 = vshrl.u32 %v1727, 16
      %v1764 = vshll.u32 %v1727, 16
      %v1766 = vrot.slane %v1764, 1
      %v1767 = vor.u32 %v1762, %v1766
      %v1768 = vshrl.u32 %v1729, 16
      %v1770 = vshll.u32 %v1729, 16
      %v1772 = vrot.slane %v1770, 1
      %v1773 = vor.u32 %v1768, %v1772
      %v1774 = vshrl.u32 %v1731, 16
      %v1776 = vshll.u32 %v1731, 16
      %v1778 = vrot.slane %v1776, 1
      %v1779 = vor.u32 %v1774, %v1778
      %v1788 = vunpack.c.l.b16 %v1187
      %v1789 = vunpack.c.l.b16 %v1737
      %v1790 = vunpack.c.l.b16 %v1189
      %v1791 = vunpack.c.l.b16 %v1743
      %v1792 = vunpack.c.l.b16 %v1191
      %v1793 = vunpack.c.l.b16 %v1749
      %v1794 = vunpack.c.l.b16 %v1193
      %v1795 = vunpack.c.l.b16 %v1755
      %v1796 = vunpack.c.l.b16 %v1195
      %v1797 = vunpack.c.l.b16 %v1761
      %v1798 = vunpack.c.l.b16 %v1197
      %v1799 = vunpack.c.l.b16 %v1767
      %v1800 = vunpack.c.l.b16 %v1199
      %v1801 = vunpack.c.l.b16 %v1773
      %v1802 = vunpack.c.l.b16 %v1201
      %v1803 = vunpack.c.l.b16 %v1779
      %v1804 = vld [vmem:[%s3] sm:$0xf]
      %v1805 = vld [vmem:[%s3 + $0x4] sm:$0xf]
      %v1806 = vld [vmem:[%s3 + $0x8] sm:$0xf]
      %v1807 = vld [vmem:[%s3 + $0xc] sm:$0xf]
      %v1808 = vld [vmem:[%s3 + $0x10] sm:$0xf]
      %v1809 = vld [vmem:[%s3 + $0x14] sm:$0xf]
      %v1810 = vld [vmem:[%s3 + $0x18] sm:$0xf]
      %v1811 = vld [vmem:[%s3 + $0x1c] sm:$0xf]
      %v1812 = vld [vmem:[%s3 + $0x20] sm:$0xf]
      %v1813 = vld [vmem:[%s3 + $0x24] sm:$0xf]
      %v1814 = vld [vmem:[%s3 + $0x28] sm:$0xf]
      %v1815 = vld [vmem:[%s3 + $0x2c] sm:$0xf]
      %v1816 = vld [vmem:[%s3 + $0x30] sm:$0xf]
      %v1817 = vld [vmem:[%s3 + $0x34] sm:$0xf]
      %v1818 = vld [vmem:[%s3 + $0x38] sm:$0xf]
      %v1819 = vld [vmem:[%s3 + $0x3c] sm:$0xf]
      %v1820 = vld [vmem:[%s3 + $0x40] sm:$0xf]
      %v1821 = vld [vmem:[%s3 + $0x44] sm:$0xf]
      %v1822 = vld [vmem:[%s3 + $0x48] sm:$0xf]
      %v1823 = vld [vmem:[%s3 + $0x4c] sm:$0xf]
      %v1824 = vld [vmem:[%s3 + $0x50] sm:$0xf]
      %v1825 = vld [vmem:[%s3 + $0x54] sm:$0xf]
      %v1826 = vld [vmem:[%s3 + $0x58] sm:$0xf]
      %v1827 = vld [vmem:[%s3 + $0x5c] sm:$0xf]
      %v1828 = vld [vmem:[%s3 + $0x60] sm:$0xf]
      %v1829 = vld [vmem:[%s3 + $0x64] sm:$0xf]
      %v1830 = vld [vmem:[%s3 + $0x68] sm:$0xf]
      %v1831 = vpack.c.b16 %v1790, %v1788
      %v1832 = vpack.c.b16 %v1791, %v1789
      %v1833 = vpack.c.b16 %v1794, %v1792
      %v1834 = vpack.c.b16 %v1795, %v1793
      %v1835 = vpack.c.b16 %v1798, %v1796
      %v1836 = vpack.c.b16 %v1799, %v1797
      %v1837 = vpack.c.b16 %v1802, %v1800
      %v1838 = vpack.c.b16 %v1803, %v1801
      %v1870 = vunpack.c.l.b16 %v1804
      %v1871 = vunpack.c.l.b16 %v1805
      %v1872 = vunpack.c.l.b16 %v1806
      %v1873 = vunpack.c.l.b16 %v1807
      %v1874 = vunpack.c.l.b16 %v1808
      %v1875 = vunpack.c.l.b16 %v1809
      %v1876 = vunpack.c.l.b16 %v1810
      %v1877 = vunpack.c.l.b16 %v1811
      %v1878 = vunpack.c.l.b16 %v1812
      %v1879 = vunpack.c.l.b16 %v1813
      %v1880 = vunpack.c.l.b16 %v1814
      %v1881 = vunpack.c.l.b16 %v1815
      %v1882 = vunpack.c.l.b16 %v1816
      %v1883 = vunpack.c.l.b16 %v1817
      %v1884 = vunpack.c.l.b16 %v1818
      %v1885 = vunpack.c.l.b16 %v1819
      %v1886 = vunpack.c.l.b16 %v1820
      %v1887 = vunpack.c.l.b16 %v1821
      %v1888 = vunpack.c.l.b16 %v1822
      %v1889 = vunpack.c.l.b16 %v1823
      %v1890 = vunpack.c.l.b16 %v1824
      %v1891 = vunpack.c.l.b16 %v1825
      %v1892 = vunpack.c.l.b16 %v1826
      %v1893 = vunpack.c.l.b16 %v1827
      %v1894 = vunpack.c.l.b16 %v1828
      %v1895 = vunpack.c.l.b16 %v1829
      %v1896 = vunpack.c.l.b16 %v1830
      %v1897 = vpack.c.b16 %v1871, %v1870
      %v1898 = vpack.c.b16 %v1873, %v1872
      %v1899 = vpack.c.b16 %v1875, %v1874
      %v1900 = vpack.c.b16 %v1877, %v1876
      %v1901 = vpack.c.b16 %v1879, %v1878
      %v1902 = vpack.c.b16 %v1881, %v1880
      %v1903 = vpack.c.b16 %v1883, %v1882
      %v1904 = vpack.c.b16 %v1885, %v1884
      %v1905 = vpack.c.b16 %v1887, %v1886
      %v1906 = vpack.c.b16 %v1889, %v1888
      %v1907 = vpack.c.b16 %v1891, %v1890
      %v1908 = vpack.c.b16 %v1893, %v1892
      %v1909 = vpack.c.b16 %v1895, %v1894
      %v1910 = vpack.c.b16 %v1896, %v1896
      %v1925 = vsel %vm1117, %v1832, 0
      %v1928 = vsel %vm1117, %v1834, 0
      %v1931 = vsel %vm1117, %v1836, 0
      %v1934 = vsel %vm1117, %v1838, 0
      %vm1936 = vcmask 1043456
      %v1938 = vsel %vm1936, %v1910, 0
      %1940 = vmatprep.subr.bf16.mxu0 0
      %1941 = vmatpush1.bf16.msra.mxu0 %v1897
      %1942 = vmatprep.subr.bf16.mxu0 0
      %1943 = vmatpush1.bf16.msra.mxu0 %v1898
      %1944 = vmatprep.subr.bf16.mxu0 0
      %1945 = vmatpush1.bf16.msra.mxu0 %v1899
      %1946 = vmatprep.subr.bf16.mxu0 0
      %1947 = vmatpush1.bf16.msra.mxu0 %v1900
      %1948 = vmatprep.subr.bf16.mxu0 0
      %1949 = vmatpush1.bf16.msra.mxu0 %v1901
      %1950 = vmatprep.subr.bf16.mxu0 0
      %1951 = vmatpush1.bf16.msra.mxu0 %v1902
      %1952 = vmatprep.subr.bf16.mxu0 0
      %1953 = vmatpush1.bf16.msra.mxu0 %v1903
      %1954 = vmatprep.subr.bf16.mxu0 0
      %1955 = vmatpush1.bf16.msra.mxu0 %v1904
      %1956 = vmatprep.subr.bf16.mxu0 0
      %1957 = vmatpush1.bf16.msra.mxu0 %v1905
      %1958 = vmatprep.subr.bf16.mxu0 0
      %1959 = vmatpush1.bf16.msra.mxu0 %v1906
      %1960 = vmatprep.subr.bf16.mxu0 0
      %1961 = vmatpush1.bf16.msra.mxu0 %v1907
      %1962 = vmatprep.subr.bf16.mxu0 0
      %1963 = vmatpush1.bf16.msra.mxu0 %v1908
      %1964 = vmatprep.subr.bf16.mxu0 0
      %1965 = vmatpush1.bf16.msra.mxu0 %v1909
      %1966 = vmatprep.subr.bf16.mxu0 0
      %1967 = vmatpush1.bf16.msra.mxu0 %v1938
      %1968 = vmatprep.subr.bf16.mxu0 0
      %1969 = vmatpush1.bf16.msra.mxu0 0
      %1970 = vmatprep.subr.bf16.mxu0 0
      %1971 = vmatpush1.bf16.msra.mxu0 0
      %1972 = vmatprep.mubr.bf16.mxu0 %v1925
      %1973 = vmatmul.mubr.bf16.gmra.mrb[0].mxu0 %v1831
      %v1974 = vpop.f32.mrb[0].mxu0
      %v1975 = vadd.f32 0.0, %v1974
      %v1976 = vpop.f32.mrb[0].mxu0
      %v1977 = vpop.f32.mrb[0].mxu0
      %v1978 = vadd.f32 0.0, %v1977
      %v1979 = vpop.f32.mrb[0].mxu0
      %1980 = vmatprep.mubr.bf16.mxu0 %v1928
      %1981 = vmatmul.mubr.bf16.gmra.mrb[0].mxu0 %v1833
      %v1982 = vpop.f32.mrb[0].mxu0
      %v1983 = vadd.f32 0.0, %v1982
      %v1984 = vpop.f32.mrb[0].mxu0
      %v1985 = vpop.f32.mrb[0].mxu0
      %v1986 = vadd.f32 0.0, %v1985
      %v1987 = vpop.f32.mrb[0].mxu0
      %1988 = vmatprep.mubr.bf16.mxu0 %v1931
      %1989 = vmatmul.mubr.bf16.gmra.mrb[0].mxu0 %v1835
      %v1990 = vpop.f32.mrb[0].mxu0
      %v1991 = vadd.f32 0.0, %v1990
      %v1992 = vpop.f32.mrb[0].mxu0
      %v1993 = vpop.f32.mrb[0].mxu0
      %v1994 = vadd.f32 0.0, %v1993
      %v1995 = vpop.f32.mrb[0].mxu0
      %1996 = vmatprep.mubr.bf16.mxu0 %v1934
      %1997 = vmatmul.mubr.bf16.gmra.mrb[0].mxu0 %v1837
      %v1998 = vpop.f32.mrb[0].mxu0
      %v1999 = vadd.f32 0.0, %v1998
      %v2000 = vpop.f32.mrb[0].mxu0
      %v2001 = vpop.f32.mrb[0].mxu0
      %v2002 = vadd.f32 0.0, %v2001
      %v2003 = vpop.f32.mrb[0].mxu0
      %2004 = vdwg.mxu0
      %v2005 = vld [vmem:[%s4] sm:$0x1]
      %v2007 = vlaneseq
      %v2008 = vshrl.u32 %v2007, 7
      %v2009 = vsub.s32 0, %v2008
      %v2010 = vrot.slane %v2005, %v2009
      %v2012 = vmul.f32 %v1975, %v2010
      %v2013 = vmul.f32 %v1978, %v2010
      %v2014 = vmul.f32 %v1983, %v2010
      %v2015 = vmul.f32 %v1986, %v2010
      %v2016 = vmul.f32 %v1991, %v2010
      %v2017 = vmul.f32 %v1994, %v2010
      %v2018 = vmul.f32 %v1999, %v2010
      %v2019 = vmul.f32 %v2002, %v2010
      %v2020 = vld [vmem:[%s5] sm:$0x1]
      %v2022 = vlaneseq
      %v2023 = vshrl.u32 %v2022, 7
      %v2024 = vsub.s32 0, %v2023
      %v2025 = vrot.slane %v2020, %v2024
      %v2027 = vadd.f32 %v2012, %v2025
      %v2028 = vadd.f32 %v2013, %v2025
      %v2029 = vadd.f32 %v2014, %v2025
      %v2030 = vadd.f32 %v2015, %v2025
      %v2031 = vadd.f32 %v2016, %v2025
      %v2032 = vadd.f32 %v2017, %v2025
      %v2033 = vadd.f32 %v2018, %v2025
      %v2034 = vadd.f32 %v2019, %v2025
      %v2035 = vmax.f32 %v2027, 0.0
      %v2036 = vmax.f32 %v2028, 0.0
      %v2037 = vmax.f32 %v2029, 0.0
      %v2038 = vmax.f32 %v2030, 0.0
      %v2039 = vmax.f32 %v2031, 0.0
      %v2040 = vmax.f32 %v2032, 0.0
      %v2041 = vmax.f32 %v2033, 0.0
      %v2042 = vmax.f32 %v2034, 0.0
      %2043 = vst.msk [vmem:[%s369] sm:$0xff] %vm939, %v2035
      %2044 = vst.msk [vmem:[%s369 + $0x8] sm:$0xff] %vm939, %v2036
      %2045 = vst.msk [vmem:[%s369 + $0x10] sm:$0xff] %vm939, %v2037
      %2046 = vst.msk [vmem:[%s369 + $0x18] sm:$0xff] %vm939, %v2038
      %2047 = vst.msk [vmem:[%s369 + $0x20] sm:$0xff] %vm939, %v2039
      %2048 = vst.msk [vmem:[%s369 + $0x28] sm:$0xff] %vm939, %v2040
      %2049 = vst.msk [vmem:[%s369 + $0x30] sm:$0xff] %vm939, %v2041
      %2050 = vst.msk [vmem:[%s369 + $0x38] sm:$0xff] %vm939, %v2042
      %p2051 = scmp.lt.s32.totalorder %s21, 1
      %s2052 = scalar_select %p2051, %s21, 1
      %p2053 = scmp.lt.s32.totalorder %s22, 3
      %s2054 = scalar_select %p2053, %s22, 3
      %s2055 = smul.addr %s2054, 8
      %s2056 = smul.addr %s2052, 32
      %s2057 = sadd.s32 %s2055, %s2056
      %s2058 = smul.addr %s2057, 8
      %s2059 = scalar_lea.vmem %s6, %s2058
      // Predicated region
      $region45: #{down_forward.3} parent=43 // pred_check
        %p2060 = pneg %p200
      $region46: #{down_forward.3} parent=43 // pred_check_branch
        %2062 = sbr.rel (%p2060) target = $region48
      $region47: #{down_forward.3} parent=43 // pred_region
        _
      $region48: #{down_forward.3} parent=43 // pred_fallthru
        _
    $region44: #{down_forward.3} parent=5 // pred_fallthru
      _
    %p2063 = scmp.le.s32.totalorder 2, %s12
    // Predicated region
    $region49: #{down_forward.3} parent=5 // pred_check
      %p2064 = pneg %p2063
    $region50: #{down_forward.3} parent=5 // pred_check_branch
      %2066 = sbr.rel (%p2064) target = $region52
    $region51: #{down_forward.3} parent=5 // pred_region
      %s2067 = ssub.s32 %s12, 2
      // Predicated region
      $region53: #{down_forward.3} parent=51 // pred_check
        %p2068 = pneg %p206
      $region54: #{down_forward.3} parent=51 // pred_check_branch
        %2070 = sbr.rel (%p2068) target = $region56
      $region55: #{down_forward.3} parent=51 // pred_region
        %p2071 = scmp.lt.s32.totalorder %s23, 1
        %s2072 = scalar_select %p2071, %s23, 1
        %p2073 = scmp.lt.s32.totalorder %s24, 3
        %s2074 = scalar_select %p2073, %s24, 3
        %s2075 = smul.addr %s2074, 8
        %s2076 = smul.addr %s2072, 32
        %s2077 = sadd.s32 %s2075, %s2076
        %s2078 = smul.addr %s2077, 8
        %s2079 = scalar_lea.vmem %s6, %s2078
      $region56: #{down_forward.3} parent=51 // pred_fallthru
        _
    $region52: #{down_forward.3} parent=5 // pred_fallthru
      _
  $region6: #{down_forward.3} parent=0 // loop_footer
    %s16 = sadd.s32 1, %s12
  $region7: #{down_forward.3} parent=0 // loop_footer_branch
    %11 = sbr.rel target = $region3
  $region8: #{down_forward.3} parent=0 // loop_exit
    _

</llo_original>
